<compile_context>
chip_gen: v7x
topology: tpu7x:2x2x1
jax: 0.10.0
libtpu: 0.0.40
codegen_flags: <defaults>
</compile_context>

<pallas_src>
import jax
import jax.numpy as jnp
from jax.experimental import pallas as pl
from jax.experimental.pallas import tpu as pltpu

# Logical (PyTorch) dims
F_IN, H1, H2, F_OUT = 872, 527, 330, 206
# Lane-aligned (padded) output dims used inside the kernel
H1_P, H2_P, F_OUT_P = 640, 384, 256
BN_EPS = 1e-5
NEG_BIG = -1e30          # bias padding for unused logit lanes -> softmax == 0


def _chip_defaults():
    """(max batch tile, scoped VMEM limit) per TPU generation."""
    kind = ""
    try:
        kind = jax.devices()[0].device_kind.lower()
    except Exception:
        pass
    if "v5" in kind or "v6" in kind:      # 128 MiB physical VMEM per core
        return 2048, 64 << 20
    return 1024, 48 << 20                 # v7x (64 MiB VMEM / TC) or unknown


MAX_BATCH_TILE, VMEM_LIMIT = _chip_defaults()


def _round_up(a, m):
    return (a + m - 1) // m * m


def mlp_kernel(x_ref, w1_ref, b1_ref, w2_ref, b2_ref, w3_ref, b3_ref, out_ref):
    """BN-folded 3-layer MLP: 3 bf16 matmuls (f32 accum) + ReLU + softmax."""
    # Layer 1 (dropout = identity, bn1 folded into w1/b1). x arrives as bf16.
    h = jnp.dot(x_ref[...], w1_ref[...],
                preferred_element_type=jnp.float32) + b1_ref[...]
    h = jnp.maximum(h, 0.0)

    # Layer 2 (dropout = identity, bn2 folded into w2/b2)
    h = jnp.dot(h.astype(jnp.bfloat16), w2_ref[...],
                preferred_element_type=jnp.float32) + b2_ref[...]
    h = jnp.maximum(h, 0.0)

    # Layer 3; padded logit lanes carry bias = -1e30 so exp() underflows to 0
    logits = jnp.dot(h.astype(jnp.bfloat16), w3_ref[...],
                     preferred_element_type=jnp.float32) + b3_ref[...]

    # Numerically stable softmax over the class axis (EUP exp + approx recip)
    m = jnp.max(logits, axis=-1, keepdims=True)
    e = jnp.exp(logits - m)
    denom = jnp.sum(e, axis=-1, keepdims=True)
    out_ref[...] = e * pl.reciprocal(denom, approx=True)


def _resident(shape):
    # Same block for every grid step -> stays resident in VMEM.
    # (Weights are only ~1.8 MiB total, so default double-buffering is harmless
    #  within the scoped VMEM budget; pipeline_mode tweaks intentionally skipped.)
    return pl.BlockSpec(shape, lambda i: tuple(0 for _ in shape))


@jax.jit
def mlp_forward(x, kernel_params):
    w1, b1, w2, b2, w3, b3 = kernel_params
    B = x.shape[0]

    # Cast at the boundary (no-op if the caller already holds bf16). No feature
    # padding: the kernel reads the full 872-wide rows directly.
    x = x.astype(jnp.bfloat16)

    # Batch tile: at least 2 grid steps whenever B >= 16 so the single
    # "parallel" axis can shard across both v7x TensorCores; capped per chip.
    tb = min(MAX_BATCH_TILE, max(8, _round_up(-(-B // 2), 8)))
    b_pad = _round_up(B, tb)
    if b_pad != B:
        x = jnp.pad(x, ((0, b_pad - B), (0, 0)))

    out = pl.pallas_call(
        mlp_kernel,
        out_shape=jax.ShapeDtypeStruct((b_pad, F_OUT_P), jnp.float32),
        grid=(b_pad // tb,),
        in_specs=[
            pl.BlockSpec((tb, F_IN), lambda i: (i, 0)),   # full 872-wide rows
            _resident((F_IN, H1_P)),
            _resident((1, H1_P)),
            _resident((H1_P, H2_P)),
            _resident((1, H2_P)),
            _resident((H2_P, F_OUT_P)),
            _resident((1, F_OUT_P)),
        ],
        out_specs=pl.BlockSpec((tb, F_OUT_P), lambda i: (i, 0)),
        compiler_params=pltpu.CompilerParams(
            dimension_semantics=("parallel",),
            vmem_limit_bytes=VMEM_LIMIT,
        ),
    )(x, w1, b1, w2, b2, w3, b3)

    return out[:B, :F_OUT]


def init_raw_params(key):
    """PyTorch-equivalent raw parameters (Linear + BatchNorm defaults)."""
    ks = jax.random.split(key, 6)

    def kaiming_normal(k, out_f, in_f):
        # PyTorch kaiming_normal_ default: fan_in, a=0 -> std = sqrt(2/fan_in)
        std = (2.0 / in_f) ** 0.5
        return jax.random.normal(k, (out_f, in_f), jnp.float32) * std

    def linear_bias(k, out_f, in_f):
        bound = 1.0 / (in_f ** 0.5)
        return jax.random.uniform(k, (out_f,), jnp.float32, -bound, bound)

    return dict(
        w1=kaiming_normal(ks[0], H1, F_IN), bias1=linear_bias(ks[1], H1, F_IN),
        w2=kaiming_normal(ks[2], H2, H1), bias2=linear_bias(ks[3], H2, H1),
        w3=kaiming_normal(ks[4], F_OUT, H2), bias3=linear_bias(ks[5], F_OUT, H2),
        # BatchNorm1d defaults: gamma=1, beta=0, running_mean=0, running_var=1
        g1=jnp.ones((F_IN,), jnp.float32), beta1=jnp.zeros((F_IN,), jnp.float32),
        m1=jnp.zeros((F_IN,), jnp.float32), v1=jnp.ones((F_IN,), jnp.float32),
        g2=jnp.ones((H1,), jnp.float32), beta2=jnp.zeros((H1,), jnp.float32),
        m2=jnp.zeros((H1,), jnp.float32), v2=jnp.ones((H1,), jnp.float32),
    )


def prepare_kernel_params(raw):
    """Fold eval-mode BN into the adjacent Linear, pad output dims to lane
    multiples, transpose weights to [in, out] and cast them to bf16."""
    def fold(w, bias, gamma, beta, mean, var):
        # bn(x) = x*a + c ; linear(bn(x)) = x @ (a[:,None]*w.T) + (c @ w.T + bias)
        a = gamma * jax.lax.rsqrt(var + BN_EPS)
        c = beta - mean * a
        return w.T * a[:, None], bias + c @ w.T

    def pad_cols(w, cols):
        return jnp.pad(w, ((0, 0), (0, cols - w.shape[1])))

    def pad_rows_cols(w, rows, cols):
        return jnp.pad(w, ((0, rows - w.shape[0]), (0, cols - w.shape[1])))

    w1f, b1f = fold(raw["w1"], raw["bias1"], raw["g1"], raw["beta1"], raw["m1"], raw["v1"])
    w2f, b2f = fold(raw["w2"], raw["bias2"], raw["g2"], raw["beta2"], raw["m2"], raw["v2"])
    w3f, b3f = raw["w3"].T, raw["bias3"]

    # w1 keeps its K dimension at 872 (only the output dim is padded).
    w1p = pad_cols(w1f, H1_P).astype(jnp.bfloat16)
    w2p = pad_rows_cols(w2f, H1_P, H2_P).astype(jnp.bfloat16)
    w3p = pad_rows_cols(w3f, H2_P, F_OUT_P).astype(jnp.bfloat16)

    b1p = jnp.pad(b1f, (0, H1_P - H1)).reshape(1, H1_P).astype(jnp.float32)
    b2p = jnp.pad(b2f, (0, H2_P - H2)).reshape(1, H2_P).astype(jnp.float32)
    # keep b3 in f32: -1e30 in bf16 would become -inf (works, but fragile)
    b3p = jnp.pad(b3f, (0, F_OUT_P - F_OUT),
                  constant_values=NEG_BIG).reshape(1, F_OUT_P).astype(jnp.float32)

    return (w1p, b1p, w2p, b2p, w3p, b3p)


def reference_forward(x, raw):
    """Pure-JAX f32 reference of the original (unfolded, unpadded) forward."""
    def bn(v, g, b, m, var):
        return (v - m) * jax.lax.rsqrt(var + BN_EPS) * g + b
    h = bn(x, raw["g1"], raw["beta1"], raw["m1"], raw["v1"])
    h = jnp.maximum(h @ raw["w1"].T + raw["bias1"], 0.0)
    h = bn(h, raw["g2"], raw["beta2"], raw["m2"], raw["v2"])
    h = jnp.maximum(h @ raw["w2"].T + raw["bias2"], 0.0)
    logits = h @ raw["w3"].T + raw["bias3"]
    return jax.nn.softmax(logits, axis=1)


if __name__ == "__main__":
    key = jax.random.PRNGKey(0)
    k_x, k_p = jax.random.split(key)

    B = 8
    x = jax.random.normal(k_x, (B, F_IN), jnp.float32)
    raw = init_raw_params(k_p)
    params = prepare_kernel_params(raw)

    out = jax.block_until_ready(mlp_forward(x, params))
    ref = reference_forward(x, raw)

    assert out.shape == (B, F_OUT)
    row_sums = jnp.sum(out, axis=-1)
    # approx reciprocal in the softmax epilogue -> rows sum to 1 within ~1e-3
    assert bool(jnp.all(jnp.abs(row_sums - 1.0) < 5e-3))
    # bf16 activations/weights -> loose tolerance vs. the f32 reference
    assert bool(jnp.max(jnp.abs(out - ref)) < 5e-2)

    print("KERNEL_OK")
</pallas_src>

<mosaic_0001>
module attributes {stable_mosaic.version = 11 : i64} {
  func.func @mlp_kernel(%arg0: i32, %arg1: memref<8x872xbf16, #tpu.memory_space<vmem>>, %arg2: memref<872x640xbf16, #tpu.memory_space<vmem>>, %arg3: memref<1x640xf32, #tpu.memory_space<vmem>>, %arg4: memref<640x384xbf16, #tpu.memory_space<vmem>>, %arg5: memref<1x384xf32, #tpu.memory_space<vmem>>, %arg6: memref<384x256xbf16, #tpu.memory_space<vmem>>, %arg7: memref<1x256xf32, #tpu.memory_space<vmem>>, %arg8: memref<8x256xf32, #tpu.memory_space<vmem>>) attributes {dimension_semantics = [#tpu.dimension_semantics<parallel>], iteration_bounds = array<i64: 1>, scalar_prefetch = 0 : i64, scratch_operands = 0 : i64, tpu.core_type = #tpu.core_type<tc>, window_params = [{transform_indices = @transform_0, window_bounds = array<i64: 8, 872>}, {pipeline_mode = #tpu.pipeline_mode<synchronous>, transform_indices = @transform_1, window_bounds = array<i64: 872, 640>}, {pipeline_mode = #tpu.pipeline_mode<synchronous>, transform_indices = @transform_2, window_bounds = array<i64: 1, 640>}, {pipeline_mode = #tpu.pipeline_mode<synchronous>, transform_indices = @transform_3, window_bounds = array<i64: 640, 384>}, {pipeline_mode = #tpu.pipeline_mode<synchronous>, transform_indices = @transform_4, window_bounds = array<i64: 1, 384>}, {pipeline_mode = #tpu.pipeline_mode<synchronous>, transform_indices = @transform_5, window_bounds = array<i64: 384, 256>}, {pipeline_mode = #tpu.pipeline_mode<synchronous>, transform_indices = @transform_6, window_bounds = array<i64: 1, 256>}, {transform_indices = @transform_7, window_bounds = array<i64: 8, 256>}]} {
    %c0 = arith.constant 0 : index
    %c0_0 = arith.constant 0 : index
    %0 = vector.load %arg1[%c0, %c0_0] : memref<8x872xbf16, #tpu.memory_space<vmem>>, vector<8x872xbf16>
    %c0_1 = arith.constant 0 : index
    %c0_2 = arith.constant 0 : index
    %1 = vector.load %arg2[%c0_1, %c0_2] : memref<872x640xbf16, #tpu.memory_space<vmem>>, vector<872x640xbf16>
    %cst = arith.constant dense<0.000000e+00> : vector<8x640xf32>
    %2 = tpu.matmul %0, %1, %cst {dimension_numbers = #tpu.dot_dimension_numbers<[1], [0], [0], [1], [0, 0, 1, 1], [], []>} : vector<8x872xbf16>, vector<872x640xbf16>, vector<8x640xf32> -> vector<8x640xf32>
    %c0_3 = arith.constant 0 : index
    %c0_4 = arith.constant 0 : index
    %3 = vector.load %arg3[%c0_3, %c0_4] : memref<1x640xf32, #tpu.memory_space<vmem>>, vector<1x640xf32>
    %4 = vector.broadcast %3 : vector<1x640xf32> to vector<8x640xf32>
    %5 = arith.addf %2, %4 : vector<8x640xf32>
    %cst_5 = arith.constant 0.000000e+00 : f32
    %6 = vector.broadcast %cst_5 : f32 to vector<8x640xf32>
    %7 = arith.maximumf %5, %6 : vector<8x640xf32>
    %8 = arith.truncf %7 : vector<8x640xf32> to vector<8x640xbf16>
    %c0_6 = arith.constant 0 : index
    %c0_7 = arith.constant 0 : index
    %9 = vector.load %arg4[%c0_6, %c0_7] : memref<640x384xbf16, #tpu.memory_space<vmem>>, vector<640x384xbf16>
    %cst_8 = arith.constant dense<0.000000e+00> : vector<8x384xf32>
    %10 = tpu.matmul %8, %9, %cst_8 {dimension_numbers = #tpu.dot_dimension_numbers<[1], [0], [0], [1], [0, 0, 1, 1], [], []>} : vector<8x640xbf16>, vector<640x384xbf16>, vector<8x384xf32> -> vector<8x384xf32>
    %c0_9 = arith.constant 0 : index
    %c0_10 = arith.constant 0 : index
    %11 = vector.load %arg5[%c0_9, %c0_10] : memref<1x384xf32, #tpu.memory_space<vmem>>, vector<1x384xf32>
    %12 = vector.broadcast %11 : vector<1x384xf32> to vector<8x384xf32>
    %13 = arith.addf %10, %12 : vector<8x384xf32>
    %cst_11 = arith.constant 0.000000e+00 : f32
    %14 = vector.broadcast %cst_11 : f32 to vector<8x384xf32>
    %15 = arith.maximumf %13, %14 : vector<8x384xf32>
    %16 = arith.truncf %15 : vector<8x384xf32> to vector<8x384xbf16>
    %c0_12 = arith.constant 0 : index
    %c0_13 = arith.constant 0 : index
    %17 = vector.load %arg6[%c0_12, %c0_13] : memref<384x256xbf16, #tpu.memory_space<vmem>>, vector<384x256xbf16>
    %cst_14 = arith.constant dense<0.000000e+00> : vector<8x256xf32>
    %18 = tpu.matmul %16, %17, %cst_14 {dimension_numbers = #tpu.dot_dimension_numbers<[1], [0], [0], [1], [0, 0, 1, 1], [], []>} : vector<8x384xbf16>, vector<384x256xbf16>, vector<8x256xf32> -> vector<8x256xf32>
    %c0_15 = arith.constant 0 : index
    %c0_16 = arith.constant 0 : index
    %19 = vector.load %arg7[%c0_15, %c0_16] : memref<1x256xf32, #tpu.memory_space<vmem>>, vector<1x256xf32>
    %20 = vector.broadcast %19 : vector<1x256xf32> to vector<8x256xf32>
    %21 = arith.addf %18, %20 : vector<8x256xf32>
    %cst_17 = arith.constant dense<0xFF800000> : vector<8xf32>
    %22 = vector.multi_reduction <maximumf>, %21, %cst_17 [1] : vector<8x256xf32> to vector<8xf32>
    %23 = vector.shape_cast %22 : vector<8xf32> to vector<8x1xf32>
    %24 = vector.broadcast %23 : vector<8x1xf32> to vector<8x256xf32>
    %25 = arith.subf %21, %24 : vector<8x256xf32>
    %26 = math.exp %25 : vector<8x256xf32>
    %cst_18 = arith.constant dense<0.000000e+00> : vector<8xf32>
    %27 = vector.multi_reduction <add>, %26, %cst_18 [1] : vector<8x256xf32> to vector<8xf32>
    %28 = vector.shape_cast %27 : vector<8xf32> to vector<8x1xf32>
    %29 = tpu.reciprocal %28 {approx = true} : vector<8x1xf32> -> vector<8x1xf32>
    %30 = vector.broadcast %29 : vector<8x1xf32> to vector<8x256xf32>
    %31 = arith.mulf %26, %30 : vector<8x256xf32>
    %c0_19 = arith.constant 0 : index
    %c0_20 = arith.constant 0 : index
    %32 = vector.load %arg8[%c0_19, %c0_20] : memref<8x256xf32, #tpu.memory_space<vmem>>, vector<8x256xf32>
    tpu.vector_store %arg8[%c0_19, %c0_20], %31 {strides = array<i32>} : memref<8x256xf32, #tpu.memory_space<vmem>>, vector<8x256xf32>,
    return
  }
  func.func @transform_0(%arg0: i32) -> (i32, i32) {
    %c0_i32 = arith.constant 0 : i32
    %c0_i32_0 = arith.constant 0 : i32
    return %arg0, %c0_i32 : i32, i32
  }
  func.func @transform_1(%arg0: i32) -> (i32, i32) {
    %c0_i32 = arith.constant 0 : i32
    %c0_i32_0 = arith.constant 0 : i32
    %c0_i32_1 = arith.constant 0 : i32
    return %c0_i32, %c0_i32_0 : i32, i32
  }
  func.func @transform_2(%arg0: i32) -> (i32, i32) {
    %c0_i32 = arith.constant 0 : i32
    %c0_i32_0 = arith.constant 0 : i32
    %c0_i32_1 = arith.constant 0 : i32
    return %c0_i32, %c0_i32_0 : i32, i32
  }
  func.func @transform_3(%arg0: i32) -> (i32, i32) {
    %c0_i32 = arith.constant 0 : i32
    %c0_i32_0 = arith.constant 0 : i32
    %c0_i32_1 = arith.constant 0 : i32
    return %c0_i32, %c0_i32_0 : i32, i32
  }
  func.func @transform_4(%arg0: i32) -> (i32, i32) {
    %c0_i32 = arith.constant 0 : i32
    %c0_i32_0 = arith.constant 0 : i32
    %c0_i32_1 = arith.constant 0 : i32
    return %c0_i32, %c0_i32_0 : i32, i32
  }
  func.func @transform_5(%arg0: i32) -> (i32, i32) {
    %c0_i32 = arith.constant 0 : i32
    %c0_i32_0 = arith.constant 0 : i32
    %c0_i32_1 = arith.constant 0 : i32
    return %c0_i32, %c0_i32_0 : i32, i32
  }
  func.func @transform_6(%arg0: i32) -> (i32, i32) {
    %c0_i32 = arith.constant 0 : i32
    %c0_i32_0 = arith.constant 0 : i32
    %c0_i32_1 = arith.constant 0 : i32
    return %c0_i32, %c0_i32_0 : i32, i32
  }
  func.func @transform_7(%arg0: i32) -> (i32, i32) {
    %c0_i32 = arith.constant 0 : i32
    %c0_i32_0 = arith.constant 0 : i32
    return %arg0, %c0_i32 : i32, i32
  }
}

</mosaic_0001>

<llo_original>
// kernel: mlp_forward.1
$region0: #{mlp_forward.1}
  #allocation0 [shape = 'u32[]', space=smem, size = 0x4, offset = 0x4, fixed_abs, tag = 'smem constant byte address 0x4 - core index']
  #allocation1 [shape = 'u32[144,128]{1,0:T(1,128)}', space=vmem, size = 0x12000, scoped, tag = 'internal scratch']
  %s0 = inlined_call_operand.vmem [shape: bf16[8,872], index: 0, kind: input, shape index: {}]
  %s1 = inlined_call_operand.hbm [shape: bf16[872,640], index: 1, kind: input, shape index: {}]
  %s2 = inlined_call_operand.hbm [shape: f32[1,640], index: 2, kind: input, shape index: {}]
  %s3 = inlined_call_operand.hbm [shape: bf16[640,384], index: 3, kind: input, shape index: {}]
  %s4 = inlined_call_operand.hbm [shape: f32[1,384], index: 4, kind: input, shape index: {}]
  %s5 = inlined_call_operand.hbm [shape: bf16[384,256], index: 5, kind: input, shape index: {}]
  %s6 = inlined_call_operand.hbm [shape: f32[1,256], index: 6, kind: input, shape index: {}]
  %s7 = inlined_call_operand.hbm [shape: f32[8,256], index: 7, kind: output, shape index: {}]
  %s8 = sld [smem:[#allocation0]]
  $region62: #{mlp_forward.1} parent=0
    _
  %s10 = ssub.s32 1, %s8
  %s11 = scalar_select 0, %s10, %s8
  $region1: #{mlp_forward.1} parent=0
    #allocation2 [shape = 'u8[1116160]{0}', space=vmem, size = 0x110800, scoped, tag = 'input window, operand 1, single buffered']
    #allocation3 [shape = 's32[1]{0}', space=sflag, size = 0x4, scoped, tag = 'scoped memory for mlp_forward.1']
    #allocation4 [shape = 's32[1]{0}', space=sflag, size = 0x4, scoped, tag = 'scoped memory for mlp_forward.1']
    #allocation5 [shape = 'u8[2560]{0}', space=vmem, size = 0xc00, scoped, tag = 'input window, operand 2, single buffered']
    #allocation6 [shape = 's32[1]{0}', space=sflag, size = 0x4, scoped, tag = 'scoped memory for mlp_forward.1']
    #allocation7 [shape = 'u8[491520]{0}', space=vmem, size = 0x78000, scoped, tag = 'input window, operand 3, single buffered']
    #allocation8 [shape = 'u8[1536]{0}', space=vmem, size = 0x800, scoped, tag = 'input window, operand 4, single buffered']
    #allocation9 [shape = 's32[1]{0}', space=sflag, size = 0x4, scoped, tag = 'scoped memory for mlp_forward.1']
    #allocation10 [shape = 'u8[196608]{0}', space=vmem, size = 0x30000, scoped, tag = 'input window, operand 5, single buffered']
    #allocation11 [shape = 'u8[1024]{0}', space=vmem, size = 0x400, scoped, tag = 'input window, operand 6, single buffered']
    #allocation12 [shape = 's32[1]{0}', space=sflag, size = 0x4, scoped, tag = 'scoped memory for mlp_forward.1']
    #allocation13 [shape = 'u8[8192]{0}', space=vmem, size = 0x2000, scoped, tag = 'output window, operand 0, single buffered']
    %12 = vsyncpa [#allocation3], 0
    %13 = vsyncpa [#allocation6], 0
    %14 = vsyncpa [#allocation9], 0
    %15 = vsyncpa [#allocation12], 0
    %16 = vsyncpa [#allocation4], 0
    // Predicated region
    $region2: #{mlp_forward.1} parent=1 // pred_check
      _
    $region3: #{mlp_forward.1} parent=1 // pred_check_branch
      %18 = sbr.rel (0) target = $region5
    $region4: #{mlp_forward.1} parent=1 // pred_region
      _
    $region5: #{mlp_forward.1} parent=1 // pred_fallthru
      _
    // Predicated region
    $region6: #{mlp_forward.1} parent=1 // pred_check
      _
    $region7: #{mlp_forward.1} parent=1 // pred_check_branch
      %20 = sbr.rel (0) target = $region9
    $region8: #{mlp_forward.1} parent=1 // pred_region
      %s22 = ssub.s32 34880, 34880
      %23 = vsyncadd [#allocation3], %s22
      %s24 = sshll.u32 [#allocation2], 4
      %s25 = int_to_ptr.vmem [resolvable:$true] %s24
      %30 = dma.hbm_to_vmem [thread:$0]  %s1, 34880, %s25, [#allocation3], 320, 320, 20
    $region9: #{mlp_forward.1} parent=1 // pred_fallthru
      _
    // Predicated region
    $region10: #{mlp_forward.1} parent=1 // pred_check
      _
    $region11: #{mlp_forward.1} parent=1 // pred_check_branch
      %32 = sbr.rel (0) target = $region13
    $region12: #{mlp_forward.1} parent=1 // pred_region
      %s34 = ssub.s32 80, 80
      %35 = vsyncadd [#allocation6], %s34
      %s37 = sshll.u32 [#allocation5], 4
      %s38 = int_to_ptr.vmem [resolvable:$true] %s37
      %40 = dma.hbm_to_vmem [thread:$0]  %s2, 80, %s38, [#allocation6]
    $region13: #{mlp_forward.1} parent=1 // pred_fallthru
      _
    // Predicated region
    $region14: #{mlp_forward.1} parent=1 // pred_check
      _
    $region15: #{mlp_forward.1} parent=1 // pred_check_branch
      %42 = sbr.rel (0) target = $region17
    $region16: #{mlp_forward.1} parent=1 // pred_region
      %s44 = ssub.s32 15360, 15360
      %45 = vsyncadd [#allocation6], %s44
      %s46 = sshll.u32 [#allocation7], 4
      %s47 = int_to_ptr.vmem [resolvable:$true] %s46
      %52 = dma.hbm_to_vmem [thread:$0]  %s3, 15360, %s47, [#allocation6], 192, 192, 12
    $region17: #{mlp_forward.1} parent=1 // pred_fallthru
      _
    // Predicated region
    $region18: #{mlp_forward.1} parent=1 // pred_check
      _
    $region19: #{mlp_forward.1} parent=1 // pred_check_branch
      %54 = sbr.rel (0) target = $region21
    $region20: #{mlp_forward.1} parent=1 // pred_region
      %s56 = ssub.s32 48, 48
      %57 = vsyncadd [#allocation9], %s56
      %s59 = sshll.u32 [#allocation8], 4
      %s60 = int_to_ptr.vmem [resolvable:$true] %s59
      %62 = dma.hbm_to_vmem [thread:$0]  %s4, 48, %s60, [#allocation9]
    $region21: #{mlp_forward.1} parent=1 // pred_fallthru
      _
    // Predicated region
    $region22: #{mlp_forward.1} parent=1 // pred_check
      _
    $region23: #{mlp_forward.1} parent=1 // pred_check_branch
      %64 = sbr.rel (0) target = $region25
    $region24: #{mlp_forward.1} parent=1 // pred_region
      %s66 = ssub.s32 6144, 6144
      %67 = vsyncadd [#allocation9], %s66
      %s68 = sshll.u32 [#allocation10], 4
      %s69 = int_to_ptr.vmem [resolvable:$true] %s68
      %74 = dma.hbm_to_vmem [thread:$0]  %s5, 6144, %s69, [#allocation9], 128, 128, 8
    $region25: #{mlp_forward.1} parent=1 // pred_fallthru
      _
    // Predicated region
    $region26: #{mlp_forward.1} parent=1 // pred_check
      _
    $region27: #{mlp_forward.1} parent=1 // pred_check_branch
      %76 = sbr.rel (0) target = $region29
    $region28: #{mlp_forward.1} parent=1 // pred_region
      %s78 = ssub.s32 32, 32
      %79 = vsyncadd [#allocation12], %s78
      %s81 = sshll.u32 [#allocation11], 4
      %s82 = int_to_ptr.vmem [resolvable:$true] %s81
      %84 = dma.hbm_to_vmem [thread:$0]  %s6, 32, %s82, [#allocation12]
    $region29: #{mlp_forward.1} parent=1 // pred_fallthru
      _
    // Predicated region
    $region30: #{mlp_forward.1} parent=1 // pred_check
      _
    $region31: #{mlp_forward.1} parent=1 // pred_check_branch
      %86 = sbr.rel (0) target = $region33
    $region32: #{mlp_forward.1} parent=1 // pred_region
      %87 = dma.done [#allocation3], 34880
    $region33: #{mlp_forward.1} parent=1 // pred_fallthru
      _
    // Predicated region
    $region34: #{mlp_forward.1} parent=1 // pred_check
      _
    $region35: #{mlp_forward.1} parent=1 // pred_check_branch
      %89 = sbr.rel (0) target = $region37
    $region36: #{mlp_forward.1} parent=1 // pred_region
      %90 = dma.done [#allocation6], 80
    $region37: #{mlp_forward.1} parent=1 // pred_fallthru
      _
    // Predicated region
    $region38: #{mlp_forward.1} parent=1 // pred_check
      _
    $region39: #{mlp_forward.1} parent=1 // pred_check_branch
      %92 = sbr.rel (0) target = $region41
    $region40: #{mlp_forward.1} parent=1 // pred_region
      %93 = dma.done [#allocation6], 15360
    $region41: #{mlp_forward.1} parent=1 // pred_fallthru
      _
    // Predicated region
    $region42: #{mlp_forward.1} parent=1 // pred_check
      _
    $region43: #{mlp_forward.1} parent=1 // pred_check_branch
      %95 = sbr.rel (0) target = $region45
    $region44: #{mlp_forward.1} parent=1 // pred_region
      %96 = dma.done [#allocation9], 48
    $region45: #{mlp_forward.1} parent=1 // pred_fallthru
      _
    // Predicated region
    $region46: #{mlp_forward.1} parent=1 // pred_check
      _
    $region47: #{mlp_forward.1} parent=1 // pred_check_branch
      %98 = sbr.rel (0) target = $region49
    $region48: #{mlp_forward.1} parent=1 // pred_region
      %99 = dma.done [#allocation9], 6144
    $region49: #{mlp_forward.1} parent=1 // pred_fallthru
      _
    // Predicated region
    $region50: #{mlp_forward.1} parent=1 // pred_check
      _
    $region51: #{mlp_forward.1} parent=1 // pred_check_branch
      %101 = sbr.rel (0) target = $region53
    $region52: #{mlp_forward.1} parent=1 // pred_region
      %102 = dma.done [#allocation12], 32
    $region53: #{mlp_forward.1} parent=1 // pred_fallthru
      _
    %v104 = vld [vmem:[%s0] sm:$0xff]
    %v105 = vld [vmem:[%s0 + $0x8] sm:$0xff]
    %v106 = vld [vmem:[%s0 + $0x10] sm:$0xff]
    %v107 = vld [vmem:[%s0 + $0x18] sm:$0xf]
    %v108 = vld [vmem:[#allocation2] sm:$0xff]
    %v109 = vld [vmem:[#allocation2 + $0x8] sm:$0xff]
    %v110 = vld [vmem:[#allocation2 + $0x10] sm:$0xf]
    %v111 = vld [vmem:[#allocation2 + $0x14] sm:$0xff]
    %v112 = vld [vmem:[#allocation2 + $0x1c] sm:$0xff]
    %v113 = vld [vmem:[#allocation2 + $0x24] sm:$0xf]
    %v114 = vld [vmem:[#allocation2 + $0x28] sm:$0xff]
    %v115 = vld [vmem:[#allocation2 + $0x30] sm:$0xff]
    %v116 = vld [vmem:[#allocation2 + $0x38] sm:$0xf]
    %v117 = vld [vmem:[#allocation2 + $0x3c] sm:$0xff]
    %v118 = vld [vmem:[#allocation2 + $0x44] sm:$0xff]
    %v119 = vld [vmem:[#allocation2 + $0x4c] sm:$0xf]
    %v120 = vld [vmem:[#allocation2 + $0x50] sm:$0xff]
    %v121 = vld [vmem:[#allocation2 + $0x58] sm:$0xff]
    %v122 = vld [vmem:[#allocation2 + $0x60] sm:$0xf]
    %v123 = vld [vmem:[#allocation2 + $0x64] sm:$0xff]
    %v124 = vld [vmem:[#allocation2 + $0x6c] sm:$0xff]
    %v125 = vld [vmem:[#allocation2 + $0x74] sm:$0xf]
    %v126 = vld [vmem:[#allocation2 + $0x78] sm:$0xff]
    %v127 = vld [vmem:[#allocation2 + $0x80] sm:$0xff]
    %v128 = vld [vmem:[#allocation2 + $0x88] sm:$0xf]
    %v129 = vld [vmem:[#allocation2 + $0x8c] sm:$0xff]
    %v130 = vld [vmem:[#allocation2 + $0x94] sm:$0xff]
    %v131 = vld [vmem:[#allocation2 + $0x9c] sm:$0xf]
    %v132 = vld [vmem:[#allocation2 + $0xa0] sm:$0xff]
    %v133 = vld [vmem:[#allocation2 + $0xa8] sm:$0xff]
    %v134 = vld [vmem:[#allocation2 + $0xb0] sm:$0xf]
    %v135 = vld [vmem:[#allocation2 + $0xb4] sm:$0xff]
    %v136 = vld [vmem:[#allocation2 + $0xbc] sm:$0xff]
    %v137 = vld [vmem:[#allocation2 + $0xc4] sm:$0xf]
    %v138 = vld [vmem:[#allocation2 + $0xc8] sm:$0xff]
    %v139 = vld [vmem:[#allocation2 + $0xd0] sm:$0xff]
    %v140 = vld [vmem:[#allocation2 + $0xd8] sm:$0xf]
    %v141 = vld [vmem:[#allocation2 + $0xdc] sm:$0xff]
    %v142 = vld [vmem:[#allocation2 + $0xe4] sm:$0xff]
    %v143 = vld [vmem:[#allocation2 + $0xec] sm:$0xf]
    %v144 = vld [vmem:[#allocation2 + $0xf0] sm:$0xff]
    %v145 = vld [vmem:[#allocation2 + $0xf8] sm:$0xff]
    %v146 = vld [vmem:[#allocation2 + $0x100] sm:$0xf]
    %v147 = vld [vmem:[#allocation2 + $0x104] sm:$0xff]
    %v148 = vld [vmem:[#allocation2 + $0x10c] sm:$0xff]
    %v149 = vld [vmem:[#allocation2 + $0x114] sm:$0xf]
    %v150 = vld [vmem:[#allocation2 + $0x118] sm:$0xff]
    %v151 = vld [vmem:[#allocation2 + $0x120] sm:$0xff]
    %v152 = vld [vmem:[#allocation2 + $0x128] sm:$0xf]
    %v153 = vld [vmem:[#allocation2 + $0x12c] sm:$0xff]
    %v154 = vld [vmem:[#allocation2 + $0x134] sm:$0xff]
    %v155 = vld [vmem:[#allocation2 + $0x13c] sm:$0xf]
    %v156 = vld [vmem:[#allocation2 + $0x140] sm:$0xff]
    %v157 = vld [vmem:[#allocation2 + $0x148] sm:$0xff]
    %v158 = vld [vmem:[#allocation2 + $0x150] sm:$0xf]
    %v159 = vld [vmem:[#allocation2 + $0x154] sm:$0xff]
    %v160 = vld [vmem:[#allocation2 + $0x15c] sm:$0xff]
    %v161 = vld [vmem:[#allocation2 + $0x164] sm:$0xf]
    %v162 = vld [vmem:[#allocation2 + $0x168] sm:$0xff]
    %v163 = vld [vmem:[#allocation2 + $0x170] sm:$0xff]
    %v164 = vld [vmem:[#allocation2 + $0x178] sm:$0xf]
    %v165 = vld [vmem:[#allocation2 + $0x17c] sm:$0xff]
    %v166 = vld [vmem:[#allocation2 + $0x184] sm:$0xff]
    %v167 = vld [vmem:[#allocation2 + $0x18c] sm:$0xf]
    %v168 = vld [vmem:[#allocation2 + $0x190] sm:$0xff]
    %v169 = vld [vmem:[#allocation2 + $0x198] sm:$0xff]
    %v170 = vld [vmem:[#allocation2 + $0x1a0] sm:$0xf]
    %v171 = vld [vmem:[#allocation2 + $0x1a4] sm:$0xff]
    %v172 = vld [vmem:[#allocation2 + $0x1ac] sm:$0xff]
    %v173 = vld [vmem:[#allocation2 + $0x1b4] sm:$0xf]
    %v174 = vld [vmem:[#allocation2 + $0x1b8] sm:$0xff]
    %v175 = vld [vmem:[#allocation2 + $0x1c0] sm:$0xff]
    %v176 = vld [vmem:[#allocation2 + $0x1c8] sm:$0xf]
    %v177 = vld [vmem:[#allocation2 + $0x1cc] sm:$0xff]
    %v178 = vld [vmem:[#allocation2 + $0x1d4] sm:$0xff]
    %v179 = vld [vmem:[#allocation2 + $0x1dc] sm:$0xf]
    %v180 = vld [vmem:[#allocation2 + $0x1e0] sm:$0xff]
    %v181 = vld [vmem:[#allocation2 + $0x1e8] sm:$0xff]
    %v182 = vld [vmem:[#allocation2 + $0x1f0] sm:$0xf]
    %v183 = vld [vmem:[#allocation2 + $0x1f4] sm:$0xff]
    %v184 = vld [vmem:[#allocation2 + $0x1fc] sm:$0xff]
    %v185 = vld [vmem:[#allocation2 + $0x204] sm:$0xf]
    %v186 = vld [vmem:[#allocation2 + $0x208] sm:$0xff]
    %v187 = vld [vmem:[#allocation2 + $0x210] sm:$0xff]
    %v188 = vld [vmem:[#allocation2 + $0x218] sm:$0xf]
    %v189 = vld [vmem:[#allocation2 + $0x21c] sm:$0xff]
    %v190 = vld [vmem:[#allocation2 + $0x224] sm:$0xff]
    %v191 = vld [vmem:[#allocation2 + $0x22c] sm:$0xf]
    %v192 = vld [vmem:[#allocation2 + $0x230] sm:$0xff]
    %v193 = vld [vmem:[#allocation2 + $0x238] sm:$0xff]
    %v194 = vld [vmem:[#allocation2 + $0x240] sm:$0xf]
    %v195 = vld [vmem:[#allocation2 + $0x244] sm:$0xff]
    %v196 = vld [vmem:[#allocation2 + $0x24c] sm:$0xff]
    %v197 = vld [vmem:[#allocation2 + $0x254] sm:$0xf]
    %v198 = vld [vmem:[#allocation2 + $0x258] sm:$0xff]
    %v199 = vld [vmem:[#allocation2 + $0x260] sm:$0xff]
    %v200 = vld [vmem:[#allocation2 + $0x268] sm:$0xf]
    %v201 = vld [vmem:[#allocation2 + $0x26c] sm:$0xff]
    %v202 = vld [vmem:[#allocation2 + $0x274] sm:$0xff]
    %v203 = vld [vmem:[#allocation2 + $0x27c] sm:$0xf]
    %v204 = vld [vmem:[#allocation2 + $0x280] sm:$0xff]
    %v205 = vld [vmem:[#allocation2 + $0x288] sm:$0xff]
    %v206 = vld [vmem:[#allocation2 + $0x290] sm:$0xf]
    %v207 = vld [vmem:[#allocation2 + $0x294] sm:$0xff]
    %v208 = vld [vmem:[#allocation2 + $0x29c] sm:$0xff]
    %v209 = vld [vmem:[#allocation2 + $0x2a4] sm:$0xf]
    %v210 = vld [vmem:[#allocation2 + $0x2a8] sm:$0xff]
    %v211 = vld [vmem:[#allocation2 + $0x2b0] sm:$0xff]
    %v212 = vld [vmem:[#allocation2 + $0x2b8] sm:$0xf]
    %v213 = vld [vmem:[#allocation2 + $0x2bc] sm:$0xff]
    %v214 = vld [vmem:[#allocation2 + $0x2c4] sm:$0xff]
    %v215 = vld [vmem:[#allocation2 + $0x2cc] sm:$0xf]
    %v216 = vld [vmem:[#allocation2 + $0x2d0] sm:$0xff]
    %v217 = vld [vmem:[#allocation2 + $0x2d8] sm:$0xff]
    %v218 = vld [vmem:[#allocation2 + $0x2e0] sm:$0xf]
    %v219 = vld [vmem:[#allocation2 + $0x2e4] sm:$0xff]
    %v220 = vld [vmem:[#allocation2 + $0x2ec] sm:$0xff]
    %v221 = vld [vmem:[#allocation2 + $0x2f4] sm:$0xf]
    %v222 = vld [vmem:[#allocation2 + $0x2f8] sm:$0xff]
    %v223 = vld [vmem:[#allocation2 + $0x300] sm:$0xff]
    %v224 = vld [vmem:[#allocation2 + $0x308] sm:$0xf]
    %v225 = vld [vmem:[#allocation2 + $0x30c] sm:$0xff]
    %v226 = vld [vmem:[#allocation2 + $0x314] sm:$0xff]
    %v227 = vld [vmem:[#allocation2 + $0x31c] sm:$0xf]
    %v228 = vld [vmem:[#allocation2 + $0x320] sm:$0xff]
    %v229 = vld [vmem:[#allocation2 + $0x328] sm:$0xff]
    %v230 = vld [vmem:[#allocation2 + $0x330] sm:$0xf]
    %v231 = vld [vmem:[#allocation2 + $0x334] sm:$0xff]
    %v232 = vld [vmem:[#allocation2 + $0x33c] sm:$0xff]
    %v233 = vld [vmem:[#allocation2 + $0x344] sm:$0xf]
    %v234 = vld [vmem:[#allocation2 + $0x348] sm:$0xff]
    %v235 = vld [vmem:[#allocation2 + $0x350] sm:$0xff]
    %v236 = vld [vmem:[#allocation2 + $0x358] sm:$0xf]
    %v237 = vld [vmem:[#allocation2 + $0x35c] sm:$0xff]
    %v238 = vld [vmem:[#allocation2 + $0x364] sm:$0xff]
    %v239 = vld [vmem:[#allocation2 + $0x36c] sm:$0xf]
    %v240 = vld [vmem:[#allocation2 + $0x370] sm:$0xff]
    %v241 = vld [vmem:[#allocation2 + $0x378] sm:$0xff]
    %v242 = vld [vmem:[#allocation2 + $0x380] sm:$0xf]
    %v243 = vld [vmem:[#allocation2 + $0x384] sm:$0xff]
    %v244 = vld [vmem:[#allocation2 + $0x38c] sm:$0xff]
    %v245 = vld [vmem:[#allocation2 + $0x394] sm:$0xf]
    %v246 = vld [vmem:[#allocation2 + $0x398] sm:$0xff]
    %v247 = vld [vmem:[#allocation2 + $0x3a0] sm:$0xff]
    %v248 = vld [vmem:[#allocation2 + $0x3a8] sm:$0xf]
    %v249 = vld [vmem:[#allocation2 + $0x3ac] sm:$0xff]
    %v250 = vld [vmem:[#allocation2 + $0x3b4] sm:$0xff]
    %v251 = vld [vmem:[#allocation2 + $0x3bc] sm:$0xf]
    %v252 = vld [vmem:[#allocation2 + $0x3c0] sm:$0xff]
    %v253 = vld [vmem:[#allocation2 + $0x3c8] sm:$0xff]
    %v254 = vld [vmem:[#allocation2 + $0x3d0] sm:$0xf]
    %v255 = vld [vmem:[#allocation2 + $0x3d4] sm:$0xff]
    %v256 = vld [vmem:[#allocation2 + $0x3dc] sm:$0xff]
    %v257 = vld [vmem:[#allocation2 + $0x3e4] sm:$0xf]
    %v258 = vld [vmem:[#allocation2 + $0x3e8] sm:$0xff]
    %v259 = vld [vmem:[#allocation2 + $0x3f0] sm:$0xff]
    %v260 = vld [vmem:[#allocation2 + $0x3f8] sm:$0xf]
    %v261 = vld [vmem:[#allocation2 + $0x3fc] sm:$0xff]
    %v262 = vld [vmem:[#allocation2 + $0x404] sm:$0xff]
    %v263 = vld [vmem:[#allocation2 + $0x40c] sm:$0xf]
    %v264 = vld [vmem:[#allocation2 + $0x410] sm:$0xff]
    %v265 = vld [vmem:[#allocation2 + $0x418] sm:$0xff]
    %v266 = vld [vmem:[#allocation2 + $0x420] sm:$0xf]
    %v267 = vld [vmem:[#allocation2 + $0x424] sm:$0xff]
    %v268 = vld [vmem:[#allocation2 + $0x42c] sm:$0xff]
    %v269 = vld [vmem:[#allocation2 + $0x434] sm:$0xf]
    %v270 = vld [vmem:[#allocation2 + $0x438] sm:$0xff]
    %v271 = vld [vmem:[#allocation2 + $0x440] sm:$0xff]
    %v272 = vld [vmem:[#allocation2 + $0x448] sm:$0xf]
    %v273 = vld [vmem:[#allocation2 + $0x44c] sm:$0xff]
    %v274 = vld [vmem:[#allocation2 + $0x454] sm:$0xff]
    %v275 = vld [vmem:[#allocation2 + $0x45c] sm:$0xf]
    %v276 = vld [vmem:[#allocation2 + $0x460] sm:$0xff]
    %v277 = vld [vmem:[#allocation2 + $0x468] sm:$0xff]
    %v278 = vld [vmem:[#allocation2 + $0x470] sm:$0xf]
    %v279 = vld [vmem:[#allocation2 + $0x474] sm:$0xff]
    %v280 = vld [vmem:[#allocation2 + $0x47c] sm:$0xff]
    %v281 = vld [vmem:[#allocation2 + $0x484] sm:$0xf]
    %v282 = vld [vmem:[#allocation2 + $0x488] sm:$0xff]
    %v283 = vld [vmem:[#allocation2 + $0x490] sm:$0xff]
    %v284 = vld [vmem:[#allocation2 + $0x498] sm:$0xf]
    %v285 = vld [vmem:[#allocation2 + $0x49c] sm:$0xff]
    %v286 = vld [vmem:[#allocation2 + $0x4a4] sm:$0xff]
    %v287 = vld [vmem:[#allocation2 + $0x4ac] sm:$0xf]
    %v288 = vld [vmem:[#allocation2 + $0x4b0] sm:$0xff]
    %v289 = vld [vmem:[#allocation2 + $0x4b8] sm:$0xff]
    %v290 = vld [vmem:[#allocation2 + $0x4c0] sm:$0xf]
    %v291 = vld [vmem:[#allocation2 + $0x4c4] sm:$0xff]
    %v292 = vld [vmem:[#allocation2 + $0x4cc] sm:$0xff]
    %v293 = vld [vmem:[#allocation2 + $0x4d4] sm:$0xf]
    %v294 = vld [vmem:[#allocation2 + $0x4d8] sm:$0xff]
    %v295 = vld [vmem:[#allocation2 + $0x4e0] sm:$0xff]
    %v296 = vld [vmem:[#allocation2 + $0x4e8] sm:$0xf]
    %v297 = vld [vmem:[#allocation2 + $0x4ec] sm:$0xff]
    %v298 = vld [vmem:[#allocation2 + $0x4f4] sm:$0xff]
    %v299 = vld [vmem:[#allocation2 + $0x4fc] sm:$0xf]
    %v300 = vld [vmem:[#allocation2 + $0x500] sm:$0xff]
    %v301 = vld [vmem:[#allocation2 + $0x508] sm:$0xff]
    %v302 = vld [vmem:[#allocation2 + $0x510] sm:$0xf]
    %v303 = vld [vmem:[#allocation2 + $0x514] sm:$0xff]
    %v304 = vld [vmem:[#allocation2 + $0x51c] sm:$0xff]
    %v305 = vld [vmem:[#allocation2 + $0x524] sm:$0xf]
    %v306 = vld [vmem:[#allocation2 + $0x528] sm:$0xff]
    %v307 = vld [vmem:[#allocation2 + $0x530] sm:$0xff]
    %v308 = vld [vmem:[#allocation2 + $0x538] sm:$0xf]
    %v309 = vld [vmem:[#allocation2 + $0x53c] sm:$0xff]
    %v310 = vld [vmem:[#allocation2 + $0x544] sm:$0xff]
    %v311 = vld [vmem:[#allocation2 + $0x54c] sm:$0xf]
    %v312 = vld [vmem:[#allocation2 + $0x550] sm:$0xff]
    %v313 = vld [vmem:[#allocation2 + $0x558] sm:$0xff]
    %v314 = vld [vmem:[#allocation2 + $0x560] sm:$0xf]
    %v315 = vld [vmem:[#allocation2 + $0x564] sm:$0xff]
    %v316 = vld [vmem:[#allocation2 + $0x56c] sm:$0xff]
    %v317 = vld [vmem:[#allocation2 + $0x574] sm:$0xf]
    %v318 = vld [vmem:[#allocation2 + $0x578] sm:$0xff]
    %v319 = vld [vmem:[#allocation2 + $0x580] sm:$0xff]
    %v320 = vld [vmem:[#allocation2 + $0x588] sm:$0xf]
    %v321 = vld [vmem:[#allocation2 + $0x58c] sm:$0xff]
    %v322 = vld [vmem:[#allocation2 + $0x594] sm:$0xff]
    %v323 = vld [vmem:[#allocation2 + $0x59c] sm:$0xf]
    %v324 = vld [vmem:[#allocation2 + $0x5a0] sm:$0xff]
    %v325 = vld [vmem:[#allocation2 + $0x5a8] sm:$0xff]
    %v326 = vld [vmem:[#allocation2 + $0x5b0] sm:$0xf]
    %v327 = vld [vmem:[#allocation2 + $0x5b4] sm:$0xff]
    %v328 = vld [vmem:[#allocation2 + $0x5bc] sm:$0xff]
    %v329 = vld [vmem:[#allocation2 + $0x5c4] sm:$0xf]
    %v330 = vld [vmem:[#allocation2 + $0x5c8] sm:$0xff]
    %v331 = vld [vmem:[#allocation2 + $0x5d0] sm:$0xff]
    %v332 = vld [vmem:[#allocation2 + $0x5d8] sm:$0xf]
    %v333 = vld [vmem:[#allocation2 + $0x5dc] sm:$0xff]
    %v334 = vld [vmem:[#allocation2 + $0x5e4] sm:$0xff]
    %v335 = vld [vmem:[#allocation2 + $0x5ec] sm:$0xf]
    %v336 = vld [vmem:[#allocation2 + $0x5f0] sm:$0xff]
    %v337 = vld [vmem:[#allocation2 + $0x5f8] sm:$0xff]
    %v338 = vld [vmem:[#allocation2 + $0x600] sm:$0xf]
    %v339 = vld [vmem:[#allocation2 + $0x604] sm:$0xff]
    %v340 = vld [vmem:[#allocation2 + $0x60c] sm:$0xff]
    %v341 = vld [vmem:[#allocation2 + $0x614] sm:$0xf]
    %v342 = vld [vmem:[#allocation2 + $0x618] sm:$0xff]
    %v343 = vld [vmem:[#allocation2 + $0x620] sm:$0xff]
    %v344 = vld [vmem:[#allocation2 + $0x628] sm:$0xf]
    %v345 = vld [vmem:[#allocation2 + $0x62c] sm:$0xff]
    %v346 = vld [vmem:[#allocation2 + $0x634] sm:$0xff]
    %v347 = vld [vmem:[#allocation2 + $0x63c] sm:$0xf]
    %v348 = vld [vmem:[#allocation2 + $0x640] sm:$0xff]
    %v349 = vld [vmem:[#allocation2 + $0x648] sm:$0xff]
    %v350 = vld [vmem:[#allocation2 + $0x650] sm:$0xf]
    %v351 = vld [vmem:[#allocation2 + $0x654] sm:$0xff]
    %v352 = vld [vmem:[#allocation2 + $0x65c] sm:$0xff]
    %v353 = vld [vmem:[#allocation2 + $0x664] sm:$0xf]
    %v354 = vld [vmem:[#allocation2 + $0x668] sm:$0xff]
    %v355 = vld [vmem:[#allocation2 + $0x670] sm:$0xff]
    %v356 = vld [vmem:[#allocation2 + $0x678] sm:$0xf]
    %v357 = vld [vmem:[#allocation2 + $0x67c] sm:$0xff]
    %v358 = vld [vmem:[#allocation2 + $0x684] sm:$0xff]
    %v359 = vld [vmem:[#allocation2 + $0x68c] sm:$0xf]
    %v360 = vld [vmem:[#allocation2 + $0x690] sm:$0xff]
    %v361 = vld [vmem:[#allocation2 + $0x698] sm:$0xff]
    %v362 = vld [vmem:[#allocation2 + $0x6a0] sm:$0xf]
    %v363 = vld [vmem:[#allocation2 + $0x6a4] sm:$0xff]
    %v364 = vld [vmem:[#allocation2 + $0x6ac] sm:$0xff]
    %v365 = vld [vmem:[#allocation2 + $0x6b4] sm:$0xf]
    %v366 = vld [vmem:[#allocation2 + $0x6b8] sm:$0xff]
    %v367 = vld [vmem:[#allocation2 + $0x6c0] sm:$0xff]
    %v368 = vld [vmem:[#allocation2 + $0x6c8] sm:$0xf]
    %v369 = vld [vmem:[#allocation2 + $0x6cc] sm:$0xff]
    %v370 = vld [vmem:[#allocation2 + $0x6d4] sm:$0xff]
    %v371 = vld [vmem:[#allocation2 + $0x6dc] sm:$0xf]
    %v372 = vld [vmem:[#allocation2 + $0x6e0] sm:$0xff]
    %v373 = vld [vmem:[#allocation2 + $0x6e8] sm:$0xff]
    %v374 = vld [vmem:[#allocation2 + $0x6f0] sm:$0xf]
    %v375 = vld [vmem:[#allocation2 + $0x6f4] sm:$0xff]
    %v376 = vld [vmem:[#allocation2 + $0x6fc] sm:$0xff]
    %v377 = vld [vmem:[#allocation2 + $0x704] sm:$0xf]
    %v378 = vld [vmem:[#allocation2 + $0x708] sm:$0xff]
    %v379 = vld [vmem:[#allocation2 + $0x710] sm:$0xff]
    %v380 = vld [vmem:[#allocation2 + $0x718] sm:$0xf]
    %v381 = vld [vmem:[#allocation2 + $0x71c] sm:$0xff]
    %v382 = vld [vmem:[#allocation2 + $0x724] sm:$0xff]
    %v383 = vld [vmem:[#allocation2 + $0x72c] sm:$0xf]
    %v384 = vld [vmem:[#allocation2 + $0x730] sm:$0xff]
    %v385 = vld [vmem:[#allocation2 + $0x738] sm:$0xff]
    %v386 = vld [vmem:[#allocation2 + $0x740] sm:$0xf]
    %v387 = vld [vmem:[#allocation2 + $0x744] sm:$0xff]
    %v388 = vld [vmem:[#allocation2 + $0x74c] sm:$0xff]
    %v389 = vld [vmem:[#allocation2 + $0x754] sm:$0xf]
    %v390 = vld [vmem:[#allocation2 + $0x758] sm:$0xff]
    %v391 = vld [vmem:[#allocation2 + $0x760] sm:$0xff]
    %v392 = vld [vmem:[#allocation2 + $0x768] sm:$0xf]
    %v393 = vld [vmem:[#allocation2 + $0x76c] sm:$0xff]
    %v394 = vld [vmem:[#allocation2 + $0x774] sm:$0xff]
    %v395 = vld [vmem:[#allocation2 + $0x77c] sm:$0xf]
    %v396 = vld [vmem:[#allocation2 + $0x780] sm:$0xff]
    %v397 = vld [vmem:[#allocation2 + $0x788] sm:$0xff]
    %v398 = vld [vmem:[#allocation2 + $0x790] sm:$0xf]
    %v399 = vld [vmem:[#allocation2 + $0x794] sm:$0xff]
    %v400 = vld [vmem:[#allocation2 + $0x79c] sm:$0xff]
    %v401 = vld [vmem:[#allocation2 + $0x7a4] sm:$0xf]
    %v402 = vld [vmem:[#allocation2 + $0x7a8] sm:$0xff]
    %v403 = vld [vmem:[#allocation2 + $0x7b0] sm:$0xff]
    %v404 = vld [vmem:[#allocation2 + $0x7b8] sm:$0xf]
    %v405 = vld [vmem:[#allocation2 + $0x7bc] sm:$0xff]
    %v406 = vld [vmem:[#allocation2 + $0x7c4] sm:$0xff]
    %v407 = vld [vmem:[#allocation2 + $0x7cc] sm:$0xf]
    %v408 = vld [vmem:[#allocation2 + $0x7d0] sm:$0xff]
    %v409 = vld [vmem:[#allocation2 + $0x7d8] sm:$0xff]
    %v410 = vld [vmem:[#allocation2 + $0x7e0] sm:$0xf]
    %v411 = vld [vmem:[#allocation2 + $0x7e4] sm:$0xff]
    %v412 = vld [vmem:[#allocation2 + $0x7ec] sm:$0xff]
    %v413 = vld [vmem:[#allocation2 + $0x7f4] sm:$0xf]
    %v414 = vld [vmem:[#allocation2 + $0x7f8] sm:$0xff]
    %v415 = vld [vmem:[#allocation2 + $0x800] sm:$0xff]
    %v416 = vld [vmem:[#allocation2 + $0x808] sm:$0xf]
    %v417 = vld [vmem:[#allocation2 + $0x80c] sm:$0xff]
    %v418 = vld [vmem:[#allocation2 + $0x814] sm:$0xff]
    %v419 = vld [vmem:[#allocation2 + $0x81c] sm:$0xf]
    %v420 = vld [vmem:[#allocation2 + $0x820] sm:$0xff]
    %v421 = vld [vmem:[#allocation2 + $0x828] sm:$0xff]
    %v422 = vld [vmem:[#allocation2 + $0x830] sm:$0xf]
    %v423 = vld [vmem:[#allocation2 + $0x834] sm:$0xff]
    %v424 = vld [vmem:[#allocation2 + $0x83c] sm:$0xff]
    %v425 = vld [vmem:[#allocation2 + $0x844] sm:$0xf]
    %v426 = vld [vmem:[#allocation2 + $0x848] sm:$0xff]
    %v427 = vld [vmem:[#allocation2 + $0x850] sm:$0xff]
    %v428 = vld [vmem:[#allocation2 + $0x858] sm:$0xf]
    %v429 = vld [vmem:[#allocation2 + $0x85c] sm:$0xff]
    %v430 = vld [vmem:[#allocation2 + $0x864] sm:$0xff]
    %v431 = vld [vmem:[#allocation2 + $0x86c] sm:$0xf]
    %v432 = vld [vmem:[#allocation2 + $0x870] sm:$0xff]
    %v433 = vld [vmem:[#allocation2 + $0x878] sm:$0xff]
    %v434 = vld [vmem:[#allocation2 + $0x880] sm:$0xf]
    %v435 = vld [vmem:[#allocation5] sm:$0x1f]
    %v437 = vlaneseq
    %v438 = vshrl.u32 %v437, 7
    %v439 = vsub.s32 0, %v438
    %v440 = vrot.slane %v435, %v439
    %v441 = vlaneseq
    %v442 = vshrl.u32 %v441, 7
    %v443 = vsub.s32 1, %v442
    %v444 = vrot.slane %v435, %v443
    %v445 = vlaneseq
    %v446 = vshrl.u32 %v445, 7
    %v447 = vsub.s32 2, %v446
    %v448 = vrot.slane %v435, %v447
    %v449 = vlaneseq
    %v450 = vshrl.u32 %v449, 7
    %v451 = vsub.s32 3, %v450
    %v452 = vrot.slane %v435, %v451
    %v453 = vlaneseq
    %v454 = vshrl.u32 %v453, 7
    %v455 = vsub.s32 4, %v454
    %v456 = vrot.slane %v435, %v455
    %v466 = vunpack.c.l.b16 %v104
    %v467 = vunpack.c.h.b16 %v104
    %v468 = vunpack.c.l.b16 %v105
    %v469 = vunpack.c.h.b16 %v105
    %v470 = vunpack.c.l.b16 %v106
    %v471 = vunpack.c.h.b16 %v106
    %v472 = vunpack.c.l.b16 %v107
    %v473 = vpack.c.b16 %v466, %v466
    %v474 = vpack.c.b16 %v467, %v467
    %v475 = vpack.c.b16 %v468, %v468
    %v476 = vpack.c.b16 %v469, %v469
    %v477 = vpack.c.b16 %v470, %v470
    %v478 = vpack.c.b16 %v471, %v471
    %v479 = vpack.c.b16 %v472, %v472
    %v813 = vunpack.c.l.b16 %v108
    %v814 = vunpack.c.h.b16 %v108
    %v815 = vunpack.c.l.b16 %v109
    %v816 = vunpack.c.h.b16 %v109
    %v817 = vunpack.c.l.b16 %v110
    %v818 = vunpack.c.l.b16 %v111
    %v819 = vunpack.c.h.b16 %v111
    %v820 = vunpack.c.l.b16 %v112
    %v821 = vunpack.c.h.b16 %v112
    %v822 = vunpack.c.l.b16 %v113
    %v823 = vunpack.c.l.b16 %v114
    %v824 = vunpack.c.h.b16 %v114
    %v825 = vunpack.c.l.b16 %v115
    %v826 = vunpack.c.h.b16 %v115
    %v827 = vunpack.c.l.b16 %v116
    %v828 = vunpack.c.l.b16 %v117
    %v829 = vunpack.c.h.b16 %v117
    %v830 = vunpack.c.l.b16 %v118
    %v831 = vunpack.c.h.b16 %v118
    %v832 = vunpack.c.l.b16 %v119
    %v833 = vunpack.c.l.b16 %v120
    %v834 = vunpack.c.h.b16 %v120
    %v835 = vunpack.c.l.b16 %v121
    %v836 = vunpack.c.h.b16 %v121
    %v837 = vunpack.c.l.b16 %v122
    %v838 = vunpack.c.l.b16 %v123
    %v839 = vunpack.c.h.b16 %v123
    %v840 = vunpack.c.l.b16 %v124
    %v841 = vunpack.c.h.b16 %v124
    %v842 = vunpack.c.l.b16 %v125
    %v843 = vunpack.c.l.b16 %v126
    %v844 = vunpack.c.h.b16 %v126
    %v845 = vunpack.c.l.b16 %v127
    %v846 = vunpack.c.h.b16 %v127
    %v847 = vunpack.c.l.b16 %v128
    %v848 = vunpack.c.l.b16 %v129
    %v849 = vunpack.c.h.b16 %v129
    %v850 = vunpack.c.l.b16 %v130
    %v851 = vunpack.c.h.b16 %v130
    %v852 = vunpack.c.l.b16 %v131
    %v853 = vunpack.c.l.b16 %v132
    %v854 = vunpack.c.h.b16 %v132
    %v855 = vunpack.c.l.b16 %v133
    %v856 = vunpack.c.h.b16 %v133
    %v857 = vunpack.c.l.b16 %v134
    %v858 = vunpack.c.l.b16 %v135
    %v859 = vunpack.c.h.b16 %v135
    %v860 = vunpack.c.l.b16 %v136
    %v861 = vunpack.c.h.b16 %v136
    %v862 = vunpack.c.l.b16 %v137
    %v863 = vunpack.c.l.b16 %v138
    %v864 = vunpack.c.h.b16 %v138
    %v865 = vunpack.c.l.b16 %v139
    %v866 = vunpack.c.h.b16 %v139
    %v867 = vunpack.c.l.b16 %v140
    %v868 = vunpack.c.l.b16 %v141
    %v869 = vunpack.c.h.b16 %v141
    %v870 = vunpack.c.l.b16 %v142
    %v871 = vunpack.c.h.b16 %v142
    %v872 = vunpack.c.l.b16 %v143
    %v873 = vunpack.c.l.b16 %v144
    %v874 = vunpack.c.h.b16 %v144
    %v875 = vunpack.c.l.b16 %v145
    %v876 = vunpack.c.h.b16 %v145
    %v877 = vunpack.c.l.b16 %v146
    %v878 = vunpack.c.l.b16 %v147
    %v879 = vunpack.c.h.b16 %v147
    %v880 = vunpack.c.l.b16 %v148
    %v881 = vunpack.c.h.b16 %v148
    %v882 = vunpack.c.l.b16 %v149
    %v883 = vunpack.c.l.b16 %v150
    %v884 = vunpack.c.h.b16 %v150
    %v885 = vunpack.c.l.b16 %v151
    %v886 = vunpack.c.h.b16 %v151
    %v887 = vunpack.c.l.b16 %v152
    %v888 = vunpack.c.l.b16 %v153
    %v889 = vunpack.c.h.b16 %v153
    %v890 = vunpack.c.l.b16 %v154
    %v891 = vunpack.c.h.b16 %v154
    %v892 = vunpack.c.l.b16 %v155
    %v893 = vunpack.c.l.b16 %v156
    %v894 = vunpack.c.h.b16 %v156
    %v895 = vunpack.c.l.b16 %v157
    %v896 = vunpack.c.h.b16 %v157
    %v897 = vunpack.c.l.b16 %v158
    %v898 = vunpack.c.l.b16 %v159
    %v899 = vunpack.c.h.b16 %v159
    %v900 = vunpack.c.l.b16 %v160
    %v901 = vunpack.c.h.b16 %v160
    %v902 = vunpack.c.l.b16 %v161
    %v903 = vunpack.c.l.b16 %v162
    %v904 = vunpack.c.h.b16 %v162
    %v905 = vunpack.c.l.b16 %v163
    %v906 = vunpack.c.h.b16 %v163
    %v907 = vunpack.c.l.b16 %v164
    %v908 = vunpack.c.l.b16 %v165
    %v909 = vunpack.c.h.b16 %v165
    %v910 = vunpack.c.l.b16 %v166
    %v911 = vunpack.c.h.b16 %v166
    %v912 = vunpack.c.l.b16 %v167
    %v913 = vunpack.c.l.b16 %v168
    %v914 = vunpack.c.h.b16 %v168
    %v915 = vunpack.c.l.b16 %v169
    %v916 = vunpack.c.h.b16 %v169
    %v917 = vunpack.c.l.b16 %v170
    %v918 = vunpack.c.l.b16 %v171
    %v919 = vunpack.c.h.b16 %v171
    %v920 = vunpack.c.l.b16 %v172
    %v921 = vunpack.c.h.b16 %v172
    %v922 = vunpack.c.l.b16 %v173
    %v923 = vunpack.c.l.b16 %v174
    %v924 = vunpack.c.h.b16 %v174
    %v925 = vunpack.c.l.b16 %v175
    %v926 = vunpack.c.h.b16 %v175
    %v927 = vunpack.c.l.b16 %v176
    %v928 = vunpack.c.l.b16 %v177
    %v929 = vunpack.c.h.b16 %v177
    %v930 = vunpack.c.l.b16 %v178
    %v931 = vunpack.c.h.b16 %v178
    %v932 = vunpack.c.l.b16 %v179
    %v933 = vunpack.c.l.b16 %v180
    %v934 = vunpack.c.h.b16 %v180
    %v935 = vunpack.c.l.b16 %v181
    %v936 = vunpack.c.h.b16 %v181
    %v937 = vunpack.c.l.b16 %v182
    %v938 = vunpack.c.l.b16 %v183
    %v939 = vunpack.c.h.b16 %v183
    %v940 = vunpack.c.l.b16 %v184
    %v941 = vunpack.c.h.b16 %v184
    %v942 = vunpack.c.l.b16 %v185
    %v943 = vunpack.c.l.b16 %v186
    %v944 = vunpack.c.h.b16 %v186
    %v945 = vunpack.c.l.b16 %v187
    %v946 = vunpack.c.h.b16 %v187
    %v947 = vunpack.c.l.b16 %v188
    %v948 = vunpack.c.l.b16 %v189
    %v949 = vunpack.c.h.b16 %v189
    %v950 = vunpack.c.l.b16 %v190
    %v951 = vunpack.c.h.b16 %v190
    %v952 = vunpack.c.l.b16 %v191
    %v953 = vunpack.c.l.b16 %v192
    %v954 = vunpack.c.h.b16 %v192
    %v955 = vunpack.c.l.b16 %v193
    %v956 = vunpack.c.h.b16 %v193
    %v957 = vunpack.c.l.b16 %v194
    %v958 = vunpack.c.l.b16 %v195
    %v959 = vunpack.c.h.b16 %v195
    %v960 = vunpack.c.l.b16 %v196
    %v961 = vunpack.c.h.b16 %v196
    %v962 = vunpack.c.l.b16 %v197
    %v963 = vunpack.c.l.b16 %v198
    %v964 = vunpack.c.h.b16 %v198
    %v965 = vunpack.c.l.b16 %v199
    %v966 = vunpack.c.h.b16 %v199
    %v967 = vunpack.c.l.b16 %v200
    %v968 = vunpack.c.l.b16 %v201
    %v969 = vunpack.c.h.b16 %v201
    %v970 = vunpack.c.l.b16 %v202
    %v971 = vunpack.c.h.b16 %v202
    %v972 = vunpack.c.l.b16 %v203
    %v973 = vunpack.c.l.b16 %v204
    %v974 = vunpack.c.h.b16 %v204
    %v975 = vunpack.c.l.b16 %v205
    %v976 = vunpack.c.h.b16 %v205
    %v977 = vunpack.c.l.b16 %v206
    %v978 = vunpack.c.l.b16 %v207
    %v979 = vunpack.c.h.b16 %v207
    %v980 = vunpack.c.l.b16 %v208
    %v981 = vunpack.c.h.b16 %v208
    %v982 = vunpack.c.l.b16 %v209
    %v983 = vunpack.c.l.b16 %v210
    %v984 = vunpack.c.h.b16 %v210
    %v985 = vunpack.c.l.b16 %v211
    %v986 = vunpack.c.h.b16 %v211
    %v987 = vunpack.c.l.b16 %v212
    %v988 = vunpack.c.l.b16 %v213
    %v989 = vunpack.c.h.b16 %v213
    %v990 = vunpack.c.l.b16 %v214
    %v991 = vunpack.c.h.b16 %v214
    %v992 = vunpack.c.l.b16 %v215
    %v993 = vunpack.c.l.b16 %v216
    %v994 = vunpack.c.h.b16 %v216
    %v995 = vunpack.c.l.b16 %v217
    %v996 = vunpack.c.h.b16 %v217
    %v997 = vunpack.c.l.b16 %v218
    %v998 = vunpack.c.l.b16 %v219
    %v999 = vunpack.c.h.b16 %v219
    %v1000 = vunpack.c.l.b16 %v220
    %v1001 = vunpack.c.h.b16 %v220
    %v1002 = vunpack.c.l.b16 %v221
    %v1003 = vunpack.c.l.b16 %v222
    %v1004 = vunpack.c.h.b16 %v222
    %v1005 = vunpack.c.l.b16 %v223
    %v1006 = vunpack.c.h.b16 %v223
    %v1007 = vunpack.c.l.b16 %v224
    %v1008 = vunpack.c.l.b16 %v225
    %v1009 = vunpack.c.h.b16 %v225
    %v1010 = vunpack.c.l.b16 %v226
    %v1011 = vunpack.c.h.b16 %v226
    %v1012 = vunpack.c.l.b16 %v227
    %v1013 = vunpack.c.l.b16 %v228
    %v1014 = vunpack.c.h.b16 %v228
    %v1015 = vunpack.c.l.b16 %v229
    %v1016 = vunpack.c.h.b16 %v229
    %v1017 = vunpack.c.l.b16 %v230
    %v1018 = vunpack.c.l.b16 %v231
    %v1019 = vunpack.c.h.b16 %v231
    %v1020 = vunpack.c.l.b16 %v232
    %v1021 = vunpack.c.h.b16 %v232
    %v1022 = vunpack.c.l.b16 %v233
    %v1023 = vunpack.c.l.b16 %v234
    %v1024 = vunpack.c.h.b16 %v234
    %v1025 = vunpack.c.l.b16 %v235
    %v1026 = vunpack.c.h.b16 %v235
    %v1027 = vunpack.c.l.b16 %v236
    %v1028 = vunpack.c.l.b16 %v237
    %v1029 = vunpack.c.h.b16 %v237
    %v1030 = vunpack.c.l.b16 %v238
    %v1031 = vunpack.c.h.b16 %v238
    %v1032 = vunpack.c.l.b16 %v239
    %v1033 = vunpack.c.l.b16 %v240
    %v1034 = vunpack.c.h.b16 %v240
    %v1035 = vunpack.c.l.b16 %v241
    %v1036 = vunpack.c.h.b16 %v241
    %v1037 = vunpack.c.l.b16 %v242
    %v1038 = vunpack.c.l.b16 %v243
    %v1039 = vunpack.c.h.b16 %v243
    %v1040 = vunpack.c.l.b16 %v244
    %v1041 = vunpack.c.h.b16 %v244
    %v1042 = vunpack.c.l.b16 %v245
    %v1043 = vunpack.c.l.b16 %v246
    %v1044 = vunpack.c.h.b16 %v246
    %v1045 = vunpack.c.l.b16 %v247
    %v1046 = vunpack.c.h.b16 %v247
    %v1047 = vunpack.c.l.b16 %v248
    %v1048 = vunpack.c.l.b16 %v249
    %v1049 = vunpack.c.h.b16 %v249
    %v1050 = vunpack.c.l.b16 %v250
    %v1051 = vunpack.c.h.b16 %v250
    %v1052 = vunpack.c.l.b16 %v251
    %v1053 = vunpack.c.l.b16 %v252
    %v1054 = vunpack.c.h.b16 %v252
    %v1055 = vunpack.c.l.b16 %v253
    %v1056 = vunpack.c.h.b16 %v253
    %v1057 = vunpack.c.l.b16 %v254
    %v1058 = vunpack.c.l.b16 %v255
    %v1059 = vunpack.c.h.b16 %v255
    %v1060 = vunpack.c.l.b16 %v256
    %v1061 = vunpack.c.h.b16 %v256
    %v1062 = vunpack.c.l.b16 %v257
    %v1063 = vunpack.c.l.b16 %v258
    %v1064 = vunpack.c.h.b16 %v258
    %v1065 = vunpack.c.l.b16 %v259
    %v1066 = vunpack.c.h.b16 %v259
    %v1067 = vunpack.c.l.b16 %v260
    %v1068 = vunpack.c.l.b16 %v261
    %v1069 = vunpack.c.h.b16 %v261
    %v1070 = vunpack.c.l.b16 %v262
    %v1071 = vunpack.c.h.b16 %v262
    %v1072 = vunpack.c.l.b16 %v263
    %v1073 = vunpack.c.l.b16 %v264
    %v1074 = vunpack.c.h.b16 %v264
    %v1075 = vunpack.c.l.b16 %v265
    %v1076 = vunpack.c.h.b16 %v265
    %v1077 = vunpack.c.l.b16 %v266
    %v1078 = vunpack.c.l.b16 %v267
    %v1079 = vunpack.c.h.b16 %v267
    %v1080 = vunpack.c.l.b16 %v268
    %v1081 = vunpack.c.h.b16 %v268
    %v1082 = vunpack.c.l.b16 %v269
    %v1083 = vunpack.c.l.b16 %v270
    %v1084 = vunpack.c.h.b16 %v270
    %v1085 = vunpack.c.l.b16 %v271
    %v1086 = vunpack.c.h.b16 %v271
    %v1087 = vunpack.c.l.b16 %v272
    %v1088 = vunpack.c.l.b16 %v273
    %v1089 = vunpack.c.h.b16 %v273
    %v1090 = vunpack.c.l.b16 %v274
    %v1091 = vunpack.c.h.b16 %v274
    %v1092 = vunpack.c.l.b16 %v275
    %v1093 = vunpack.c.l.b16 %v276
    %v1094 = vunpack.c.h.b16 %v276
    %v1095 = vunpack.c.l.b16 %v277
    %v1096 = vunpack.c.h.b16 %v277
    %v1097 = vunpack.c.l.b16 %v278
    %v1098 = vunpack.c.l.b16 %v279
    %v1099 = vunpack.c.h.b16 %v279
    %v1100 = vunpack.c.l.b16 %v280
    %v1101 = vunpack.c.h.b16 %v280
    %v1102 = vunpack.c.l.b16 %v281
    %v1103 = vunpack.c.l.b16 %v282
    %v1104 = vunpack.c.h.b16 %v282
    %v1105 = vunpack.c.l.b16 %v283
    %v1106 = vunpack.c.h.b16 %v283
    %v1107 = vunpack.c.l.b16 %v284
    %v1108 = vunpack.c.l.b16 %v285
    %v1109 = vunpack.c.h.b16 %v285
    %v1110 = vunpack.c.l.b16 %v286
    %v1111 = vunpack.c.h.b16 %v286
    %v1112 = vunpack.c.l.b16 %v287
    %v1113 = vunpack.c.l.b16 %v288
    %v1114 = vunpack.c.h.b16 %v288
    %v1115 = vunpack.c.l.b16 %v289
    %v1116 = vunpack.c.h.b16 %v289
    %v1117 = vunpack.c.l.b16 %v290
    %v1118 = vunpack.c.l.b16 %v291
    %v1119 = vunpack.c.h.b16 %v291
    %v1120 = vunpack.c.l.b16 %v292
    %v1121 = vunpack.c.h.b16 %v292
    %v1122 = vunpack.c.l.b16 %v293
    %v1123 = vunpack.c.l.b16 %v294
    %v1124 = vunpack.c.h.b16 %v294
    %v1125 = vunpack.c.l.b16 %v295
    %v1126 = vunpack.c.h.b16 %v295
    %v1127 = vunpack.c.l.b16 %v296
    %v1128 = vunpack.c.l.b16 %v297
    %v1129 = vunpack.c.h.b16 %v297
    %v1130 = vunpack.c.l.b16 %v298
    %v1131 = vunpack.c.h.b16 %v298
    %v1132 = vunpack.c.l.b16 %v299
    %v1133 = vunpack.c.l.b16 %v300
    %v1134 = vunpack.c.h.b16 %v300
    %v1135 = vunpack.c.l.b16 %v301
    %v1136 = vunpack.c.h.b16 %v301
    %v1137 = vunpack.c.l.b16 %v302
    %v1138 = vunpack.c.l.b16 %v303
    %v1139 = vunpack.c.h.b16 %v303
    %v1140 = vunpack.c.l.b16 %v304
    %v1141 = vunpack.c.h.b16 %v304
    %v1142 = vunpack.c.l.b16 %v305
    %v1143 = vunpack.c.l.b16 %v306
    %v1144 = vunpack.c.h.b16 %v306
    %v1145 = vunpack.c.l.b16 %v307
    %v1146 = vunpack.c.h.b16 %v307
    %v1147 = vunpack.c.l.b16 %v308
    %v1148 = vunpack.c.l.b16 %v309
    %v1149 = vunpack.c.h.b16 %v309
    %v1150 = vunpack.c.l.b16 %v310
    %v1151 = vunpack.c.h.b16 %v310
    %v1152 = vunpack.c.l.b16 %v311
    %v1153 = vunpack.c.l.b16 %v312
    %v1154 = vunpack.c.h.b16 %v312
    %v1155 = vunpack.c.l.b16 %v313
    %v1156 = vunpack.c.h.b16 %v313
    %v1157 = vunpack.c.l.b16 %v314
    %v1158 = vunpack.c.l.b16 %v315
    %v1159 = vunpack.c.h.b16 %v315
    %v1160 = vunpack.c.l.b16 %v316
    %v1161 = vunpack.c.h.b16 %v316
    %v1162 = vunpack.c.l.b16 %v317
    %v1163 = vunpack.c.l.b16 %v318
    %v1164 = vunpack.c.h.b16 %v318
    %v1165 = vunpack.c.l.b16 %v319
    %v1166 = vunpack.c.h.b16 %v319
    %v1167 = vunpack.c.l.b16 %v320
    %v1168 = vunpack.c.l.b16 %v321
    %v1169 = vunpack.c.h.b16 %v321
    %v1170 = vunpack.c.l.b16 %v322
    %v1171 = vunpack.c.h.b16 %v322
    %v1172 = vunpack.c.l.b16 %v323
    %v1173 = vunpack.c.l.b16 %v324
    %v1174 = vunpack.c.h.b16 %v324
    %v1175 = vunpack.c.l.b16 %v325
    %v1176 = vunpack.c.h.b16 %v325
    %v1177 = vunpack.c.l.b16 %v326
    %v1178 = vunpack.c.l.b16 %v327
    %v1179 = vunpack.c.h.b16 %v327
    %v1180 = vunpack.c.l.b16 %v328
    %v1181 = vunpack.c.h.b16 %v328
    %v1182 = vunpack.c.l.b16 %v329
    %v1183 = vunpack.c.l.b16 %v330
    %v1184 = vunpack.c.h.b16 %v330
    %v1185 = vunpack.c.l.b16 %v331
    %v1186 = vunpack.c.h.b16 %v331
    %v1187 = vunpack.c.l.b16 %v332
    %v1188 = vunpack.c.l.b16 %v333
    %v1189 = vunpack.c.h.b16 %v333
    %v1190 = vunpack.c.l.b16 %v334
    %v1191 = vunpack.c.h.b16 %v334
    %v1192 = vunpack.c.l.b16 %v335
    %v1193 = vunpack.c.l.b16 %v336
    %v1194 = vunpack.c.h.b16 %v336
    %v1195 = vunpack.c.l.b16 %v337
    %v1196 = vunpack.c.h.b16 %v337
    %v1197 = vunpack.c.l.b16 %v338
    %v1198 = vunpack.c.l.b16 %v339
    %v1199 = vunpack.c.h.b16 %v339
    %v1200 = vunpack.c.l.b16 %v340
    %v1201 = vunpack.c.h.b16 %v340
    %v1202 = vunpack.c.l.b16 %v341
    %v1203 = vunpack.c.l.b16 %v342
    %v1204 = vunpack.c.h.b16 %v342
    %v1205 = vunpack.c.l.b16 %v343
    %v1206 = vunpack.c.h.b16 %v343
    %v1207 = vunpack.c.l.b16 %v344
    %v1208 = vunpack.c.l.b16 %v345
    %v1209 = vunpack.c.h.b16 %v345
    %v1210 = vunpack.c.l.b16 %v346
    %v1211 = vunpack.c.h.b16 %v346
    %v1212 = vunpack.c.l.b16 %v347
    %v1213 = vunpack.c.l.b16 %v348
    %v1214 = vunpack.c.h.b16 %v348
    %v1215 = vunpack.c.l.b16 %v349
    %v1216 = vunpack.c.h.b16 %v349
    %v1217 = vunpack.c.l.b16 %v350
    %v1218 = vunpack.c.l.b16 %v351
    %v1219 = vunpack.c.h.b16 %v351
    %v1220 = vunpack.c.l.b16 %v352
    %v1221 = vunpack.c.h.b16 %v352
    %v1222 = vunpack.c.l.b16 %v353
    %v1223 = vunpack.c.l.b16 %v354
    %v1224 = vunpack.c.h.b16 %v354
    %v1225 = vunpack.c.l.b16 %v355
    %v1226 = vunpack.c.h.b16 %v355
    %v1227 = vunpack.c.l.b16 %v356
    %v1228 = vunpack.c.l.b16 %v357
    %v1229 = vunpack.c.h.b16 %v357
    %v1230 = vunpack.c.l.b16 %v358
    %v1231 = vunpack.c.h.b16 %v358
    %v1232 = vunpack.c.l.b16 %v359
    %v1233 = vunpack.c.l.b16 %v360
    %v1234 = vunpack.c.h.b16 %v360
    %v1235 = vunpack.c.l.b16 %v361
    %v1236 = vunpack.c.h.b16 %v361
    %v1237 = vunpack.c.l.b16 %v362
    %v1238 = vunpack.c.l.b16 %v363
    %v1239 = vunpack.c.h.b16 %v363
    %v1240 = vunpack.c.l.b16 %v364
    %v1241 = vunpack.c.h.b16 %v364
    %v1242 = vunpack.c.l.b16 %v365
    %v1243 = vunpack.c.l.b16 %v366
    %v1244 = vunpack.c.h.b16 %v366
    %v1245 = vunpack.c.l.b16 %v367
    %v1246 = vunpack.c.h.b16 %v367
    %v1247 = vunpack.c.l.b16 %v368
    %v1248 = vunpack.c.l.b16 %v369
    %v1249 = vunpack.c.h.b16 %v369
    %v1250 = vunpack.c.l.b16 %v370
    %v1251 = vunpack.c.h.b16 %v370
    %v1252 = vunpack.c.l.b16 %v371
    %v1253 = vunpack.c.l.b16 %v372
    %v1254 = vunpack.c.h.b16 %v372
    %v1255 = vunpack.c.l.b16 %v373
    %v1256 = vunpack.c.h.b16 %v373
    %v1257 = vunpack.c.l.b16 %v374
    %v1258 = vunpack.c.l.b16 %v375
    %v1259 = vunpack.c.h.b16 %v375
    %v1260 = vunpack.c.l.b16 %v376
    %v1261 = vunpack.c.h.b16 %v376
    %v1262 = vunpack.c.l.b16 %v377
    %v1263 = vunpack.c.l.b16 %v378
    %v1264 = vunpack.c.h.b16 %v378
    %v1265 = vunpack.c.l.b16 %v379
    %v1266 = vunpack.c.h.b16 %v379
    %v1267 = vunpack.c.l.b16 %v380
    %v1268 = vunpack.c.l.b16 %v381
    %v1269 = vunpack.c.h.b16 %v381
    %v1270 = vunpack.c.l.b16 %v382
    %v1271 = vunpack.c.h.b16 %v382
    %v1272 = vunpack.c.l.b16 %v383
    %v1273 = vunpack.c.l.b16 %v384
    %v1274 = vunpack.c.h.b16 %v384
    %v1275 = vunpack.c.l.b16 %v385
    %v1276 = vunpack.c.h.b16 %v385
    %v1277 = vunpack.c.l.b16 %v386
    %v1278 = vunpack.c.l.b16 %v387
    %v1279 = vunpack.c.h.b16 %v387
    %v1280 = vunpack.c.l.b16 %v388
    %v1281 = vunpack.c.h.b16 %v388
    %v1282 = vunpack.c.l.b16 %v389
    %v1283 = vunpack.c.l.b16 %v390
    %v1284 = vunpack.c.h.b16 %v390
    %v1285 = vunpack.c.l.b16 %v391
    %v1286 = vunpack.c.h.b16 %v391
    %v1287 = vunpack.c.l.b16 %v392
    %v1288 = vunpack.c.l.b16 %v393
    %v1289 = vunpack.c.h.b16 %v393
    %v1290 = vunpack.c.l.b16 %v394
    %v1291 = vunpack.c.h.b16 %v394
    %v1292 = vunpack.c.l.b16 %v395
    %v1293 = vunpack.c.l.b16 %v396
    %v1294 = vunpack.c.h.b16 %v396
    %v1295 = vunpack.c.l.b16 %v397
    %v1296 = vunpack.c.h.b16 %v397
    %v1297 = vunpack.c.l.b16 %v398
    %v1298 = vunpack.c.l.b16 %v399
    %v1299 = vunpack.c.h.b16 %v399
    %v1300 = vunpack.c.l.b16 %v400
    %v1301 = vunpack.c.h.b16 %v400
    %v1302 = vunpack.c.l.b16 %v401
    %v1303 = vunpack.c.l.b16 %v402
    %v1304 = vunpack.c.h.b16 %v402
    %v1305 = vunpack.c.l.b16 %v403
    %v1306 = vunpack.c.h.b16 %v403
    %v1307 = vunpack.c.l.b16 %v404
    %v1308 = vunpack.c.l.b16 %v405
    %v1309 = vunpack.c.h.b16 %v405
    %v1310 = vunpack.c.l.b16 %v406
    %v1311 = vunpack.c.h.b16 %v406
    %v1312 = vunpack.c.l.b16 %v407
    %v1313 = vunpack.c.l.b16 %v408
    %v1314 = vunpack.c.h.b16 %v408
    %v1315 = vunpack.c.l.b16 %v409
    %v1316 = vunpack.c.h.b16 %v409
    %v1317 = vunpack.c.l.b16 %v410
    %v1318 = vunpack.c.l.b16 %v411
    %v1319 = vunpack.c.h.b16 %v411
    %v1320 = vunpack.c.l.b16 %v412
    %v1321 = vunpack.c.h.b16 %v412
    %v1322 = vunpack.c.l.b16 %v413
    %v1323 = vunpack.c.l.b16 %v414
    %v1324 = vunpack.c.h.b16 %v414
    %v1325 = vunpack.c.l.b16 %v415
    %v1326 = vunpack.c.h.b16 %v415
    %v1327 = vunpack.c.l.b16 %v416
    %v1328 = vunpack.c.l.b16 %v417
    %v1329 = vunpack.c.h.b16 %v417
    %v1330 = vunpack.c.l.b16 %v418
    %v1331 = vunpack.c.h.b16 %v418
    %v1332 = vunpack.c.l.b16 %v419
    %v1333 = vunpack.c.l.b16 %v420
    %v1334 = vunpack.c.h.b16 %v420
    %v1335 = vunpack.c.l.b16 %v421
    %v1336 = vunpack.c.h.b16 %v421
    %v1337 = vunpack.c.l.b16 %v422
    %v1338 = vunpack.c.l.b16 %v423
    %v1339 = vunpack.c.h.b16 %v423
    %v1340 = vunpack.c.l.b16 %v424
    %v1341 = vunpack.c.h.b16 %v424
    %v1342 = vunpack.c.l.b16 %v425
    %v1343 = vunpack.c.l.b16 %v426
    %v1344 = vunpack.c.h.b16 %v426
    %v1345 = vunpack.c.l.b16 %v427
    %v1346 = vunpack.c.h.b16 %v427
    %v1347 = vunpack.c.l.b16 %v428
    %v1348 = vunpack.c.l.b16 %v429
    %v1349 = vunpack.c.h.b16 %v429
    %v1350 = vunpack.c.l.b16 %v430
    %v1351 = vunpack.c.h.b16 %v430
    %v1352 = vunpack.c.l.b16 %v431
    %v1353 = vunpack.c.l.b16 %v432
    %v1354 = vunpack.c.h.b16 %v432
    %v1355 = vunpack.c.l.b16 %v433
    %v1356 = vunpack.c.h.b16 %v433
    %v1357 = vunpack.c.l.b16 %v434
    %v1358 = vpack.c.b16 %v818, %v813
    %v1359 = vpack.c.b16 %v819, %v814
    %v1360 = vpack.c.b16 %v820, %v815
    %v1361 = vpack.c.b16 %v821, %v816
    %v1362 = vpack.c.b16 %v822, %v817
    %v1363 = vpack.c.b16 %v828, %v823
    %v1364 = vpack.c.b16 %v829, %v824
    %v1365 = vpack.c.b16 %v830, %v825
    %v1366 = vpack.c.b16 %v831, %v826
    %v1367 = vpack.c.b16 %v832, %v827
    %v1368 = vpack.c.b16 %v838, %v833
    %v1369 = vpack.c.b16 %v839, %v834
    %v1370 = vpack.c.b16 %v840, %v835
    %v1371 = vpack.c.b16 %v841, %v836
    %v1372 = vpack.c.b16 %v842, %v837
    %v1373 = vpack.c.b16 %v848, %v843
    %v1374 = vpack.c.b16 %v849, %v844
    %v1375 = vpack.c.b16 %v850, %v845
    %v1376 = vpack.c.b16 %v851, %v846
    %v1377 = vpack.c.b16 %v852, %v847
    %v1378 = vpack.c.b16 %v858, %v853
    %v1379 = vpack.c.b16 %v859, %v854
    %v1380 = vpack.c.b16 %v860, %v855
    %v1381 = vpack.c.b16 %v861, %v856
    %v1382 = vpack.c.b16 %v862, %v857
    %v1383 = vpack.c.b16 %v868, %v863
    %v1384 = vpack.c.b16 %v869, %v864
    %v1385 = vpack.c.b16 %v870, %v865
    %v1386 = vpack.c.b16 %v871, %v866
    %v1387 = vpack.c.b16 %v872, %v867
    %v1388 = vpack.c.b16 %v878, %v873
    %v1389 = vpack.c.b16 %v879, %v874
    %v1390 = vpack.c.b16 %v880, %v875
    %v1391 = vpack.c.b16 %v881, %v876
    %v1392 = vpack.c.b16 %v882, %v877
    %v1393 = vpack.c.b16 %v888, %v883
    %v1394 = vpack.c.b16 %v889, %v884
    %v1395 = vpack.c.b16 %v890, %v885
    %v1396 = vpack.c.b16 %v891, %v886
    %v1397 = vpack.c.b16 %v892, %v887
    %v1398 = vpack.c.b16 %v898, %v893
    %v1399 = vpack.c.b16 %v899, %v894
    %v1400 = vpack.c.b16 %v900, %v895
    %v1401 = vpack.c.b16 %v901, %v896
    %v1402 = vpack.c.b16 %v902, %v897
    %v1403 = vpack.c.b16 %v908, %v903
    %v1404 = vpack.c.b16 %v909, %v904
    %v1405 = vpack.c.b16 %v910, %v905
    %v1406 = vpack.c.b16 %v911, %v906
    %v1407 = vpack.c.b16 %v912, %v907
    %v1408 = vpack.c.b16 %v918, %v913
    %v1409 = vpack.c.b16 %v919, %v914
    %v1410 = vpack.c.b16 %v920, %v915
    %v1411 = vpack.c.b16 %v921, %v916
    %v1412 = vpack.c.b16 %v922, %v917
    %v1413 = vpack.c.b16 %v928, %v923
    %v1414 = vpack.c.b16 %v929, %v924
    %v1415 = vpack.c.b16 %v930, %v925
    %v1416 = vpack.c.b16 %v931, %v926
    %v1417 = vpack.c.b16 %v932, %v927
    %v1418 = vpack.c.b16 %v938, %v933
    %v1419 = vpack.c.b16 %v939, %v934
    %v1420 = vpack.c.b16 %v940, %v935
    %v1421 = vpack.c.b16 %v941, %v936
    %v1422 = vpack.c.b16 %v942, %v937
    %v1423 = vpack.c.b16 %v948, %v943
    %v1424 = vpack.c.b16 %v949, %v944
    %v1425 = vpack.c.b16 %v950, %v945
    %v1426 = vpack.c.b16 %v951, %v946
    %v1427 = vpack.c.b16 %v952, %v947
    %v1428 = vpack.c.b16 %v958, %v953
    %v1429 = vpack.c.b16 %v959, %v954
    %v1430 = vpack.c.b16 %v960, %v955
    %v1431 = vpack.c.b16 %v961, %v956
    %v1432 = vpack.c.b16 %v962, %v957
    %v1433 = vpack.c.b16 %v968, %v963
    %v1434 = vpack.c.b16 %v969, %v964
    %v1435 = vpack.c.b16 %v970, %v965
    %v1436 = vpack.c.b16 %v971, %v966
    %v1437 = vpack.c.b16 %v972, %v967
    %v1438 = vpack.c.b16 %v978, %v973
    %v1439 = vpack.c.b16 %v979, %v974
    %v1440 = vpack.c.b16 %v980, %v975
    %v1441 = vpack.c.b16 %v981, %v976
    %v1442 = vpack.c.b16 %v982, %v977
    %v1443 = vpack.c.b16 %v988, %v983
    %v1444 = vpack.c.b16 %v989, %v984
    %v1445 = vpack.c.b16 %v990, %v985
    %v1446 = vpack.c.b16 %v991, %v986
    %v1447 = vpack.c.b16 %v992, %v987
    %v1448 = vpack.c.b16 %v998, %v993
    %v1449 = vpack.c.b16 %v999, %v994
    %v1450 = vpack.c.b16 %v1000, %v995
    %v1451 = vpack.c.b16 %v1001, %v996
    %v1452 = vpack.c.b16 %v1002, %v997
    %v1453 = vpack.c.b16 %v1008, %v1003
    %v1454 = vpack.c.b16 %v1009, %v1004
    %v1455 = vpack.c.b16 %v1010, %v1005
    %v1456 = vpack.c.b16 %v1011, %v1006
    %v1457 = vpack.c.b16 %v1012, %v1007
    %v1458 = vpack.c.b16 %v1018, %v1013
    %v1459 = vpack.c.b16 %v1019, %v1014
    %v1460 = vpack.c.b16 %v1020, %v1015
    %v1461 = vpack.c.b16 %v1021, %v1016
    %v1462 = vpack.c.b16 %v1022, %v1017
    %v1463 = vpack.c.b16 %v1028, %v1023
    %v1464 = vpack.c.b16 %v1029, %v1024
    %v1465 = vpack.c.b16 %v1030, %v1025
    %v1466 = vpack.c.b16 %v1031, %v1026
    %v1467 = vpack.c.b16 %v1032, %v1027
    %v1468 = vpack.c.b16 %v1038, %v1033
    %v1469 = vpack.c.b16 %v1039, %v1034
    %v1470 = vpack.c.b16 %v1040, %v1035
    %v1471 = vpack.c.b16 %v1041, %v1036
    %v1472 = vpack.c.b16 %v1042, %v1037
    %v1473 = vpack.c.b16 %v1048, %v1043
    %v1474 = vpack.c.b16 %v1049, %v1044
    %v1475 = vpack.c.b16 %v1050, %v1045
    %v1476 = vpack.c.b16 %v1051, %v1046
    %v1477 = vpack.c.b16 %v1052, %v1047
    %v1478 = vpack.c.b16 %v1058, %v1053
    %v1479 = vpack.c.b16 %v1059, %v1054
    %v1480 = vpack.c.b16 %v1060, %v1055
    %v1481 = vpack.c.b16 %v1061, %v1056
    %v1482 = vpack.c.b16 %v1062, %v1057
    %v1483 = vpack.c.b16 %v1068, %v1063
    %v1484 = vpack.c.b16 %v1069, %v1064
    %v1485 = vpack.c.b16 %v1070, %v1065
    %v1486 = vpack.c.b16 %v1071, %v1066
    %v1487 = vpack.c.b16 %v1072, %v1067
    %v1488 = vpack.c.b16 %v1078, %v1073
    %v1489 = vpack.c.b16 %v1079, %v1074
    %v1490 = vpack.c.b16 %v1080, %v1075
    %v1491 = vpack.c.b16 %v1081, %v1076
    %v1492 = vpack.c.b16 %v1082, %v1077
    %v1493 = vpack.c.b16 %v1088, %v1083
    %v1494 = vpack.c.b16 %v1089, %v1084
    %v1495 = vpack.c.b16 %v1090, %v1085
    %v1496 = vpack.c.b16 %v1091, %v1086
    %v1497 = vpack.c.b16 %v1092, %v1087
    %v1498 = vpack.c.b16 %v1098, %v1093
    %v1499 = vpack.c.b16 %v1099, %v1094
    %v1500 = vpack.c.b16 %v1100, %v1095
    %v1501 = vpack.c.b16 %v1101, %v1096
    %v1502 = vpack.c.b16 %v1102, %v1097
    %v1503 = vpack.c.b16 %v1108, %v1103
    %v1504 = vpack.c.b16 %v1109, %v1104
    %v1505 = vpack.c.b16 %v1110, %v1105
    %v1506 = vpack.c.b16 %v1111, %v1106
    %v1507 = vpack.c.b16 %v1112, %v1107
    %v1508 = vpack.c.b16 %v1118, %v1113
    %v1509 = vpack.c.b16 %v1119, %v1114
    %v1510 = vpack.c.b16 %v1120, %v1115
    %v1511 = vpack.c.b16 %v1121, %v1116
    %v1512 = vpack.c.b16 %v1122, %v1117
    %v1513 = vpack.c.b16 %v1128, %v1123
    %v1514 = vpack.c.b16 %v1129, %v1124
    %v1515 = vpack.c.b16 %v1130, %v1125
    %v1516 = vpack.c.b16 %v1131, %v1126
    %v1517 = vpack.c.b16 %v1132, %v1127
    %v1518 = vpack.c.b16 %v1138, %v1133
    %v1519 = vpack.c.b16 %v1139, %v1134
    %v1520 = vpack.c.b16 %v1140, %v1135
    %v1521 = vpack.c.b16 %v1141, %v1136
    %v1522 = vpack.c.b16 %v1142, %v1137
    %v1523 = vpack.c.b16 %v1148, %v1143
    %v1524 = vpack.c.b16 %v1149, %v1144
    %v1525 = vpack.c.b16 %v1150, %v1145
    %v1526 = vpack.c.b16 %v1151, %v1146
    %v1527 = vpack.c.b16 %v1152, %v1147
    %v1528 = vpack.c.b16 %v1158, %v1153
    %v1529 = vpack.c.b16 %v1159, %v1154
    %v1530 = vpack.c.b16 %v1160, %v1155
    %v1531 = vpack.c.b16 %v1161, %v1156
    %v1532 = vpack.c.b16 %v1162, %v1157
    %v1533 = vpack.c.b16 %v1168, %v1163
    %v1534 = vpack.c.b16 %v1169, %v1164
    %v1535 = vpack.c.b16 %v1170, %v1165
    %v1536 = vpack.c.b16 %v1171, %v1166
    %v1537 = vpack.c.b16 %v1172, %v1167
    %v1538 = vpack.c.b16 %v1178, %v1173
    %v1539 = vpack.c.b16 %v1179, %v1174
    %v1540 = vpack.c.b16 %v1180, %v1175
    %v1541 = vpack.c.b16 %v1181, %v1176
    %v1542 = vpack.c.b16 %v1182, %v1177
    %v1543 = vpack.c.b16 %v1188, %v1183
    %v1544 = vpack.c.b16 %v1189, %v1184
    %v1545 = vpack.c.b16 %v1190, %v1185
    %v1546 = vpack.c.b16 %v1191, %v1186
    %v1547 = vpack.c.b16 %v1192, %v1187
    %v1548 = vpack.c.b16 %v1198, %v1193
    %v1549 = vpack.c.b16 %v1199, %v1194
    %v1550 = vpack.c.b16 %v1200, %v1195
    %v1551 = vpack.c.b16 %v1201, %v1196
    %v1552 = vpack.c.b16 %v1202, %v1197
    %v1553 = vpack.c.b16 %v1208, %v1203
    %v1554 = vpack.c.b16 %v1209, %v1204
    %v1555 = vpack.c.b16 %v1210, %v1205
    %v1556 = vpack.c.b16 %v1211, %v1206
    %v1557 = vpack.c.b16 %v1212, %v1207
    %v1558 = vpack.c.b16 %v1218, %v1213
    %v1559 = vpack.c.b16 %v1219, %v1214
    %v1560 = vpack.c.b16 %v1220, %v1215
    %v1561 = vpack.c.b16 %v1221, %v1216
    %v1562 = vpack.c.b16 %v1222, %v1217
    %v1563 = vpack.c.b16 %v1228, %v1223
    %v1564 = vpack.c.b16 %v1229, %v1224
    %v1565 = vpack.c.b16 %v1230, %v1225
    %v1566 = vpack.c.b16 %v1231, %v1226
    %v1567 = vpack.c.b16 %v1232, %v1227
    %v1568 = vpack.c.b16 %v1238, %v1233
    %v1569 = vpack.c.b16 %v1239, %v1234
    %v1570 = vpack.c.b16 %v1240, %v1235
    %v1571 = vpack.c.b16 %v1241, %v1236
    %v1572 = vpack.c.b16 %v1242, %v1237
    %v1573 = vpack.c.b16 %v1248, %v1243
    %v1574 = vpack.c.b16 %v1249, %v1244
    %v1575 = vpack.c.b16 %v1250, %v1245
    %v1576 = vpack.c.b16 %v1251, %v1246
    %v1577 = vpack.c.b16 %v1252, %v1247
    %v1578 = vpack.c.b16 %v1258, %v1253
    %v1579 = vpack.c.b16 %v1259, %v1254
    %v1580 = vpack.c.b16 %v1260, %v1255
    %v1581 = vpack.c.b16 %v1261, %v1256
    %v1582 = vpack.c.b16 %v1262, %v1257
    %v1583 = vpack.c.b16 %v1268, %v1263
    %v1584 = vpack.c.b16 %v1269, %v1264
    %v1585 = vpack.c.b16 %v1270, %v1265
    %v1586 = vpack.c.b16 %v1271, %v1266
    %v1587 = vpack.c.b16 %v1272, %v1267
    %v1588 = vpack.c.b16 %v1278, %v1273
    %v1589 = vpack.c.b16 %v1279, %v1274
    %v1590 = vpack.c.b16 %v1280, %v1275
    %v1591 = vpack.c.b16 %v1281, %v1276
    %v1592 = vpack.c.b16 %v1282, %v1277
    %v1593 = vpack.c.b16 %v1288, %v1283
    %v1594 = vpack.c.b16 %v1289, %v1284
    %v1595 = vpack.c.b16 %v1290, %v1285
    %v1596 = vpack.c.b16 %v1291, %v1286
    %v1597 = vpack.c.b16 %v1292, %v1287
    %v1598 = vpack.c.b16 %v1298, %v1293
    %v1599 = vpack.c.b16 %v1299, %v1294
    %v1600 = vpack.c.b16 %v1300, %v1295
    %v1601 = vpack.c.b16 %v1301, %v1296
    %v1602 = vpack.c.b16 %v1302, %v1297
    %v1603 = vpack.c.b16 %v1308, %v1303
    %v1604 = vpack.c.b16 %v1309, %v1304
    %v1605 = vpack.c.b16 %v1310, %v1305
    %v1606 = vpack.c.b16 %v1311, %v1306
    %v1607 = vpack.c.b16 %v1312, %v1307
    %v1608 = vpack.c.b16 %v1318, %v1313
    %v1609 = vpack.c.b16 %v1319, %v1314
    %v1610 = vpack.c.b16 %v1320, %v1315
    %v1611 = vpack.c.b16 %v1321, %v1316
    %v1612 = vpack.c.b16 %v1322, %v1317
    %v1613 = vpack.c.b16 %v1328, %v1323
    %v1614 = vpack.c.b16 %v1329, %v1324
    %v1615 = vpack.c.b16 %v1330, %v1325
    %v1616 = vpack.c.b16 %v1331, %v1326
    %v1617 = vpack.c.b16 %v1332, %v1327
    %v1618 = vpack.c.b16 %v1338, %v1333
    %v1619 = vpack.c.b16 %v1339, %v1334
    %v1620 = vpack.c.b16 %v1340, %v1335
    %v1621 = vpack.c.b16 %v1341, %v1336
    %v1622 = vpack.c.b16 %v1342, %v1337
    %v1623 = vpack.c.b16 %v1348, %v1343
    %v1624 = vpack.c.b16 %v1349, %v1344
    %v1625 = vpack.c.b16 %v1350, %v1345
    %v1626 = vpack.c.b16 %v1351, %v1346
    %v1627 = vpack.c.b16 %v1352, %v1347
    %v1628 = vpack.c.b16 %v1353, %v1353
    %v1629 = vpack.c.b16 %v1354, %v1354
    %v1630 = vpack.c.b16 %v1355, %v1355
    %v1631 = vpack.c.b16 %v1356, %v1356
    %v1632 = vpack.c.b16 %v1357, %v1357
    %vm1903 = vcmask 850944
    %v1905 = vsel %vm1903, %v479, 0
    %vm1907 = vcmask 1043456
    %v1909 = vsel %vm1907, %v1628, 0
    %v1912 = vsel %vm1907, %v1629, 0
    %v1915 = vsel %vm1907, %v1630, 0
    %v1918 = vsel %vm1907, %v1631, 0
    %v1921 = vsel %vm1907, %v1632, 0
    %1923 = vmatprep.subr.bf16.mxu0 %v1359
    %1924 = vmatpush1.bf16.msra.mxu0 %v1358
    %1925 = vmatprep.subr.bf16.mxu0 %v1364
    %1926 = vmatpush1.bf16.msra.mxu0 %v1363
    %1927 = vmatprep.subr.bf16.mxu0 %v1369
    %1928 = vmatpush1.bf16.msra.mxu0 %v1368
    %1929 = vmatprep.subr.bf16.mxu0 %v1374
    %1930 = vmatpush1.bf16.msra.mxu0 %v1373
    %1931 = vmatprep.subr.bf16.mxu0 %v1379
    %1932 = vmatpush1.bf16.msra.mxu0 %v1378
    %1933 = vmatprep.subr.bf16.mxu0 %v1384
    %1934 = vmatpush1.bf16.msra.mxu0 %v1383
    %1935 = vmatprep.subr.bf16.mxu0 %v1389
    %1936 = vmatpush1.bf16.msra.mxu0 %v1388
    %1937 = vmatprep.subr.bf16.mxu0 %v1394
    %1938 = vmatpush1.bf16.msra.mxu0 %v1393
    %1939 = vmatprep.subr.bf16.mxu0 %v1399
    %1940 = vmatpush1.bf16.msra.mxu0 %v1398
    %1941 = vmatprep.subr.bf16.mxu0 %v1404
    %1942 = vmatpush1.bf16.msra.mxu0 %v1403
    %1943 = vmatprep.subr.bf16.mxu0 %v1409
    %1944 = vmatpush1.bf16.msra.mxu0 %v1408
    %1945 = vmatprep.subr.bf16.mxu0 %v1414
    %1946 = vmatpush1.bf16.msra.mxu0 %v1413
    %1947 = vmatprep.subr.bf16.mxu0 %v1419
    %1948 = vmatpush1.bf16.msra.mxu0 %v1418
    %1949 = vmatprep.subr.bf16.mxu0 %v1424
    %1950 = vmatpush1.bf16.msra.mxu0 %v1423
    %1951 = vmatprep.subr.bf16.mxu0 %v1429
    %1952 = vmatpush1.bf16.msra.mxu0 %v1428
    %1953 = vmatprep.subr.bf16.mxu0 %v1434
    %1954 = vmatpush1.bf16.msra.mxu0 %v1433
    %1955 = vmatprep.mubr.bf16.mxu0 %v474
    %1956 = vmatmul.mubr.bf16.gmra.mrb[0].mxu0 %v473
    %v1957 = vpop.f32.mrb[0].mxu0
    %v1958 = vadd.f32 %v440, %v1957
    %v1959 = vpop.f32.mrb[0].mxu0
    %v1960 = vadd.f32 %v444, %v1959
    %v1961 = vpop.f32.mrb[0].mxu0
    %v1962 = vpop.f32.mrb[0].mxu0
    %1963 = vdwg.mxu0
    %1964 = vmatprep.subr.bf16.mxu0 %v1439
    %1965 = vmatpush1.bf16.msra.mxu0 %v1438
    %1966 = vmatprep.subr.bf16.mxu0 %v1444
    %1967 = vmatpush1.bf16.msra.mxu0 %v1443
    %1968 = vmatprep.subr.bf16.mxu0 %v1449
    %1969 = vmatpush1.bf16.msra.mxu0 %v1448
    %1970 = vmatprep.subr.bf16.mxu0 %v1454
    %1971 = vmatpush1.bf16.msra.mxu0 %v1453
    %1972 = vmatprep.subr.bf16.mxu0 %v1459
    %1973 = vmatpush1.bf16.msra.mxu0 %v1458
    %1974 = vmatprep.subr.bf16.mxu0 %v1464
    %1975 = vmatpush1.bf16.msra.mxu0 %v1463
    %1976 = vmatprep.subr.bf16.mxu0 %v1469
    %1977 = vmatpush1.bf16.msra.mxu0 %v1468
    %1978 = vmatprep.subr.bf16.mxu0 %v1474
    %1979 = vmatpush1.bf16.msra.mxu0 %v1473
    %1980 = vmatprep.subr.bf16.mxu0 %v1479
    %1981 = vmatpush1.bf16.msra.mxu0 %v1478
    %1982 = vmatprep.subr.bf16.mxu0 %v1484
    %1983 = vmatpush1.bf16.msra.mxu0 %v1483
    %1984 = vmatprep.subr.bf16.mxu0 %v1489
    %1985 = vmatpush1.bf16.msra.mxu0 %v1488
    %1986 = vmatprep.subr.bf16.mxu0 %v1494
    %1987 = vmatpush1.bf16.msra.mxu0 %v1493
    %1988 = vmatprep.subr.bf16.mxu0 %v1499
    %1989 = vmatpush1.bf16.msra.mxu0 %v1498
    %1990 = vmatprep.subr.bf16.mxu0 %v1504
    %1991 = vmatpush1.bf16.msra.mxu0 %v1503
    %1992 = vmatprep.subr.bf16.mxu0 %v1509
    %1993 = vmatpush1.bf16.msra.mxu0 %v1508
    %1994 = vmatprep.subr.bf16.mxu0 %v1514
    %1995 = vmatpush1.bf16.msra.mxu0 %v1513
    %1996 = vmatprep.mubr.bf16.mxu0 %v476
    %1997 = vmatmul.mubr.bf16.gmra.mrb[0].mxu0 %v475
    %v1998 = vpop.f32.mrb[0].mxu0
    %v1999 = vadd.f32 %v1958, %v1998
    %v2000 = vpop.f32.mrb[0].mxu0
    %v2001 = vadd.f32 %v1960, %v2000
    %v2002 = vpop.f32.mrb[0].mxu0
    %v2003 = vpop.f32.mrb[0].mxu0
    %2004 = vdwg.mxu0
    %2005 = vmatprep.subr.bf16.mxu0 %v1519
    %2006 = vmatpush1.bf16.msra.mxu0 %v1518
    %2007 = vmatprep.subr.bf16.mxu0 %v1524
    %2008 = vmatpush1.bf16.msra.mxu0 %v1523
    %2009 = vmatprep.subr.bf16.mxu0 %v1529
    %2010 = vmatpush1.bf16.msra.mxu0 %v1528
    %2011 = vmatprep.subr.bf16.mxu0 %v1534
    %2012 = vmatpush1.bf16.msra.mxu0 %v1533
    %2013 = vmatprep.subr.bf16.mxu0 %v1539
    %2014 = vmatpush1.bf16.msra.mxu0 %v1538
    %2015 = vmatprep.subr.bf16.mxu0 %v1544
    %2016 = vmatpush1.bf16.msra.mxu0 %v1543
    %2017 = vmatprep.subr.bf16.mxu0 %v1549
    %2018 = vmatpush1.bf16.msra.mxu0 %v1548
    %2019 = vmatprep.subr.bf16.mxu0 %v1554
    %2020 = vmatpush1.bf16.msra.mxu0 %v1553
    %2021 = vmatprep.subr.bf16.mxu0 %v1559
    %2022 = vmatpush1.bf16.msra.mxu0 %v1558
    %2023 = vmatprep.subr.bf16.mxu0 %v1564
    %2024 = vmatpush1.bf16.msra.mxu0 %v1563
    %2025 = vmatprep.subr.bf16.mxu0 %v1569
    %2026 = vmatpush1.bf16.msra.mxu0 %v1568
    %2027 = vmatprep.subr.bf16.mxu0 %v1574
    %2028 = vmatpush1.bf16.msra.mxu0 %v1573
    %2029 = vmatprep.subr.bf16.mxu0 %v1579
    %2030 = vmatpush1.bf16.msra.mxu0 %v1578
    %2031 = vmatprep.subr.bf16.mxu0 %v1584
    %2032 = vmatpush1.bf16.msra.mxu0 %v1583
    %2033 = vmatprep.subr.bf16.mxu0 %v1589
    %2034 = vmatpush1.bf16.msra.mxu0 %v1588
    %2035 = vmatprep.subr.bf16.mxu0 %v1594
    %2036 = vmatpush1.bf16.msra.mxu0 %v1593
    %2037 = vmatprep.mubr.bf16.mxu0 %v478
    %2038 = vmatmul.mubr.bf16.gmra.mrb[0].mxu0 %v477
    %v2039 = vpop.f32.mrb[0].mxu0
    %v2040 = vadd.f32 %v1999, %v2039
    %v2041 = vpop.f32.mrb[0].mxu0
    %v2042 = vadd.f32 %v2001, %v2041
    %v2043 = vpop.f32.mrb[0].mxu0
    %v2044 = vpop.f32.mrb[0].mxu0
    %2045 = vdwg.mxu0
    %2046 = vmatprep.subr.bf16.mxu0 %v1599
    %2047 = vmatpush1.bf16.msra.mxu0 %v1598
    %2048 = vmatprep.subr.bf16.mxu0 %v1604
    %2049 = vmatpush1.bf16.msra.mxu0 %v1603
    %2050 = vmatprep.subr.bf16.mxu0 %v1609
    %2051 = vmatpush1.bf16.msra.mxu0 %v1608
    %2052 = vmatprep.subr.bf16.mxu0 %v1614
    %2053 = vmatpush1.bf16.msra.mxu0 %v1613
    %2054 = vmatprep.subr.bf16.mxu0 %v1619
    %2055 = vmatpush1.bf16.msra.mxu0 %v1618
    %2056 = vmatprep.subr.bf16.mxu0 %v1624
    %2057 = vmatpush1.bf16.msra.mxu0 %v1623
    %2058 = vmatprep.subr.bf16.mxu0 %v1912
    %2059 = vmatpush1.bf16.msra.mxu0 %v1909
    %2060 = vmatprep.subr.bf16.mxu0 0
    %2061 = vmatpush1.bf16.msra.mxu0 0
    %2062 = vmatprep.subr.bf16.mxu0 0
    %2063 = vmatpush1.bf16.msra.mxu0 0
    %2064 = vmatprep.subr.bf16.mxu0 0
    %2065 = vmatpush1.bf16.msra.mxu0 0
    %2066 = vmatprep.subr.bf16.mxu0 0
    %2067 = vmatpush1.bf16.msra.mxu0 0
    %2068 = vmatprep.subr.bf16.mxu0 0
    %2069 = vmatpush1.bf16.msra.mxu0 0
    %2070 = vmatprep.subr.bf16.mxu0 0
    %2071 = vmatpush1.bf16.msra.mxu0 0
    %2072 = vmatprep.subr.bf16.mxu0 0
    %2073 = vmatpush1.bf16.msra.mxu0 0
    %2074 = vmatprep.subr.bf16.mxu0 0
    %2075 = vmatpush1.bf16.msra.mxu0 0
    %2076 = vmatprep.subr.bf16.mxu0 0
    %2077 = vmatpush1.bf16.msra.mxu0 0
    %2078 = vmatprep.mubr.bf16.mxu0 0
    %2079 = vmatmul.mubr.bf16.gmra.mrb[0].mxu0 %v1905
    %v2080 = vpop.f32.mrb[0].mxu0
    %v2081 = vadd.f32 %v2040, %v2080
    %v2082 = vpop.f32.mrb[0].mxu0
    %v2083 = vadd.f32 %v2042, %v2082
    %v2084 = vpop.f32.mrb[0].mxu0
    %v2085 = vpop.f32.mrb[0].mxu0
    %2086 = vdwg.mxu0
    %2087 = vmatprep.subr.bf16.mxu0 %v1361
    %2088 = vmatpush1.bf16.msra.mxu0 %v1360
    %2089 = vmatprep.subr.bf16.mxu0 %v1366
    %2090 = vmatpush1.bf16.msra.mxu0 %v1365
    %2091 = vmatprep.subr.bf16.mxu0 %v1371
    %2092 = vmatpush1.bf16.msra.mxu0 %v1370
    %2093 = vmatprep.subr.bf16.mxu0 %v1376
    %2094 = vmatpush1.bf16.msra.mxu0 %v1375
    %2095 = vmatprep.subr.bf16.mxu0 %v1381
    %2096 = vmatpush1.bf16.msra.mxu0 %v1380
    %2097 = vmatprep.subr.bf16.mxu0 %v1386
    %2098 = vmatpush1.bf16.msra.mxu0 %v1385
    %2099 = vmatprep.subr.bf16.mxu0 %v1391
    %2100 = vmatpush1.bf16.msra.mxu0 %v1390
    %2101 = vmatprep.subr.bf16.mxu0 %v1396
    %2102 = vmatpush1.bf16.msra.mxu0 %v1395
    %2103 = vmatprep.subr.bf16.mxu0 %v1401
    %2104 = vmatpush1.bf16.msra.mxu0 %v1400
    %2105 = vmatprep.subr.bf16.mxu0 %v1406
    %2106 = vmatpush1.bf16.msra.mxu0 %v1405
    %2107 = vmatprep.subr.bf16.mxu0 %v1411
    %2108 = vmatpush1.bf16.msra.mxu0 %v1410
    %2109 = vmatprep.subr.bf16.mxu0 %v1416
    %2110 = vmatpush1.bf16.msra.mxu0 %v1415
    %2111 = vmatprep.subr.bf16.mxu0 %v1421
    %2112 = vmatpush1.bf16.msra.mxu0 %v1420
    %2113 = vmatprep.subr.bf16.mxu0 %v1426
    %2114 = vmatpush1.bf16.msra.mxu0 %v1425
    %2115 = vmatprep.subr.bf16.mxu0 %v1431
    %2116 = vmatpush1.bf16.msra.mxu0 %v1430
    %2117 = vmatprep.subr.bf16.mxu0 %v1436
    %2118 = vmatpush1.bf16.msra.mxu0 %v1435
    %2119 = vmatprep.mubr.bf16.mxu0 %v474
    %2120 = vmatmul.mubr.bf16.gmra.mrb[0].mxu0 %v473
    %v2121 = vpop.f32.mrb[0].mxu0
    %v2122 = vadd.f32 %v448, %v2121
    %v2123 = vpop.f32.mrb[0].mxu0
    %v2124 = vadd.f32 %v452, %v2123
    %v2125 = vpop.f32.mrb[0].mxu0
    %v2126 = vpop.f32.mrb[0].mxu0
    %2127 = vdwg.mxu0
    %2128 = vmatprep.subr.bf16.mxu0 %v1441
    %2129 = vmatpush1.bf16.msra.mxu0 %v1440
    %2130 = vmatprep.subr.bf16.mxu0 %v1446
    %2131 = vmatpush1.bf16.msra.mxu0 %v1445
    %2132 = vmatprep.subr.bf16.mxu0 %v1451
    %2133 = vmatpush1.bf16.msra.mxu0 %v1450
    %2134 = vmatprep.subr.bf16.mxu0 %v1456
    %2135 = vmatpush1.bf16.msra.mxu0 %v1455
    %2136 = vmatprep.subr.bf16.mxu0 %v1461
    %2137 = vmatpush1.bf16.msra.mxu0 %v1460
    %2138 = vmatprep.subr.bf16.mxu0 %v1466
    %2139 = vmatpush1.bf16.msra.mxu0 %v1465
    %2140 = vmatprep.subr.bf16.mxu0 %v1471
    %2141 = vmatpush1.bf16.msra.mxu0 %v1470
    %2142 = vmatprep.subr.bf16.mxu0 %v1476
    %2143 = vmatpush1.bf16.msra.mxu0 %v1475
    %2144 = vmatprep.subr.bf16.mxu0 %v1481
    %2145 = vmatpush1.bf16.msra.mxu0 %v1480
    %2146 = vmatprep.subr.bf16.mxu0 %v1486
    %2147 = vmatpush1.bf16.msra.mxu0 %v1485
    %2148 = vmatprep.subr.bf16.mxu0 %v1491
    %2149 = vmatpush1.bf16.msra.mxu0 %v1490
    %2150 = vmatprep.subr.bf16.mxu0 %v1496
    %2151 = vmatpush1.bf16.msra.mxu0 %v1495
    %2152 = vmatprep.subr.bf16.mxu0 %v1501
    %2153 = vmatpush1.bf16.msra.mxu0 %v1500
    %2154 = vmatprep.subr.bf16.mxu0 %v1506
    %2155 = vmatpush1.bf16.msra.mxu0 %v1505
    %2156 = vmatprep.subr.bf16.mxu0 %v1511
    %2157 = vmatpush1.bf16.msra.mxu0 %v1510
    %2158 = vmatprep.subr.bf16.mxu0 %v1516
    %2159 = vmatpush1.bf16.msra.mxu0 %v1515
    %2160 = vmatprep.mubr.bf16.mxu0 %v476
    %2161 = vmatmul.mubr.bf16.gmra.mrb[0].mxu0 %v475
    %v2162 = vpop.f32.mrb[0].mxu0
    %v2163 = vadd.f32 %v2122, %v2162
    %v2164 = vpop.f32.mrb[0].mxu0
    %v2165 = vadd.f32 %v2124, %v2164
    %v2166 = vpop.f32.mrb[0].mxu0
    %v2167 = vpop.f32.mrb[0].mxu0
    %2168 = vdwg.mxu0
    %2169 = vmatprep.subr.bf16.mxu0 %v1521
    %2170 = vmatpush1.bf16.msra.mxu0 %v1520
    %2171 = vmatprep.subr.bf16.mxu0 %v1526
    %2172 = vmatpush1.bf16.msra.mxu0 %v1525
    %2173 = vmatprep.subr.bf16.mxu0 %v1531
    %2174 = vmatpush1.bf16.msra.mxu0 %v1530
    %2175 = vmatprep.subr.bf16.mxu0 %v1536
    %2176 = vmatpush1.bf16.msra.mxu0 %v1535
    %2177 = vmatprep.subr.bf16.mxu0 %v1541
    %2178 = vmatpush1.bf16.msra.mxu0 %v1540
    %2179 = vmatprep.subr.bf16.mxu0 %v1546
    %2180 = vmatpush1.bf16.msra.mxu0 %v1545
    %2181 = vmatprep.subr.bf16.mxu0 %v1551
    %2182 = vmatpush1.bf16.msra.mxu0 %v1550
    %2183 = vmatprep.subr.bf16.mxu0 %v1556
    %2184 = vmatpush1.bf16.msra.mxu0 %v1555
    %2185 = vmatprep.subr.bf16.mxu0 %v1561
    %2186 = vmatpush1.bf16.msra.mxu0 %v1560
    %2187 = vmatprep.subr.bf16.mxu0 %v1566
    %2188 = vmatpush1.bf16.msra.mxu0 %v1565
    %2189 = vmatprep.subr.bf16.mxu0 %v1571
    %2190 = vmatpush1.bf16.msra.mxu0 %v1570
    %2191 = vmatprep.subr.bf16.mxu0 %v1576
    %2192 = vmatpush1.bf16.msra.mxu0 %v1575
    %2193 = vmatprep.subr.bf16.mxu0 %v1581
    %2194 = vmatpush1.bf16.msra.mxu0 %v1580
    %2195 = vmatprep.subr.bf16.mxu0 %v1586
    %2196 = vmatpush1.bf16.msra.mxu0 %v1585
    %2197 = vmatprep.subr.bf16.mxu0 %v1591
    %2198 = vmatpush1.bf16.msra.mxu0 %v1590
    %2199 = vmatprep.subr.bf16.mxu0 %v1596
    %2200 = vmatpush1.bf16.msra.mxu0 %v1595
    %2201 = vmatprep.mubr.bf16.mxu0 %v478
    %2202 = vmatmul.mubr.bf16.gmra.mrb[0].mxu0 %v477
    %v2203 = vpop.f32.mrb[0].mxu0
    %v2204 = vadd.f32 %v2163, %v2203
    %v2205 = vpop.f32.mrb[0].mxu0
    %v2206 = vadd.f32 %v2165, %v2205
    %v2207 = vpop.f32.mrb[0].mxu0
    %v2208 = vpop.f32.mrb[0].mxu0
    %2209 = vdwg.mxu0
    %2210 = vmatprep.subr.bf16.mxu0 %v1601
    %2211 = vmatpush1.bf16.msra.mxu0 %v1600
    %2212 = vmatprep.subr.bf16.mxu0 %v1606
    %2213 = vmatpush1.bf16.msra.mxu0 %v1605
    %2214 = vmatprep.subr.bf16.mxu0 %v1611
    %2215 = vmatpush1.bf16.msra.mxu0 %v1610
    %2216 = vmatprep.subr.bf16.mxu0 %v1616
    %2217 = vmatpush1.bf16.msra.mxu0 %v1615
    %2218 = vmatprep.subr.bf16.mxu0 %v1621
    %2219 = vmatpush1.bf16.msra.mxu0 %v1620
    %2220 = vmatprep.subr.bf16.mxu0 %v1626
    %2221 = vmatpush1.bf16.msra.mxu0 %v1625
    %2222 = vmatprep.subr.bf16.mxu0 %v1918
    %2223 = vmatpush1.bf16.msra.mxu0 %v1915
    %2224 = vmatprep.subr.bf16.mxu0 0
    %2225 = vmatpush1.bf16.msra.mxu0 0
    %2226 = vmatprep.subr.bf16.mxu0 0
    %2227 = vmatpush1.bf16.msra.mxu0 0
    %2228 = vmatprep.subr.bf16.mxu0 0
    %2229 = vmatpush1.bf16.msra.mxu0 0
    %2230 = vmatprep.subr.bf16.mxu0 0
    %2231 = vmatpush1.bf16.msra.mxu0 0
    %2232 = vmatprep.subr.bf16.mxu0 0
    %2233 = vmatpush1.bf16.msra.mxu0 0
    %2234 = vmatprep.subr.bf16.mxu0 0
    %2235 = vmatpush1.bf16.msra.mxu0 0
    %2236 = vmatprep.subr.bf16.mxu0 0
    %2237 = vmatpush1.bf16.msra.mxu0 0
    %2238 = vmatprep.subr.bf16.mxu0 0
    %2239 = vmatpush1.bf16.msra.mxu0 0
    %2240 = vmatprep.subr.bf16.mxu0 0
    %2241 = vmatpush1.bf16.msra.mxu0 0
    %2242 = vmatprep.mubr.bf16.mxu0 0
    %2243 = vmatmul.mubr.bf16.gmra.mrb[0].mxu0 %v1905
    %v2244 = vpop.f32.mrb[0].mxu0
    %v2245 = vadd.f32 %v2204, %v2244
    %v2246 = vpop.f32.mrb[0].mxu0
    %v2247 = vadd.f32 %v2206, %v2246
    %v2248 = vpop.f32.mrb[0].mxu0
    %v2249 = vpop.f32.mrb[0].mxu0
    %2250 = vdwg.mxu0
    %2251 = vmatprep.subr.bf16.mxu0 0
    %2252 = vmatpush1.bf16.msra.mxu0 %v1362
    %2253 = vmatprep.subr.bf16.mxu0 0
    %2254 = vmatpush1.bf16.msra.mxu0 %v1367
    %2255 = vmatprep.subr.bf16.mxu0 0
    %2256 = vmatpush1.bf16.msra.mxu0 %v1372
    %2257 = vmatprep.subr.bf16.mxu0 0
    %2258 = vmatpush1.bf16.msra.mxu0 %v1377
    %2259 = vmatprep.subr.bf16.mxu0 0
    %2260 = vmatpush1.bf16.msra.mxu0 %v1382
    %2261 = vmatprep.subr.bf16.mxu0 0
    %2262 = vmatpush1.bf16.msra.mxu0 %v1387
    %2263 = vmatprep.subr.bf16.mxu0 0
    %2264 = vmatpush1.bf16.msra.mxu0 %v1392
    %2265 = vmatprep.subr.bf16.mxu0 0
    %2266 = vmatpush1.bf16.msra.mxu0 %v1397
    %2267 = vmatprep.subr.bf16.mxu0 0
    %2268 = vmatpush1.bf16.msra.mxu0 %v1402
    %2269 = vmatprep.subr.bf16.mxu0 0
    %2270 = vmatpush1.bf16.msra.mxu0 %v1407
    %2271 = vmatprep.subr.bf16.mxu0 0
    %2272 = vmatpush1.bf16.msra.mxu0 %v1412
    %2273 = vmatprep.subr.bf16.mxu0 0
    %2274 = vmatpush1.bf16.msra.mxu0 %v1417
    %2275 = vmatprep.subr.bf16.mxu0 0
    %2276 = vmatpush1.bf16.msra.mxu0 %v1422
    %2277 = vmatprep.subr.bf16.mxu0 0
    %2278 = vmatpush1.bf16.msra.mxu0 %v1427
    %2279 = vmatprep.subr.bf16.mxu0 0
    %2280 = vmatpush1.bf16.msra.mxu0 %v1432
    %2281 = vmatprep.subr.bf16.mxu0 0
    %2282 = vmatpush1.bf16.msra.mxu0 %v1437
    %2283 = vmatprep.mubr.bf16.mxu0 %v474
    %2284 = vmatmul.mubr.bf16.gmra.mrb[0].mxu0 %v473
    %v2285 = vpop.f32.mrb[0].mxu0
    %v2286 = vadd.f32 %v456, %v2285
    %v2287 = vpop.f32.mrb[0].mxu0
    %v2288 = vpop.f32.mrb[0].mxu0
    %v2289 = vpop.f32.mrb[0].mxu0
    %2290 = vdwg.mxu0
    %2291 = vmatprep.subr.bf16.mxu0 0
    %2292 = vmatpush1.bf16.msra.mxu0 %v1442
    %2293 = vmatprep.subr.bf16.mxu0 0
    %2294 = vmatpush1.bf16.msra.mxu0 %v1447
    %2295 = vmatprep.subr.bf16.mxu0 0
    %2296 = vmatpush1.bf16.msra.mxu0 %v1452
    %2297 = vmatprep.subr.bf16.mxu0 0
    %2298 = vmatpush1.bf16.msra.mxu0 %v1457
    %2299 = vmatprep.subr.bf16.mxu0 0
    %2300 = vmatpush1.bf16.msra.mxu0 %v1462
    %2301 = vmatprep.subr.bf16.mxu0 0
    %2302 = vmatpush1.bf16.msra.mxu0 %v1467
    %2303 = vmatprep.subr.bf16.mxu0 0
    %2304 = vmatpush1.bf16.msra.mxu0 %v1472
    %2305 = vmatprep.subr.bf16.mxu0 0
    %2306 = vmatpush1.bf16.msra.mxu0 %v1477
    %2307 = vmatprep.subr.bf16.mxu0 0
    %2308 = vmatpush1.bf16.msra.mxu0 %v1482
    %2309 = vmatprep.subr.bf16.mxu0 0
    %2310 = vmatpush1.bf16.msra.mxu0 %v1487
    %2311 = vmatprep.subr.bf16.mxu0 0
    %2312 = vmatpush1.bf16.msra.mxu0 %v1492
    %2313 = vmatprep.subr.bf16.mxu0 0
    %2314 = vmatpush1.bf16.msra.mxu0 %v1497
    %2315 = vmatprep.subr.bf16.mxu0 0
    %2316 = vmatpush1.bf16.msra.mxu0 %v1502
    %2317 = vmatprep.subr.bf16.mxu0 0
    %2318 = vmatpush1.bf16.msra.mxu0 %v1507
    %2319 = vmatprep.subr.bf16.mxu0 0
    %2320 = vmatpush1.bf16.msra.mxu0 %v1512
    %2321 = vmatprep.subr.bf16.mxu0 0
    %2322 = vmatpush1.bf16.msra.mxu0 %v1517
    %2323 = vmatprep.mubr.bf16.mxu0 %v476
    %2324 = vmatmul.mubr.bf16.gmra.mrb[0].mxu0 %v475
    %v2325 = vpop.f32.mrb[0].mxu0
    %v2326 = vadd.f32 %v2286, %v2325
    %v2327 = vpop.f32.mrb[0].mxu0
    %v2328 = vpop.f32.mrb[0].mxu0
    %v2329 = vpop.f32.mrb[0].mxu0
    %2330 = vdwg.mxu0
    %2331 = vmatprep.subr.bf16.mxu0 0
    %2332 = vmatpush1.bf16.msra.mxu0 %v1522
    %2333 = vmatprep.subr.bf16.mxu0 0
    %2334 = vmatpush1.bf16.msra.mxu0 %v1527
    %2335 = vmatprep.subr.bf16.mxu0 0
    %2336 = vmatpush1.bf16.msra.mxu0 %v1532
    %2337 = vmatprep.subr.bf16.mxu0 0
    %2338 = vmatpush1.bf16.msra.mxu0 %v1537
    %2339 = vmatprep.subr.bf16.mxu0 0
    %2340 = vmatpush1.bf16.msra.mxu0 %v1542
    %2341 = vmatprep.subr.bf16.mxu0 0
    %2342 = vmatpush1.bf16.msra.mxu0 %v1547
    %2343 = vmatprep.subr.bf16.mxu0 0
    %2344 = vmatpush1.bf16.msra.mxu0 %v1552
    %2345 = vmatprep.subr.bf16.mxu0 0
    %2346 = vmatpush1.bf16.msra.mxu0 %v1557
    %2347 = vmatprep.subr.bf16.mxu0 0
    %2348 = vmatpush1.bf16.msra.mxu0 %v1562
    %2349 = vmatprep.subr.bf16.mxu0 0
    %2350 = vmatpush1.bf16.msra.mxu0 %v1567
    %2351 = vmatprep.subr.bf16.mxu0 0
    %2352 = vmatpush1.bf16.msra.mxu0 %v1572
    %2353 = vmatprep.subr.bf16.mxu0 0
    %2354 = vmatpush1.bf16.msra.mxu0 %v1577
    %2355 = vmatprep.subr.bf16.mxu0 0
    %2356 = vmatpush1.bf16.msra.mxu0 %v1582
    %2357 = vmatprep.subr.bf16.mxu0 0
    %2358 = vmatpush1.bf16.msra.mxu0 %v1587
    %2359 = vmatprep.subr.bf16.mxu0 0
    %2360 = vmatpush1.bf16.msra.mxu0 %v1592
    %2361 = vmatprep.subr.bf16.mxu0 0
    %2362 = vmatpush1.bf16.msra.mxu0 %v1597
    %2363 = vmatprep.mubr.bf16.mxu0 %v478
    %2364 = vmatmul.mubr.bf16.gmra.mrb[0].mxu0 %v477
    %v2365 = vpop.f32.mrb[0].mxu0
    %v2366 = vadd.f32 %v2326, %v2365
    %v2367 = vpop.f32.mrb[0].mxu0
    %v2368 = vpop.f32.mrb[0].mxu0
    %v2369 = vpop.f32.mrb[0].mxu0
    %2370 = vdwg.mxu0
    %2371 = vmatprep.subr.bf16.mxu0 0
    %2372 = vmatpush1.bf16.msra.mxu0 %v1602
    %2373 = vmatprep.subr.bf16.mxu0 0
    %2374 = vmatpush1.bf16.msra.mxu0 %v1607
    %2375 = vmatprep.subr.bf16.mxu0 0
    %2376 = vmatpush1.bf16.msra.mxu0 %v1612
    %2377 = vmatprep.subr.bf16.mxu0 0
    %2378 = vmatpush1.bf16.msra.mxu0 %v1617
    %2379 = vmatprep.subr.bf16.mxu0 0
    %2380 = vmatpush1.bf16.msra.mxu0 %v1622
    %2381 = vmatprep.subr.bf16.mxu0 0
    %2382 = vmatpush1.bf16.msra.mxu0 %v1627
    %2383 = vmatprep.subr.bf16.mxu0 0
    %2384 = vmatpush1.bf16.msra.mxu0 %v1921
    %2385 = vmatprep.subr.bf16.mxu0 0
    %2386 = vmatpush1.bf16.msra.mxu0 0
    %2387 = vmatprep.subr.bf16.mxu0 0
    %2388 = vmatpush1.bf16.msra.mxu0 0
    %2389 = vmatprep.subr.bf16.mxu0 0
    %2390 = vmatpush1.bf16.msra.mxu0 0
    %2391 = vmatprep.subr.bf16.mxu0 0
    %2392 = vmatpush1.bf16.msra.mxu0 0
    %2393 = vmatprep.subr.bf16.mxu0 0
    %2394 = vmatpush1.bf16.msra.mxu0 0
    %2395 = vmatprep.subr.bf16.mxu0 0
    %2396 = vmatpush1.bf16.msra.mxu0 0
    %2397 = vmatprep.subr.bf16.mxu0 0
    %2398 = vmatpush1.bf16.msra.mxu0 0
    %2399 = vmatprep.subr.bf16.mxu0 0
    %2400 = vmatpush1.bf16.msra.mxu0 0
    %2401 = vmatprep.subr.bf16.mxu0 0
    %2402 = vmatpush1.bf16.msra.mxu0 0
    %2403 = vmatprep.mubr.bf16.mxu0 0
    %2404 = vmatmul.mubr.bf16.gmra.mrb[0].mxu0 %v1905
    %v2405 = vpop.f32.mrb[0].mxu0
    %v2406 = vadd.f32 %v2366, %v2405
    %v2407 = vpop.f32.mrb[0].mxu0
    %v2408 = vpop.f32.mrb[0].mxu0
    %v2409 = vpop.f32.mrb[0].mxu0
    %2410 = vdwg.mxu0
    %v2411 = vmax.f32 %v2081, 0.0
    %v2412 = vmax.f32 %v2083, 0.0
    %v2413 = vmax.f32 %v2245, 0.0
    %v2414 = vmax.f32 %v2247, 0.0
    %v2415 = vmax.f32 %v2406, 0.0
    %v2416 = vpack.c.bf16 %v2411, %v2411
    %v2417 = vpack.c.bf16 %v2412, %v2412
    %v2418 = vpack.c.bf16 %v2413, %v2413
    %v2419 = vpack.c.bf16 %v2414, %v2414
    %v2420 = vpack.c.bf16 %v2415, %v2415
    %v2421 = vld [vmem:[#allocation7] sm:$0xff]
    %v2422 = vld [vmem:[#allocation7 + $0x8] sm:$0xf]
    %v2423 = vld [vmem:[#allocation7 + $0xc] sm:$0xff]
    %v2424 = vld [vmem:[#allocation7 + $0x14] sm:$0xf]
    %v2425 = vld [vmem:[#allocation7 + $0x18] sm:$0xff]
    %v2426 = vld [vmem:[#allocation7 + $0x20] sm:$0xf]
    %v2427 = vld [vmem:[#allocation7 + $0x24] sm:$0xff]
    %v2428 = vld [vmem:[#allocation7 + $0x2c] sm:$0xf]
    %v2429 = vld [vmem:[#allocation7 + $0x30] sm:$0xff]
    %v2430 = vld [vmem:[#allocation7 + $0x38] sm:$0xf]
    %v2431 = vld [vmem:[#allocation7 + $0x3c] sm:$0xff]
    %v2432 = vld [vmem:[#allocation7 + $0x44] sm:$0xf]
    %v2433 = vld [vmem:[#allocation7 + $0x48] sm:$0xff]
    %v2434 = vld [vmem:[#allocation7 + $0x50] sm:$0xf]
    %v2435 = vld [vmem:[#allocation7 + $0x54] sm:$0xff]
    %v2436 = vld [vmem:[#allocation7 + $0x5c] sm:$0xf]
    %v2437 = vld [vmem:[#allocation7 + $0x60] sm:$0xff]
    %v2438 = vld [vmem:[#allocation7 + $0x68] sm:$0xf]
    %v2439 = vld [vmem:[#allocation7 + $0x6c] sm:$0xff]
    %v2440 = vld [vmem:[#allocation7 + $0x74] sm:$0xf]
    %v2441 = vld [vmem:[#allocation7 + $0x78] sm:$0xff]
    %v2442 = vld [vmem:[#allocation7 + $0x80] sm:$0xf]
    %v2443 = vld [vmem:[#allocation7 + $0x84] sm:$0xff]
    %v2444 = vld [vmem:[#allocation7 + $0x8c] sm:$0xf]
    %v2445 = vld [vmem:[#allocation7 + $0x90] sm:$0xff]
    %v2446 = vld [vmem:[#allocation7 + $0x98] sm:$0xf]
    %v2447 = vld [vmem:[#allocation7 + $0x9c] sm:$0xff]
    %v2448 = vld [vmem:[#allocation7 + $0xa4] sm:$0xf]
    %v2449 = vld [vmem:[#allocation7 + $0xa8] sm:$0xff]
    %v2450 = vld [vmem:[#allocation7 + $0xb0] sm:$0xf]
    %v2451 = vld [vmem:[#allocation7 + $0xb4] sm:$0xff]
    %v2452 = vld [vmem:[#allocation7 + $0xbc] sm:$0xf]
    %v2453 = vld [vmem:[#allocation7 + $0xc0] sm:$0xff]
    %v2454 = vld [vmem:[#allocation7 + $0xc8] sm:$0xf]
    %v2455 = vld [vmem:[#allocation7 + $0xcc] sm:$0xff]
    %v2456 = vld [vmem:[#allocation7 + $0xd4] sm:$0xf]
    %v2457 = vld [vmem:[#allocation7 + $0xd8] sm:$0xff]
    %v2458 = vld [vmem:[#allocation7 + $0xe0] sm:$0xf]
    %v2459 = vld [vmem:[#allocation7 + $0xe4] sm:$0xff]
    %v2460 = vld [vmem:[#allocation7 + $0xec] sm:$0xf]
    %v2461 = vld [vmem:[#allocation7 + $0xf0] sm:$0xff]
    %v2462 = vld [vmem:[#allocation7 + $0xf8] sm:$0xf]
    %v2463 = vld [vmem:[#allocation7 + $0xfc] sm:$0xff]
    %v2464 = vld [vmem:[#allocation7 + $0x104] sm:$0xf]
    %v2465 = vld [vmem:[#allocation7 + $0x108] sm:$0xff]
    %v2466 = vld [vmem:[#allocation7 + $0x110] sm:$0xf]
    %v2467 = vld [vmem:[#allocation7 + $0x114] sm:$0xff]
    %v2468 = vld [vmem:[#allocation7 + $0x11c] sm:$0xf]
    %v2469 = vld [vmem:[#allocation7 + $0x120] sm:$0xff]
    %v2470 = vld [vmem:[#allocation7 + $0x128] sm:$0xf]
    %v2471 = vld [vmem:[#allocation7 + $0x12c] sm:$0xff]
    %v2472 = vld [vmem:[#allocation7 + $0x134] sm:$0xf]
    %v2473 = vld [vmem:[#allocation7 + $0x138] sm:$0xff]
    %v2474 = vld [vmem:[#allocation7 + $0x140] sm:$0xf]
    %v2475 = vld [vmem:[#allocation7 + $0x144] sm:$0xff]
    %v2476 = vld [vmem:[#allocation7 + $0x14c] sm:$0xf]
    %v2477 = vld [vmem:[#allocation7 + $0x150] sm:$0xff]
    %v2478 = vld [vmem:[#allocation7 + $0x158] sm:$0xf]
    %v2479 = vld [vmem:[#allocation7 + $0x15c] sm:$0xff]
    %v2480 = vld [vmem:[#allocation7 + $0x164] sm:$0xf]
    %v2481 = vld [vmem:[#allocation7 + $0x168] sm:$0xff]
    %v2482 = vld [vmem:[#allocation7 + $0x170] sm:$0xf]
    %v2483 = vld [vmem:[#allocation7 + $0x174] sm:$0xff]
    %v2484 = vld [vmem:[#allocation7 + $0x17c] sm:$0xf]
    %v2485 = vld [vmem:[#allocation7 + $0x180] sm:$0xff]
    %v2486 = vld [vmem:[#allocation7 + $0x188] sm:$0xf]
    %v2487 = vld [vmem:[#allocation7 + $0x18c] sm:$0xff]
    %v2488 = vld [vmem:[#allocation7 + $0x194] sm:$0xf]
    %v2489 = vld [vmem:[#allocation7 + $0x198] sm:$0xff]
    %v2490 = vld [vmem:[#allocation7 + $0x1a0] sm:$0xf]
    %v2491 = vld [vmem:[#allocation7 + $0x1a4] sm:$0xff]
    %v2492 = vld [vmem:[#allocation7 + $0x1ac] sm:$0xf]
    %v2493 = vld [vmem:[#allocation7 + $0x1b0] sm:$0xff]
    %v2494 = vld [vmem:[#allocation7 + $0x1b8] sm:$0xf]
    %v2495 = vld [vmem:[#allocation7 + $0x1bc] sm:$0xff]
    %v2496 = vld [vmem:[#allocation7 + $0x1c4] sm:$0xf]
    %v2497 = vld [vmem:[#allocation7 + $0x1c8] sm:$0xff]
    %v2498 = vld [vmem:[#allocation7 + $0x1d0] sm:$0xf]
    %v2499 = vld [vmem:[#allocation7 + $0x1d4] sm:$0xff]
    %v2500 = vld [vmem:[#allocation7 + $0x1dc] sm:$0xf]
    %v2501 = vld [vmem:[#allocation7 + $0x1e0] sm:$0xff]
    %v2502 = vld [vmem:[#allocation7 + $0x1e8] sm:$0xf]
    %v2503 = vld [vmem:[#allocation7 + $0x1ec] sm:$0xff]
    %v2504 = vld [vmem:[#allocation7 + $0x1f4] sm:$0xf]
    %v2505 = vld [vmem:[#allocation7 + $0x1f8] sm:$0xff]
    %v2506 = vld [vmem:[#allocation7 + $0x200] sm:$0xf]
    %v2507 = vld [vmem:[#allocation7 + $0x204] sm:$0xff]
    %v2508 = vld [vmem:[#allocation7 + $0x20c] sm:$0xf]
    %v2509 = vld [vmem:[#allocation7 + $0x210] sm:$0xff]
    %v2510 = vld [vmem:[#allocation7 + $0x218] sm:$0xf]
    %v2511 = vld [vmem:[#allocation7 + $0x21c] sm:$0xff]
    %v2512 = vld [vmem:[#allocation7 + $0x224] sm:$0xf]
    %v2513 = vld [vmem:[#allocation7 + $0x228] sm:$0xff]
    %v2514 = vld [vmem:[#allocation7 + $0x230] sm:$0xf]
    %v2515 = vld [vmem:[#allocation7 + $0x234] sm:$0xff]
    %v2516 = vld [vmem:[#allocation7 + $0x23c] sm:$0xf]
    %v2517 = vld [vmem:[#allocation7 + $0x240] sm:$0xff]
    %v2518 = vld [vmem:[#allocation7 + $0x248] sm:$0xf]
    %v2519 = vld [vmem:[#allocation7 + $0x24c] sm:$0xff]
    %v2520 = vld [vmem:[#allocation7 + $0x254] sm:$0xf]
    %v2521 = vld [vmem:[#allocation7 + $0x258] sm:$0xff]
    %v2522 = vld [vmem:[#allocation7 + $0x260] sm:$0xf]
    %v2523 = vld [vmem:[#allocation7 + $0x264] sm:$0xff]
    %v2524 = vld [vmem:[#allocation7 + $0x26c] sm:$0xf]
    %v2525 = vld [vmem:[#allocation7 + $0x270] sm:$0xff]
    %v2526 = vld [vmem:[#allocation7 + $0x278] sm:$0xf]
    %v2527 = vld [vmem:[#allocation7 + $0x27c] sm:$0xff]
    %v2528 = vld [vmem:[#allocation7 + $0x284] sm:$0xf]
    %v2529 = vld [vmem:[#allocation7 + $0x288] sm:$0xff]
    %v2530 = vld [vmem:[#allocation7 + $0x290] sm:$0xf]
    %v2531 = vld [vmem:[#allocation7 + $0x294] sm:$0xff]
    %v2532 = vld [vmem:[#allocation7 + $0x29c] sm:$0xf]
    %v2533 = vld [vmem:[#allocation7 + $0x2a0] sm:$0xff]
    %v2534 = vld [vmem:[#allocation7 + $0x2a8] sm:$0xf]
    %v2535 = vld [vmem:[#allocation7 + $0x2ac] sm:$0xff]
    %v2536 = vld [vmem:[#allocation7 + $0x2b4] sm:$0xf]
    %v2537 = vld [vmem:[#allocation7 + $0x2b8] sm:$0xff]
    %v2538 = vld [vmem:[#allocation7 + $0x2c0] sm:$0xf]
    %v2539 = vld [vmem:[#allocation7 + $0x2c4] sm:$0xff]
    %v2540 = vld [vmem:[#allocation7 + $0x2cc] sm:$0xf]
    %v2541 = vld [vmem:[#allocation7 + $0x2d0] sm:$0xff]
    %v2542 = vld [vmem:[#allocation7 + $0x2d8] sm:$0xf]
    %v2543 = vld [vmem:[#allocation7 + $0x2dc] sm:$0xff]
    %v2544 = vld [vmem:[#allocation7 + $0x2e4] sm:$0xf]
    %v2545 = vld [vmem:[#allocation7 + $0x2e8] sm:$0xff]
    %v2546 = vld [vmem:[#allocation7 + $0x2f0] sm:$0xf]
    %v2547 = vld [vmem:[#allocation7 + $0x2f4] sm:$0xff]
    %v2548 = vld [vmem:[#allocation7 + $0x2fc] sm:$0xf]
    %v2549 = vld [vmem:[#allocation7 + $0x300] sm:$0xff]
    %v2550 = vld [vmem:[#allocation7 + $0x308] sm:$0xf]
    %v2551 = vld [vmem:[#allocation7 + $0x30c] sm:$0xff]
    %v2552 = vld [vmem:[#allocation7 + $0x314] sm:$0xf]
    %v2553 = vld [vmem:[#allocation7 + $0x318] sm:$0xff]
    %v2554 = vld [vmem:[#allocation7 + $0x320] sm:$0xf]
    %v2555 = vld [vmem:[#allocation7 + $0x324] sm:$0xff]
    %v2556 = vld [vmem:[#allocation7 + $0x32c] sm:$0xf]
    %v2557 = vld [vmem:[#allocation7 + $0x330] sm:$0xff]
    %v2558 = vld [vmem:[#allocation7 + $0x338] sm:$0xf]
    %v2559 = vld [vmem:[#allocation7 + $0x33c] sm:$0xff]
    %v2560 = vld [vmem:[#allocation7 + $0x344] sm:$0xf]
    %v2561 = vld [vmem:[#allocation7 + $0x348] sm:$0xff]
    %v2562 = vld [vmem:[#allocation7 + $0x350] sm:$0xf]
    %v2563 = vld [vmem:[#allocation7 + $0x354] sm:$0xff]
    %v2564 = vld [vmem:[#allocation7 + $0x35c] sm:$0xf]
    %v2565 = vld [vmem:[#allocation7 + $0x360] sm:$0xff]
    %v2566 = vld [vmem:[#allocation7 + $0x368] sm:$0xf]
    %v2567 = vld [vmem:[#allocation7 + $0x36c] sm:$0xff]
    %v2568 = vld [vmem:[#allocation7 + $0x374] sm:$0xf]
    %v2569 = vld [vmem:[#allocation7 + $0x378] sm:$0xff]
    %v2570 = vld [vmem:[#allocation7 + $0x380] sm:$0xf]
    %v2571 = vld [vmem:[#allocation7 + $0x384] sm:$0xff]
    %v2572 = vld [vmem:[#allocation7 + $0x38c] sm:$0xf]
    %v2573 = vld [vmem:[#allocation7 + $0x390] sm:$0xff]
    %v2574 = vld [vmem:[#allocation7 + $0x398] sm:$0xf]
    %v2575 = vld [vmem:[#allocation7 + $0x39c] sm:$0xff]
    %v2576 = vld [vmem:[#allocation7 + $0x3a4] sm:$0xf]
    %v2577 = vld [vmem:[#allocation7 + $0x3a8] sm:$0xff]
    %v2578 = vld [vmem:[#allocation7 + $0x3b0] sm:$0xf]
    %v2579 = vld [vmem:[#allocation7 + $0x3b4] sm:$0xff]
    %v2580 = vld [vmem:[#allocation7 + $0x3bc] sm:$0xf]
    %v2581 = vld [vmem:[#allocation8] sm:$0x7]
    %v2583 = vlaneseq
    %v2584 = vshrl.u32 %v2583, 7
    %v2585 = vsub.s32 0, %v2584
    %v2586 = vrot.slane %v2581, %v2585
    %v2587 = vlaneseq
    %v2588 = vshrl.u32 %v2587, 7
    %v2589 = vsub.s32 1, %v2588
    %v2590 = vrot.slane %v2581, %v2589
    %v2591 = vlaneseq
    %v2592 = vshrl.u32 %v2591, 7
    %v2593 = vsub.s32 2, %v2592
    %v2594 = vrot.slane %v2581, %v2593
    %v2758 = vunpack.c.l.b16 %v2421
    %v2759 = vunpack.c.h.b16 %v2421
    %v2760 = vunpack.c.l.b16 %v2422
    %v2761 = vunpack.c.l.b16 %v2423
    %v2762 = vunpack.c.h.b16 %v2423
    %v2763 = vunpack.c.l.b16 %v2424
    %v2764 = vunpack.c.l.b16 %v2425
    %v2765 = vunpack.c.h.b16 %v2425
    %v2766 = vunpack.c.l.b16 %v2426
    %v2767 = vunpack.c.l.b16 %v2427
    %v2768 = vunpack.c.h.b16 %v2427
    %v2769 = vunpack.c.l.b16 %v2428
    %v2770 = vunpack.c.l.b16 %v2429
    %v2771 = vunpack.c.h.b16 %v2429
    %v2772 = vunpack.c.l.b16 %v2430
    %v2773 = vunpack.c.l.b16 %v2431
    %v2774 = vunpack.c.h.b16 %v2431
    %v2775 = vunpack.c.l.b16 %v2432
    %v2776 = vunpack.c.l.b16 %v2433
    %v2777 = vunpack.c.h.b16 %v2433
    %v2778 = vunpack.c.l.b16 %v2434
    %v2779 = vunpack.c.l.b16 %v2435
    %v2780 = vunpack.c.h.b16 %v2435
    %v2781 = vunpack.c.l.b16 %v2436
    %v2782 = vunpack.c.l.b16 %v2437
    %v2783 = vunpack.c.h.b16 %v2437
    %v2784 = vunpack.c.l.b16 %v2438
    %v2785 = vunpack.c.l.b16 %v2439
    %v2786 = vunpack.c.h.b16 %v2439
    %v2787 = vunpack.c.l.b16 %v2440
    %v2788 = vunpack.c.l.b16 %v2441
    %v2789 = vunpack.c.h.b16 %v2441
    %v2790 = vunpack.c.l.b16 %v2442
    %v2791 = vunpack.c.l.b16 %v2443
    %v2792 = vunpack.c.h.b16 %v2443
    %v2793 = vunpack.c.l.b16 %v2444
    %v2794 = vunpack.c.l.b16 %v2445
    %v2795 = vunpack.c.h.b16 %v2445
    %v2796 = vunpack.c.l.b16 %v2446
    %v2797 = vunpack.c.l.b16 %v2447
    %v2798 = vunpack.c.h.b16 %v2447
    %v2799 = vunpack.c.l.b16 %v2448
    %v2800 = vunpack.c.l.b16 %v2449
    %v2801 = vunpack.c.h.b16 %v2449
    %v2802 = vunpack.c.l.b16 %v2450
    %v2803 = vunpack.c.l.b16 %v2451
    %v2804 = vunpack.c.h.b16 %v2451
    %v2805 = vunpack.c.l.b16 %v2452
    %v2806 = vunpack.c.l.b16 %v2453
    %v2807 = vunpack.c.h.b16 %v2453
    %v2808 = vunpack.c.l.b16 %v2454
    %v2809 = vunpack.c.l.b16 %v2455
    %v2810 = vunpack.c.h.b16 %v2455
    %v2811 = vunpack.c.l.b16 %v2456
    %v2812 = vunpack.c.l.b16 %v2457
    %v2813 = vunpack.c.h.b16 %v2457
    %v2814 = vunpack.c.l.b16 %v2458
    %v2815 = vunpack.c.l.b16 %v2459
    %v2816 = vunpack.c.h.b16 %v2459
    %v2817 = vunpack.c.l.b16 %v2460
    %v2818 = vunpack.c.l.b16 %v2461
    %v2819 = vunpack.c.h.b16 %v2461
    %v2820 = vunpack.c.l.b16 %v2462
    %v2821 = vunpack.c.l.b16 %v2463
    %v2822 = vunpack.c.h.b16 %v2463
    %v2823 = vunpack.c.l.b16 %v2464
    %v2824 = vunpack.c.l.b16 %v2465
    %v2825 = vunpack.c.h.b16 %v2465
    %v2826 = vunpack.c.l.b16 %v2466
    %v2827 = vunpack.c.l.b16 %v2467
    %v2828 = vunpack.c.h.b16 %v2467
    %v2829 = vunpack.c.l.b16 %v2468
    %v2830 = vunpack.c.l.b16 %v2469
    %v2831 = vunpack.c.h.b16 %v2469
    %v2832 = vunpack.c.l.b16 %v2470
    %v2833 = vunpack.c.l.b16 %v2471
    %v2834 = vunpack.c.h.b16 %v2471
    %v2835 = vunpack.c.l.b16 %v2472
    %v2836 = vunpack.c.l.b16 %v2473
    %v2837 = vunpack.c.h.b16 %v2473
    %v2838 = vunpack.c.l.b16 %v2474
    %v2839 = vunpack.c.l.b16 %v2475
    %v2840 = vunpack.c.h.b16 %v2475
    %v2841 = vunpack.c.l.b16 %v2476
    %v2842 = vunpack.c.l.b16 %v2477
    %v2843 = vunpack.c.h.b16 %v2477
    %v2844 = vunpack.c.l.b16 %v2478
    %v2845 = vunpack.c.l.b16 %v2479
    %v2846 = vunpack.c.h.b16 %v2479
    %v2847 = vunpack.c.l.b16 %v2480
    %v2848 = vunpack.c.l.b16 %v2481
    %v2849 = vunpack.c.h.b16 %v2481
    %v2850 = vunpack.c.l.b16 %v2482
    %v2851 = vunpack.c.l.b16 %v2483
    %v2852 = vunpack.c.h.b16 %v2483
    %v2853 = vunpack.c.l.b16 %v2484
    %v2854 = vunpack.c.l.b16 %v2485
    %v2855 = vunpack.c.h.b16 %v2485
    %v2856 = vunpack.c.l.b16 %v2486
    %v2857 = vunpack.c.l.b16 %v2487
    %v2858 = vunpack.c.h.b16 %v2487
    %v2859 = vunpack.c.l.b16 %v2488
    %v2860 = vunpack.c.l.b16 %v2489
    %v2861 = vunpack.c.h.b16 %v2489
    %v2862 = vunpack.c.l.b16 %v2490
    %v2863 = vunpack.c.l.b16 %v2491
    %v2864 = vunpack.c.h.b16 %v2491
    %v2865 = vunpack.c.l.b16 %v2492
    %v2866 = vunpack.c.l.b16 %v2493
    %v2867 = vunpack.c.h.b16 %v2493
    %v2868 = vunpack.c.l.b16 %v2494
    %v2869 = vunpack.c.l.b16 %v2495
    %v2870 = vunpack.c.h.b16 %v2495
    %v2871 = vunpack.c.l.b16 %v2496
    %v2872 = vunpack.c.l.b16 %v2497
    %v2873 = vunpack.c.h.b16 %v2497
    %v2874 = vunpack.c.l.b16 %v2498
    %v2875 = vunpack.c.l.b16 %v2499
    %v2876 = vunpack.c.h.b16 %v2499
    %v2877 = vunpack.c.l.b16 %v2500
    %v2878 = vunpack.c.l.b16 %v2501
    %v2879 = vunpack.c.h.b16 %v2501
    %v2880 = vunpack.c.l.b16 %v2502
    %v2881 = vunpack.c.l.b16 %v2503
    %v2882 = vunpack.c.h.b16 %v2503
    %v2883 = vunpack.c.l.b16 %v2504
    %v2884 = vunpack.c.l.b16 %v2505
    %v2885 = vunpack.c.h.b16 %v2505
    %v2886 = vunpack.c.l.b16 %v2506
    %v2887 = vunpack.c.l.b16 %v2507
    %v2888 = vunpack.c.h.b16 %v2507
    %v2889 = vunpack.c.l.b16 %v2508
    %v2890 = vunpack.c.l.b16 %v2509
    %v2891 = vunpack.c.h.b16 %v2509
    %v2892 = vunpack.c.l.b16 %v2510
    %v2893 = vunpack.c.l.b16 %v2511
    %v2894 = vunpack.c.h.b16 %v2511
    %v2895 = vunpack.c.l.b16 %v2512
    %v2896 = vunpack.c.l.b16 %v2513
    %v2897 = vunpack.c.h.b16 %v2513
    %v2898 = vunpack.c.l.b16 %v2514
    %v2899 = vunpack.c.l.b16 %v2515
    %v2900 = vunpack.c.h.b16 %v2515
    %v2901 = vunpack.c.l.b16 %v2516
    %v2902 = vunpack.c.l.b16 %v2517
    %v2903 = vunpack.c.h.b16 %v2517
    %v2904 = vunpack.c.l.b16 %v2518
    %v2905 = vunpack.c.l.b16 %v2519
    %v2906 = vunpack.c.h.b16 %v2519
    %v2907 = vunpack.c.l.b16 %v2520
    %v2908 = vunpack.c.l.b16 %v2521
    %v2909 = vunpack.c.h.b16 %v2521
    %v2910 = vunpack.c.l.b16 %v2522
    %v2911 = vunpack.c.l.b16 %v2523
    %v2912 = vunpack.c.h.b16 %v2523
    %v2913 = vunpack.c.l.b16 %v2524
    %v2914 = vunpack.c.l.b16 %v2525
    %v2915 = vunpack.c.h.b16 %v2525
    %v2916 = vunpack.c.l.b16 %v2526
    %v2917 = vunpack.c.l.b16 %v2527
    %v2918 = vunpack.c.h.b16 %v2527
    %v2919 = vunpack.c.l.b16 %v2528
    %v2920 = vunpack.c.l.b16 %v2529
    %v2921 = vunpack.c.h.b16 %v2529
    %v2922 = vunpack.c.l.b16 %v2530
    %v2923 = vunpack.c.l.b16 %v2531
    %v2924 = vunpack.c.h.b16 %v2531
    %v2925 = vunpack.c.l.b16 %v2532
    %v2926 = vunpack.c.l.b16 %v2533
    %v2927 = vunpack.c.h.b16 %v2533
    %v2928 = vunpack.c.l.b16 %v2534
    %v2929 = vunpack.c.l.b16 %v2535
    %v2930 = vunpack.c.h.b16 %v2535
    %v2931 = vunpack.c.l.b16 %v2536
    %v2932 = vunpack.c.l.b16 %v2537
    %v2933 = vunpack.c.h.b16 %v2537
    %v2934 = vunpack.c.l.b16 %v2538
    %v2935 = vunpack.c.l.b16 %v2539
    %v2936 = vunpack.c.h.b16 %v2539
    %v2937 = vunpack.c.l.b16 %v2540
    %v2938 = vunpack.c.l.b16 %v2541
    %v2939 = vunpack.c.h.b16 %v2541
    %v2940 = vunpack.c.l.b16 %v2542
    %v2941 = vunpack.c.l.b16 %v2543
    %v2942 = vunpack.c.h.b16 %v2543
    %v2943 = vunpack.c.l.b16 %v2544
    %v2944 = vunpack.c.l.b16 %v2545
    %v2945 = vunpack.c.h.b16 %v2545
    %v2946 = vunpack.c.l.b16 %v2546
    %v2947 = vunpack.c.l.b16 %v2547
    %v2948 = vunpack.c.h.b16 %v2547
    %v2949 = vunpack.c.l.b16 %v2548
    %v2950 = vunpack.c.l.b16 %v2549
    %v2951 = vunpack.c.h.b16 %v2549
    %v2952 = vunpack.c.l.b16 %v2550
    %v2953 = vunpack.c.l.b16 %v2551
    %v2954 = vunpack.c.h.b16 %v2551
    %v2955 = vunpack.c.l.b16 %v2552
    %v2956 = vunpack.c.l.b16 %v2553
    %v2957 = vunpack.c.h.b16 %v2553
    %v2958 = vunpack.c.l.b16 %v2554
    %v2959 = vunpack.c.l.b16 %v2555
    %v2960 = vunpack.c.h.b16 %v2555
    %v2961 = vunpack.c.l.b16 %v2556
    %v2962 = vunpack.c.l.b16 %v2557
    %v2963 = vunpack.c.h.b16 %v2557
    %v2964 = vunpack.c.l.b16 %v2558
    %v2965 = vunpack.c.l.b16 %v2559
    %v2966 = vunpack.c.h.b16 %v2559
    %v2967 = vunpack.c.l.b16 %v2560
    %v2968 = vunpack.c.l.b16 %v2561
    %v2969 = vunpack.c.h.b16 %v2561
    %v2970 = vunpack.c.l.b16 %v2562
    %v2971 = vunpack.c.l.b16 %v2563
    %v2972 = vunpack.c.h.b16 %v2563
    %v2973 = vunpack.c.l.b16 %v2564
    %v2974 = vunpack.c.l.b16 %v2565
    %v2975 = vunpack.c.h.b16 %v2565
    %v2976 = vunpack.c.l.b16 %v2566
    %v2977 = vunpack.c.l.b16 %v2567
    %v2978 = vunpack.c.h.b16 %v2567
    %v2979 = vunpack.c.l.b16 %v2568
    %v2980 = vunpack.c.l.b16 %v2569
    %v2981 = vunpack.c.h.b16 %v2569
    %v2982 = vunpack.c.l.b16 %v2570
    %v2983 = vunpack.c.l.b16 %v2571
    %v2984 = vunpack.c.h.b16 %v2571
    %v2985 = vunpack.c.l.b16 %v2572
    %v2986 = vunpack.c.l.b16 %v2573
    %v2987 = vunpack.c.h.b16 %v2573
    %v2988 = vunpack.c.l.b16 %v2574
    %v2989 = vunpack.c.l.b16 %v2575
    %v2990 = vunpack.c.h.b16 %v2575
    %v2991 = vunpack.c.l.b16 %v2576
    %v2992 = vunpack.c.l.b16 %v2577
    %v2993 = vunpack.c.h.b16 %v2577
    %v2994 = vunpack.c.l.b16 %v2578
    %v2995 = vunpack.c.l.b16 %v2579
    %v2996 = vunpack.c.h.b16 %v2579
    %v2997 = vunpack.c.l.b16 %v2580
    %v2998 = vpack.c.b16 %v2761, %v2758
    %v2999 = vpack.c.b16 %v2762, %v2759
    %v3000 = vpack.c.b16 %v2763, %v2760
    %v3001 = vpack.c.b16 %v2767, %v2764
    %v3002 = vpack.c.b16 %v2768, %v2765
    %v3003 = vpack.c.b16 %v2769, %v2766
    %v3004 = vpack.c.b16 %v2773, %v2770
    %v3005 = vpack.c.b16 %v2774, %v2771
    %v3006 = vpack.c.b16 %v2775, %v2772
    %v3007 = vpack.c.b16 %v2779, %v2776
    %v3008 = vpack.c.b16 %v2780, %v2777
    %v3009 = vpack.c.b16 %v2781, %v2778
    %v3010 = vpack.c.b16 %v2785, %v2782
    %v3011 = vpack.c.b16 %v2786, %v2783
    %v3012 = vpack.c.b16 %v2787, %v2784
    %v3013 = vpack.c.b16 %v2791, %v2788
    %v3014 = vpack.c.b16 %v2792, %v2789
    %v3015 = vpack.c.b16 %v2793, %v2790
    %v3016 = vpack.c.b16 %v2797, %v2794
    %v3017 = vpack.c.b16 %v2798, %v2795
    %v3018 = vpack.c.b16 %v2799, %v2796
    %v3019 = vpack.c.b16 %v2803, %v2800
    %v3020 = vpack.c.b16 %v2804, %v2801
    %v3021 = vpack.c.b16 %v2805, %v2802
    %v3022 = vpack.c.b16 %v2809, %v2806
    %v3023 = vpack.c.b16 %v2810, %v2807
    %v3024 = vpack.c.b16 %v2811, %v2808
    %v3025 = vpack.c.b16 %v2815, %v2812
    %v3026 = vpack.c.b16 %v2816, %v2813
    %v3027 = vpack.c.b16 %v2817, %v2814
    %v3028 = vpack.c.b16 %v2821, %v2818
    %v3029 = vpack.c.b16 %v2822, %v2819
    %v3030 = vpack.c.b16 %v2823, %v2820
    %v3031 = vpack.c.b16 %v2827, %v2824
    %v3032 = vpack.c.b16 %v2828, %v2825
    %v3033 = vpack.c.b16 %v2829, %v2826
    %v3034 = vpack.c.b16 %v2833, %v2830
    %v3035 = vpack.c.b16 %v2834, %v2831
    %v3036 = vpack.c.b16 %v2835, %v2832
    %v3037 = vpack.c.b16 %v2839, %v2836
    %v3038 = vpack.c.b16 %v2840, %v2837
    %v3039 = vpack.c.b16 %v2841, %v2838
    %v3040 = vpack.c.b16 %v2845, %v2842
    %v3041 = vpack.c.b16 %v2846, %v2843
    %v3042 = vpack.c.b16 %v2847, %v2844
    %v3043 = vpack.c.b16 %v2851, %v2848
    %v3044 = vpack.c.b16 %v2852, %v2849
    %v3045 = vpack.c.b16 %v2853, %v2850
    %v3046 = vpack.c.b16 %v2857, %v2854
    %v3047 = vpack.c.b16 %v2858, %v2855
    %v3048 = vpack.c.b16 %v2859, %v2856
    %v3049 = vpack.c.b16 %v2863, %v2860
    %v3050 = vpack.c.b16 %v2864, %v2861
    %v3051 = vpack.c.b16 %v2865, %v2862
    %v3052 = vpack.c.b16 %v2869, %v2866
    %v3053 = vpack.c.b16 %v2870, %v2867
    %v3054 = vpack.c.b16 %v2871, %v2868
    %v3055 = vpack.c.b16 %v2875, %v2872
    %v3056 = vpack.c.b16 %v2876, %v2873
    %v3057 = vpack.c.b16 %v2877, %v2874
    %v3058 = vpack.c.b16 %v2881, %v2878
    %v3059 = vpack.c.b16 %v2882, %v2879
    %v3060 = vpack.c.b16 %v2883, %v2880
    %v3061 = vpack.c.b16 %v2887, %v2884
    %v3062 = vpack.c.b16 %v2888, %v2885
    %v3063 = vpack.c.b16 %v2889, %v2886
    %v3064 = vpack.c.b16 %v2893, %v2890
    %v3065 = vpack.c.b16 %v2894, %v2891
    %v3066 = vpack.c.b16 %v2895, %v2892
    %v3067 = vpack.c.b16 %v2899, %v2896
    %v3068 = vpack.c.b16 %v2900, %v2897
    %v3069 = vpack.c.b16 %v2901, %v2898
    %v3070 = vpack.c.b16 %v2905, %v2902
    %v3071 = vpack.c.b16 %v2906, %v2903
    %v3072 = vpack.c.b16 %v2907, %v2904
    %v3073 = vpack.c.b16 %v2911, %v2908
    %v3074 = vpack.c.b16 %v2912, %v2909
    %v3075 = vpack.c.b16 %v2913, %v2910
    %v3076 = vpack.c.b16 %v2917, %v2914
    %v3077 = vpack.c.b16 %v2918, %v2915
    %v3078 = vpack.c.b16 %v2919, %v2916
    %v3079 = vpack.c.b16 %v2923, %v2920
    %v3080 = vpack.c.b16 %v2924, %v2921
    %v3081 = vpack.c.b16 %v2925, %v2922
    %v3082 = vpack.c.b16 %v2929, %v2926
    %v3083 = vpack.c.b16 %v2930, %v2927
    %v3084 = vpack.c.b16 %v2931, %v2928
    %v3085 = vpack.c.b16 %v2935, %v2932
    %v3086 = vpack.c.b16 %v2936, %v2933
    %v3087 = vpack.c.b16 %v2937, %v2934
    %v3088 = vpack.c.b16 %v2941, %v2938
    %v3089 = vpack.c.b16 %v2942, %v2939
    %v3090 = vpack.c.b16 %v2943, %v2940
    %v3091 = vpack.c.b16 %v2947, %v2944
    %v3092 = vpack.c.b16 %v2948, %v2945
    %v3093 = vpack.c.b16 %v2949, %v2946
    %v3094 = vpack.c.b16 %v2953, %v2950
    %v3095 = vpack.c.b16 %v2954, %v2951
    %v3096 = vpack.c.b16 %v2955, %v2952
    %v3097 = vpack.c.b16 %v2959, %v2956
    %v3098 = vpack.c.b16 %v2960, %v2957
    %v3099 = vpack.c.b16 %v2961, %v2958
    %v3100 = vpack.c.b16 %v2965, %v2962
    %v3101 = vpack.c.b16 %v2966, %v2963
    %v3102 = vpack.c.b16 %v2967, %v2964
    %v3103 = vpack.c.b16 %v2971, %v2968
    %v3104 = vpack.c.b16 %v2972, %v2969
    %v3105 = vpack.c.b16 %v2973, %v2970
    %v3106 = vpack.c.b16 %v2977, %v2974
    %v3107 = vpack.c.b16 %v2978, %v2975
    %v3108 = vpack.c.b16 %v2979, %v2976
    %v3109 = vpack.c.b16 %v2983, %v2980
    %v3110 = vpack.c.b16 %v2984, %v2981
    %v3111 = vpack.c.b16 %v2985, %v2982
    %v3112 = vpack.c.b16 %v2989, %v2986
    %v3113 = vpack.c.b16 %v2990, %v2987
    %v3114 = vpack.c.b16 %v2991, %v2988
    %v3115 = vpack.c.b16 %v2995, %v2992
    %v3116 = vpack.c.b16 %v2996, %v2993
    %v3117 = vpack.c.b16 %v2997, %v2994
    %3238 = vmatprep.subr.bf16.mxu0 %v2999
    %3239 = vmatpush1.bf16.msra.mxu0 %v2998
    %3240 = vmatprep.subr.bf16.mxu0 %v3002
    %3241 = vmatpush1.bf16.msra.mxu0 %v3001
    %3242 = vmatprep.subr.bf16.mxu0 %v3005
    %3243 = vmatpush1.bf16.msra.mxu0 %v3004
    %3244 = vmatprep.subr.bf16.mxu0 %v3008
    %3245 = vmatpush1.bf16.msra.mxu0 %v3007
    %3246 = vmatprep.subr.bf16.mxu0 %v3011
    %3247 = vmatpush1.bf16.msra.mxu0 %v3010
    %3248 = vmatprep.subr.bf16.mxu0 %v3014
    %3249 = vmatpush1.bf16.msra.mxu0 %v3013
    %3250 = vmatprep.subr.bf16.mxu0 %v3017
    %3251 = vmatpush1.bf16.msra.mxu0 %v3016
    %3252 = vmatprep.subr.bf16.mxu0 %v3020
    %3253 = vmatpush1.bf16.msra.mxu0 %v3019
    %3254 = vmatprep.subr.bf16.mxu0 %v3023
    %3255 = vmatpush1.bf16.msra.mxu0 %v3022
    %3256 = vmatprep.subr.bf16.mxu0 %v3026
    %3257 = vmatpush1.bf16.msra.mxu0 %v3025
    %3258 = vmatprep.subr.bf16.mxu0 %v3029
    %3259 = vmatpush1.bf16.msra.mxu0 %v3028
    %3260 = vmatprep.subr.bf16.mxu0 %v3032
    %3261 = vmatpush1.bf16.msra.mxu0 %v3031
    %3262 = vmatprep.subr.bf16.mxu0 %v3035
    %3263 = vmatpush1.bf16.msra.mxu0 %v3034
    %3264 = vmatprep.subr.bf16.mxu0 %v3038
    %3265 = vmatpush1.bf16.msra.mxu0 %v3037
    %3266 = vmatprep.subr.bf16.mxu0 %v3041
    %3267 = vmatpush1.bf16.msra.mxu0 %v3040
    %3268 = vmatprep.subr.bf16.mxu0 %v3044
    %3269 = vmatpush1.bf16.msra.mxu0 %v3043
    %3270 = vmatprep.mubr.bf16.mxu0 %v2417
    %3271 = vmatmul.mubr.bf16.gmra.mrb[0].mxu0 %v2416
    %v3272 = vpop.f32.mrb[0].mxu0
    %v3273 = vadd.f32 %v2586, %v3272
    %v3274 = vpop.f32.mrb[0].mxu0
    %v3275 = vadd.f32 %v2590, %v3274
    %v3276 = vpop.f32.mrb[0].mxu0
    %v3277 = vpop.f32.mrb[0].mxu0
    %3278 = vdwg.mxu0
    %3279 = vmatprep.subr.bf16.mxu0 %v3047
    %3280 = vmatpush1.bf16.msra.mxu0 %v3046
    %3281 = vmatprep.subr.bf16.mxu0 %v3050
    %3282 = vmatpush1.bf16.msra.mxu0 %v3049
    %3283 = vmatprep.subr.bf16.mxu0 %v3053
    %3284 = vmatpush1.bf16.msra.mxu0 %v3052
    %3285 = vmatprep.subr.bf16.mxu0 %v3056
    %3286 = vmatpush1.bf16.msra.mxu0 %v3055
    %3287 = vmatprep.subr.bf16.mxu0 %v3059
    %3288 = vmatpush1.bf16.msra.mxu0 %v3058
    %3289 = vmatprep.subr.bf16.mxu0 %v3062
    %3290 = vmatpush1.bf16.msra.mxu0 %v3061
    %3291 = vmatprep.subr.bf16.mxu0 %v3065
    %3292 = vmatpush1.bf16.msra.mxu0 %v3064
    %3293 = vmatprep.subr.bf16.mxu0 %v3068
    %3294 = vmatpush1.bf16.msra.mxu0 %v3067
    %3295 = vmatprep.subr.bf16.mxu0 %v3071
    %3296 = vmatpush1.bf16.msra.mxu0 %v3070
    %3297 = vmatprep.subr.bf16.mxu0 %v3074
    %3298 = vmatpush1.bf16.msra.mxu0 %v3073
    %3299 = vmatprep.subr.bf16.mxu0 %v3077
    %3300 = vmatpush1.bf16.msra.mxu0 %v3076
    %3301 = vmatprep.subr.bf16.mxu0 %v3080
    %3302 = vmatpush1.bf16.msra.mxu0 %v3079
    %3303 = vmatprep.subr.bf16.mxu0 %v3083
    %3304 = vmatpush1.bf16.msra.mxu0 %v3082
    %3305 = vmatprep.subr.bf16.mxu0 %v3086
    %3306 = vmatpush1.bf16.msra.mxu0 %v3085
    %3307 = vmatprep.subr.bf16.mxu0 %v3089
    %3308 = vmatpush1.bf16.msra.mxu0 %v3088
    %3309 = vmatprep.subr.bf16.mxu0 %v3092
    %3310 = vmatpush1.bf16.msra.mxu0 %v3091
    %3311 = vmatprep.mubr.bf16.mxu0 %v2419
    %3312 = vmatmul.mubr.bf16.gmra.mrb[0].mxu0 %v2418
    %v3313 = vpop.f32.mrb[0].mxu0
    %v3314 = vadd.f32 %v3273, %v3313
    %v3315 = vpop.f32.mrb[0].mxu0
    %v3316 = vadd.f32 %v3275, %v3315
    %v3317 = vpop.f32.mrb[0].mxu0
    %v3318 = vpop.f32.mrb[0].mxu0
    %3319 = vdwg.mxu0
    %3320 = vmatprep.subr.bf16.mxu0 %v3095
    %3321 = vmatpush1.bf16.msra.mxu0 %v3094
    %3322 = vmatprep.subr.bf16.mxu0 %v3098
    %3323 = vmatpush1.bf16.msra.mxu0 %v3097
    %3324 = vmatprep.subr.bf16.mxu0 %v3101
    %3325 = vmatpush1.bf16.msra.mxu0 %v3100
    %3326 = vmatprep.subr.bf16.mxu0 %v3104
    %3327 = vmatpush1.bf16.msra.mxu0 %v3103
    %3328 = vmatprep.subr.bf16.mxu0 %v3107
    %3329 = vmatpush1.bf16.msra.mxu0 %v3106
    %3330 = vmatprep.subr.bf16.mxu0 %v3110
    %3331 = vmatpush1.bf16.msra.mxu0 %v3109
    %3332 = vmatprep.subr.bf16.mxu0 %v3113
    %3333 = vmatpush1.bf16.msra.mxu0 %v3112
    %3334 = vmatprep.subr.bf16.mxu0 %v3116
    %3335 = vmatpush1.bf16.msra.mxu0 %v3115
    %3336 = vmatprep.subr.bf16.mxu0 0
    %3337 = vmatpush1.bf16.msra.mxu0 0
    %3338 = vmatprep.subr.bf16.mxu0 0
    %3339 = vmatpush1.bf16.msra.mxu0 0
    %3340 = vmatprep.subr.bf16.mxu0 0
    %3341 = vmatpush1.bf16.msra.mxu0 0
    %3342 = vmatprep.subr.bf16.mxu0 0
    %3343 = vmatpush1.bf16.msra.mxu0 0
    %3344 = vmatprep.subr.bf16.mxu0 0
    %3345 = vmatpush1.bf16.msra.mxu0 0
    %3346 = vmatprep.subr.bf16.mxu0 0
    %3347 = vmatpush1.bf16.msra.mxu0 0
    %3348 = vmatprep.subr.bf16.mxu0 0
    %3349 = vmatpush1.bf16.msra.mxu0 0
    %3350 = vmatprep.subr.bf16.mxu0 0
    %3351 = vmatpush1.bf16.msra.mxu0 0
    %3352 = vmatprep.mubr.bf16.mxu0 0
    %3353 = vmatmul.mubr.bf16.gmra.mrb[0].mxu0 %v2420
    %v3354 = vpop.f32.mrb[0].mxu0
    %v3355 = vadd.f32 %v3314, %v3354
    %v3356 = vpop.f32.mrb[0].mxu0
    %v3357 = vadd.f32 %v3316, %v3356
    %v3358 = vpop.f32.mrb[0].mxu0
    %v3359 = vpop.f32.mrb[0].mxu0
    %3360 = vdwg.mxu0
    %3361 = vmatprep.subr.bf16.mxu0 0
    %3362 = vmatpush1.bf16.msra.mxu0 %v3000
    %3363 = vmatprep.subr.bf16.mxu0 0
    %3364 = vmatpush1.bf16.msra.mxu0 %v3003
    %3365 = vmatprep.subr.bf16.mxu0 0
    %3366 = vmatpush1.bf16.msra.mxu0 %v3006
    %3367 = vmatprep.subr.bf16.mxu0 0
    %3368 = vmatpush1.bf16.msra.mxu0 %v3009
    %3369 = vmatprep.subr.bf16.mxu0 0
    %3370 = vmatpush1.bf16.msra.mxu0 %v3012
    %3371 = vmatprep.subr.bf16.mxu0 0
    %3372 = vmatpush1.bf16.msra.mxu0 %v3015
    %3373 = vmatprep.subr.bf16.mxu0 0
    %3374 = vmatpush1.bf16.msra.mxu0 %v3018
    %3375 = vmatprep.subr.bf16.mxu0 0
    %3376 = vmatpush1.bf16.msra.mxu0 %v3021
    %3377 = vmatprep.subr.bf16.mxu0 0
    %3378 = vmatpush1.bf16.msra.mxu0 %v3024
    %3379 = vmatprep.subr.bf16.mxu0 0
    %3380 = vmatpush1.bf16.msra.mxu0 %v3027
    %3381 = vmatprep.subr.bf16.mxu0 0
    %3382 = vmatpush1.bf16.msra.mxu0 %v3030
    %3383 = vmatprep.subr.bf16.mxu0 0
    %3384 = vmatpush1.bf16.msra.mxu0 %v3033
    %3385 = vmatprep.subr.bf16.mxu0 0
    %3386 = vmatpush1.bf16.msra.mxu0 %v3036
    %3387 = vmatprep.subr.bf16.mxu0 0
    %3388 = vmatpush1.bf16.msra.mxu0 %v3039
    %3389 = vmatprep.subr.bf16.mxu0 0
    %3390 = vmatpush1.bf16.msra.mxu0 %v3042
    %3391 = vmatprep.subr.bf16.mxu0 0
    %3392 = vmatpush1.bf16.msra.mxu0 %v3045
    %3393 = vmatprep.mubr.bf16.mxu0 %v2417
    %3394 = vmatmul.mubr.bf16.gmra.mrb[0].mxu0 %v2416
    %v3395 = vpop.f32.mrb[0].mxu0
    %v3396 = vadd.f32 %v2594, %v3395
    %v3397 = vpop.f32.mrb[0].mxu0
    %v3398 = vpop.f32.mrb[0].mxu0
    %v3399 = vpop.f32.mrb[0].mxu0
    %3400 = vdwg.mxu0
    %3401 = vmatprep.subr.bf16.mxu0 0
    %3402 = vmatpush1.bf16.msra.mxu0 %v3048
    %3403 = vmatprep.subr.bf16.mxu0 0
    %3404 = vmatpush1.bf16.msra.mxu0 %v3051
    %3405 = vmatprep.subr.bf16.mxu0 0
    %3406 = vmatpush1.bf16.msra.mxu0 %v3054
    %3407 = vmatprep.subr.bf16.mxu0 0
    %3408 = vmatpush1.bf16.msra.mxu0 %v3057
    %3409 = vmatprep.subr.bf16.mxu0 0
    %3410 = vmatpush1.bf16.msra.mxu0 %v3060
    %3411 = vmatprep.subr.bf16.mxu0 0
    %3412 = vmatpush1.bf16.msra.mxu0 %v3063
    %3413 = vmatprep.subr.bf16.mxu0 0
    %3414 = vmatpush1.bf16.msra.mxu0 %v3066
    %3415 = vmatprep.subr.bf16.mxu0 0
    %3416 = vmatpush1.bf16.msra.mxu0 %v3069
    %3417 = vmatprep.subr.bf16.mxu0 0
    %3418 = vmatpush1.bf16.msra.mxu0 %v3072
    %3419 = vmatprep.subr.bf16.mxu0 0
    %3420 = vmatpush1.bf16.msra.mxu0 %v3075
    %3421 = vmatprep.subr.bf16.mxu0 0
    %3422 = vmatpush1.bf16.msra.mxu0 %v3078
    %3423 = vmatprep.subr.bf16.mxu0 0
    %3424 = vmatpush1.bf16.msra.mxu0 %v3081
    %3425 = vmatprep.subr.bf16.mxu0 0
    %3426 = vmatpush1.bf16.msra.mxu0 %v3084
    %3427 = vmatprep.subr.bf16.mxu0 0
    %3428 = vmatpush1.bf16.msra.mxu0 %v3087
    %3429 = vmatprep.subr.bf16.mxu0 0
    %3430 = vmatpush1.bf16.msra.mxu0 %v3090
    %3431 = vmatprep.subr.bf16.mxu0 0
    %3432 = vmatpush1.bf16.msra.mxu0 %v3093
    %3433 = vmatprep.mubr.bf16.mxu0 %v2419
    %3434 = vmatmul.mubr.bf16.gmra.mrb[0].mxu0 %v2418
    %v3435 = vpop.f32.mrb[0].mxu0
    %v3436 = vadd.f32 %v3396, %v3435
    %v3437 = vpop.f32.mrb[0].mxu0
    %v3438 = vpop.f32.mrb[0].mxu0
    %v3439 = vpop.f32.mrb[0].mxu0
    %3440 = vdwg.mxu0
    %3441 = vmatprep.subr.bf16.mxu0 0
    %3442 = vmatpush1.bf16.msra.mxu0 %v3096
    %3443 = vmatprep.subr.bf16.mxu0 0
    %3444 = vmatpush1.bf16.msra.mxu0 %v3099
    %3445 = vmatprep.subr.bf16.mxu0 0
    %3446 = vmatpush1.bf16.msra.mxu0 %v3102
    %3447 = vmatprep.subr.bf16.mxu0 0
    %3448 = vmatpush1.bf16.msra.mxu0 %v3105
    %3449 = vmatprep.subr.bf16.mxu0 0
    %3450 = vmatpush1.bf16.msra.mxu0 %v3108
    %3451 = vmatprep.subr.bf16.mxu0 0
    %3452 = vmatpush1.bf16.msra.mxu0 %v3111
    %3453 = vmatprep.subr.bf16.mxu0 0
    %3454 = vmatpush1.bf16.msra.mxu0 %v3114
    %3455 = vmatprep.subr.bf16.mxu0 0
    %3456 = vmatpush1.bf16.msra.mxu0 %v3117
    %3457 = vmatprep.subr.bf16.mxu0 0
    %3458 = vmatpush1.bf16.msra.mxu0 0
    %3459 = vmatprep.subr.bf16.mxu0 0
    %3460 = vmatpush1.bf16.msra.mxu0 0
    %3461 = vmatprep.subr.bf16.mxu0 0
    %3462 = vmatpush1.bf16.msra.mxu0 0
    %3463 = vmatprep.subr.bf16.mxu0 0
    %3464 = vmatpush1.bf16.msra.mxu0 0
    %3465 = vmatprep.subr.bf16.mxu0 0
    %3466 = vmatpush1.bf16.msra.mxu0 0
    %3467 = vmatprep.subr.bf16.mxu0 0
    %3468 = vmatpush1.bf16.msra.mxu0 0
    %3469 = vmatprep.subr.bf16.mxu0 0
    %3470 = vmatpush1.bf16.msra.mxu0 0
    %3471 = vmatprep.subr.bf16.mxu0 0
    %3472 = vmatpush1.bf16.msra.mxu0 0
    %3473 = vmatprep.mubr.bf16.mxu0 0
    %3474 = vmatmul.mubr.bf16.gmra.mrb[0].mxu0 %v2420
    %v3475 = vpop.f32.mrb[0].mxu0
    %v3476 = vadd.f32 %v3436, %v3475
    %v3477 = vpop.f32.mrb[0].mxu0
    %v3478 = vpop.f32.mrb[0].mxu0
    %v3479 = vpop.f32.mrb[0].mxu0
    %3480 = vdwg.mxu0
    %v3481 = vmax.f32 %v3355, 0.0
    %v3482 = vmax.f32 %v3357, 0.0
    %v3483 = vmax.f32 %v3476, 0.0
    %v3484 = vpack.c.bf16 %v3481, %v3481
    %v3485 = vpack.c.bf16 %v3482, %v3482
    %v3486 = vpack.c.bf16 %v3483, %v3483
    %v3487 = vld [vmem:[#allocation10] sm:$0xff]
    %v3488 = vld [vmem:[#allocation10 + $0x8] sm:$0xff]
    %v3489 = vld [vmem:[#allocation10 + $0x10] sm:$0xff]
    %v3490 = vld [vmem:[#allocation10 + $0x18] sm:$0xff]
    %v3491 = vld [vmem:[#allocation10 + $0x20] sm:$0xff]
    %v3492 = vld [vmem:[#allocation10 + $0x28] sm:$0xff]
    %v3493 = vld [vmem:[#allocation10 + $0x30] sm:$0xff]
    %v3494 = vld [vmem:[#allocation10 + $0x38] sm:$0xff]
    %v3495 = vld [vmem:[#allocation10 + $0x40] sm:$0xff]
    %v3496 = vld [vmem:[#allocation10 + $0x48] sm:$0xff]
    %v3497 = vld [vmem:[#allocation10 + $0x50] sm:$0xff]
    %v3498 = vld [vmem:[#allocation10 + $0x58] sm:$0xff]
    %v3499 = vld [vmem:[#allocation10 + $0x60] sm:$0xff]
    %v3500 = vld [vmem:[#allocation10 + $0x68] sm:$0xff]
    %v3501 = vld [vmem:[#allocation10 + $0x70] sm:$0xff]
    %v3502 = vld [vmem:[#allocation10 + $0x78] sm:$0xff]
    %v3503 = vld [vmem:[#allocation10 + $0x80] sm:$0xff]
    %v3504 = vld [vmem:[#allocation10 + $0x88] sm:$0xff]
    %v3505 = vld [vmem:[#allocation10 + $0x90] sm:$0xff]
    %v3506 = vld [vmem:[#allocation10 + $0x98] sm:$0xff]
    %v3507 = vld [vmem:[#allocation10 + $0xa0] sm:$0xff]
    %v3508 = vld [vmem:[#allocation10 + $0xa8] sm:$0xff]
    %v3509 = vld [vmem:[#allocation10 + $0xb0] sm:$0xff]
    %v3510 = vld [vmem:[#allocation10 + $0xb8] sm:$0xff]
    %v3511 = vld [vmem:[#allocation10 + $0xc0] sm:$0xff]
    %v3512 = vld [vmem:[#allocation10 + $0xc8] sm:$0xff]
    %v3513 = vld [vmem:[#allocation10 + $0xd0] sm:$0xff]
    %v3514 = vld [vmem:[#allocation10 + $0xd8] sm:$0xff]
    %v3515 = vld [vmem:[#allocation10 + $0xe0] sm:$0xff]
    %v3516 = vld [vmem:[#allocation10 + $0xe8] sm:$0xff]
    %v3517 = vld [vmem:[#allocation10 + $0xf0] sm:$0xff]
    %v3518 = vld [vmem:[#allocation10 + $0xf8] sm:$0xff]
    %v3519 = vld [vmem:[#allocation10 + $0x100] sm:$0xff]
    %v3520 = vld [vmem:[#allocation10 + $0x108] sm:$0xff]
    %v3521 = vld [vmem:[#allocation10 + $0x110] sm:$0xff]
    %v3522 = vld [vmem:[#allocation10 + $0x118] sm:$0xff]
    %v3523 = vld [vmem:[#allocation10 + $0x120] sm:$0xff]
    %v3524 = vld [vmem:[#allocation10 + $0x128] sm:$0xff]
    %v3525 = vld [vmem:[#allocation10 + $0x130] sm:$0xff]
    %v3526 = vld [vmem:[#allocation10 + $0x138] sm:$0xff]
    %v3527 = vld [vmem:[#allocation10 + $0x140] sm:$0xff]
    %v3528 = vld [vmem:[#allocation10 + $0x148] sm:$0xff]
    %v3529 = vld [vmem:[#allocation10 + $0x150] sm:$0xff]
    %v3530 = vld [vmem:[#allocation10 + $0x158] sm:$0xff]
    %v3531 = vld [vmem:[#allocation10 + $0x160] sm:$0xff]
    %v3532 = vld [vmem:[#allocation10 + $0x168] sm:$0xff]
    %v3533 = vld [vmem:[#allocation10 + $0x170] sm:$0xff]
    %v3534 = vld [vmem:[#allocation10 + $0x178] sm:$0xff]
    %v3535 = vld [vmem:[#allocation11] sm:$0x3]
    %v3537 = vlaneseq
    %v3538 = vshrl.u32 %v3537, 7
    %v3539 = vsub.s32 0, %v3538
    %v3540 = vrot.slane %v3535, %v3539
    %v3541 = vlaneseq
    %v3542 = vshrl.u32 %v3541, 7
    %v3543 = vsub.s32 1, %v3542
    %v3544 = vrot.slane %v3535, %v3543
    %v3595 = vunpack.c.l.b16 %v3487
    %v3596 = vunpack.c.h.b16 %v3487
    %v3597 = vunpack.c.l.b16 %v3488
    %v3598 = vunpack.c.h.b16 %v3488
    %v3599 = vunpack.c.l.b16 %v3489
    %v3600 = vunpack.c.h.b16 %v3489
    %v3601 = vunpack.c.l.b16 %v3490
    %v3602 = vunpack.c.h.b16 %v3490
    %v3603 = vunpack.c.l.b16 %v3491
    %v3604 = vunpack.c.h.b16 %v3491
    %v3605 = vunpack.c.l.b16 %v3492
    %v3606 = vunpack.c.h.b16 %v3492
    %v3607 = vunpack.c.l.b16 %v3493
    %v3608 = vunpack.c.h.b16 %v3493
    %v3609 = vunpack.c.l.b16 %v3494
    %v3610 = vunpack.c.h.b16 %v3494
    %v3611 = vunpack.c.l.b16 %v3495
    %v3612 = vunpack.c.h.b16 %v3495
    %v3613 = vunpack.c.l.b16 %v3496
    %v3614 = vunpack.c.h.b16 %v3496
    %v3615 = vunpack.c.l.b16 %v3497
    %v3616 = vunpack.c.h.b16 %v3497
    %v3617 = vunpack.c.l.b16 %v3498
    %v3618 = vunpack.c.h.b16 %v3498
    %v3619 = vunpack.c.l.b16 %v3499
    %v3620 = vunpack.c.h.b16 %v3499
    %v3621 = vunpack.c.l.b16 %v3500
    %v3622 = vunpack.c.h.b16 %v3500
    %v3623 = vunpack.c.l.b16 %v3501
    %v3624 = vunpack.c.h.b16 %v3501
    %v3625 = vunpack.c.l.b16 %v3502
    %v3626 = vunpack.c.h.b16 %v3502
    %v3627 = vunpack.c.l.b16 %v3503
    %v3628 = vunpack.c.h.b16 %v3503
    %v3629 = vunpack.c.l.b16 %v3504
    %v3630 = vunpack.c.h.b16 %v3504
    %v3631 = vunpack.c.l.b16 %v3505
    %v3632 = vunpack.c.h.b16 %v3505
    %v3633 = vunpack.c.l.b16 %v3506
    %v3634 = vunpack.c.h.b16 %v3506
    %v3635 = vunpack.c.l.b16 %v3507
    %v3636 = vunpack.c.h.b16 %v3507
    %v3637 = vunpack.c.l.b16 %v3508
    %v3638 = vunpack.c.h.b16 %v3508
    %v3639 = vunpack.c.l.b16 %v3509
    %v3640 = vunpack.c.h.b16 %v3509
    %v3641 = vunpack.c.l.b16 %v3510
    %v3642 = vunpack.c.h.b16 %v3510
    %v3643 = vunpack.c.l.b16 %v3511
    %v3644 = vunpack.c.h.b16 %v3511
    %v3645 = vunpack.c.l.b16 %v3512
    %v3646 = vunpack.c.h.b16 %v3512
    %v3647 = vunpack.c.l.b16 %v3513
    %v3648 = vunpack.c.h.b16 %v3513
    %v3649 = vunpack.c.l.b16 %v3514
    %v3650 = vunpack.c.h.b16 %v3514
    %v3651 = vunpack.c.l.b16 %v3515
    %v3652 = vunpack.c.h.b16 %v3515
    %v3653 = vunpack.c.l.b16 %v3516
    %v3654 = vunpack.c.h.b16 %v3516
    %v3655 = vunpack.c.l.b16 %v3517
    %v3656 = vunpack.c.h.b16 %v3517
    %v3657 = vunpack.c.l.b16 %v3518
    %v3658 = vunpack.c.h.b16 %v3518
    %v3659 = vunpack.c.l.b16 %v3519
    %v3660 = vunpack.c.h.b16 %v3519
    %v3661 = vunpack.c.l.b16 %v3520
    %v3662 = vunpack.c.h.b16 %v3520
    %v3663 = vunpack.c.l.b16 %v3521
    %v3664 = vunpack.c.h.b16 %v3521
    %v3665 = vunpack.c.l.b16 %v3522
    %v3666 = vunpack.c.h.b16 %v3522
    %v3667 = vunpack.c.l.b16 %v3523
    %v3668 = vunpack.c.h.b16 %v3523
    %v3669 = vunpack.c.l.b16 %v3524
    %v3670 = vunpack.c.h.b16 %v3524
    %v3671 = vunpack.c.l.b16 %v3525
    %v3672 = vunpack.c.h.b16 %v3525
    %v3673 = vunpack.c.l.b16 %v3526
    %v3674 = vunpack.c.h.b16 %v3526
    %v3675 = vunpack.c.l.b16 %v3527
    %v3676 = vunpack.c.h.b16 %v3527
    %v3677 = vunpack.c.l.b16 %v3528
    %v3678 = vunpack.c.h.b16 %v3528
    %v3679 = vunpack.c.l.b16 %v3529
    %v3680 = vunpack.c.h.b16 %v3529
    %v3681 = vunpack.c.l.b16 %v3530
    %v3682 = vunpack.c.h.b16 %v3530
    %v3683 = vunpack.c.l.b16 %v3531
    %v3684 = vunpack.c.h.b16 %v3531
    %v3685 = vunpack.c.l.b16 %v3532
    %v3686 = vunpack.c.h.b16 %v3532
    %v3687 = vunpack.c.l.b16 %v3533
    %v3688 = vunpack.c.h.b16 %v3533
    %v3689 = vunpack.c.l.b16 %v3534
    %v3690 = vunpack.c.h.b16 %v3534
    %v3691 = vpack.c.b16 %v3597, %v3595
    %v3692 = vpack.c.b16 %v3598, %v3596
    %v3693 = vpack.c.b16 %v3601, %v3599
    %v3694 = vpack.c.b16 %v3602, %v3600
    %v3695 = vpack.c.b16 %v3605, %v3603
    %v3696 = vpack.c.b16 %v3606, %v3604
    %v3697 = vpack.c.b16 %v3609, %v3607
    %v3698 = vpack.c.b16 %v3610, %v3608
    %v3699 = vpack.c.b16 %v3613, %v3611
    %v3700 = vpack.c.b16 %v3614, %v3612
    %v3701 = vpack.c.b16 %v3617, %v3615
    %v3702 = vpack.c.b16 %v3618, %v3616
    %v3703 = vpack.c.b16 %v3621, %v3619
    %v3704 = vpack.c.b16 %v3622, %v3620
    %v3705 = vpack.c.b16 %v3625, %v3623
    %v3706 = vpack.c.b16 %v3626, %v3624
    %v3707 = vpack.c.b16 %v3629, %v3627
    %v3708 = vpack.c.b16 %v3630, %v3628
    %v3709 = vpack.c.b16 %v3633, %v3631
    %v3710 = vpack.c.b16 %v3634, %v3632
    %v3711 = vpack.c.b16 %v3637, %v3635
    %v3712 = vpack.c.b16 %v3638, %v3636
    %v3713 = vpack.c.b16 %v3641, %v3639
    %v3714 = vpack.c.b16 %v3642, %v3640
    %v3715 = vpack.c.b16 %v3645, %v3643
    %v3716 = vpack.c.b16 %v3646, %v3644
    %v3717 = vpack.c.b16 %v3649, %v3647
    %v3718 = vpack.c.b16 %v3650, %v3648
    %v3719 = vpack.c.b16 %v3653, %v3651
    %v3720 = vpack.c.b16 %v3654, %v3652
    %v3721 = vpack.c.b16 %v3657, %v3655
    %v3722 = vpack.c.b16 %v3658, %v3656
    %v3723 = vpack.c.b16 %v3661, %v3659
    %v3724 = vpack.c.b16 %v3662, %v3660
    %v3725 = vpack.c.b16 %v3665, %v3663
    %v3726 = vpack.c.b16 %v3666, %v3664
    %v3727 = vpack.c.b16 %v3669, %v3667
    %v3728 = vpack.c.b16 %v3670, %v3668
    %v3729 = vpack.c.b16 %v3673, %v3671
    %v3730 = vpack.c.b16 %v3674, %v3672
    %v3731 = vpack.c.b16 %v3677, %v3675
    %v3732 = vpack.c.b16 %v3678, %v3676
    %v3733 = vpack.c.b16 %v3681, %v3679
    %v3734 = vpack.c.b16 %v3682, %v3680
    %v3735 = vpack.c.b16 %v3685, %v3683
    %v3736 = vpack.c.b16 %v3686, %v3684
    %v3737 = vpack.c.b16 %v3689, %v3687
    %v3738 = vpack.c.b16 %v3690, %v3688
    %3787 = vmatprep.subr.bf16.mxu0 %v3692
    %3788 = vmatpush1.bf16.msra.mxu0 %v3691
    %3789 = vmatprep.subr.bf16.mxu0 %v3694
    %3790 = vmatpush1.bf16.msra.mxu0 %v3693
    %3791 = vmatprep.subr.bf16.mxu0 %v3696
    %3792 = vmatpush1.bf16.msra.mxu0 %v3695
    %3793 = vmatprep.subr.bf16.mxu0 %v3698
    %3794 = vmatpush1.bf16.msra.mxu0 %v3697
    %3795 = vmatprep.subr.bf16.mxu0 %v3700
    %3796 = vmatpush1.bf16.msra.mxu0 %v3699
    %3797 = vmatprep.subr.bf16.mxu0 %v3702
    %3798 = vmatpush1.bf16.msra.mxu0 %v3701
    %3799 = vmatprep.subr.bf16.mxu0 %v3704
    %3800 = vmatpush1.bf16.msra.mxu0 %v3703
    %3801 = vmatprep.subr.bf16.mxu0 %v3706
    %3802 = vmatpush1.bf16.msra.mxu0 %v3705
    %3803 = vmatprep.subr.bf16.mxu0 %v3708
    %3804 = vmatpush1.bf16.msra.mxu0 %v3707
    %3805 = vmatprep.subr.bf16.mxu0 %v3710
    %3806 = vmatpush1.bf16.msra.mxu0 %v3709
    %3807 = vmatprep.subr.bf16.mxu0 %v3712
    %3808 = vmatpush1.bf16.msra.mxu0 %v3711
    %3809 = vmatprep.subr.bf16.mxu0 %v3714
    %3810 = vmatpush1.bf16.msra.mxu0 %v3713
    %3811 = vmatprep.subr.bf16.mxu0 %v3716
    %3812 = vmatpush1.bf16.msra.mxu0 %v3715
    %3813 = vmatprep.subr.bf16.mxu0 %v3718
    %3814 = vmatpush1.bf16.msra.mxu0 %v3717
    %3815 = vmatprep.subr.bf16.mxu0 %v3720
    %3816 = vmatpush1.bf16.msra.mxu0 %v3719
    %3817 = vmatprep.subr.bf16.mxu0 %v3722
    %3818 = vmatpush1.bf16.msra.mxu0 %v3721
    %3819 = vmatprep.mubr.bf16.mxu0 %v3485
    %3820 = vmatmul.mubr.bf16.gmra.mrb[0].mxu0 %v3484
    %v3821 = vpop.f32.mrb[0].mxu0
    %v3822 = vadd.f32 %v3540, %v3821
    %v3823 = vpop.f32.mrb[0].mxu0
    %v3824 = vadd.f32 %v3544, %v3823
    %v3825 = vpop.f32.mrb[0].mxu0
    %v3826 = vpop.f32.mrb[0].mxu0
    %3827 = vdwg.mxu0
    %3828 = vmatprep.subr.bf16.mxu0 %v3724
    %3829 = vmatpush1.bf16.msra.mxu0 %v3723
    %3830 = vmatprep.subr.bf16.mxu0 %v3726
    %3831 = vmatpush1.bf16.msra.mxu0 %v3725
    %3832 = vmatprep.subr.bf16.mxu0 %v3728
    %3833 = vmatpush1.bf16.msra.mxu0 %v3727
    %3834 = vmatprep.subr.bf16.mxu0 %v3730
    %3835 = vmatpush1.bf16.msra.mxu0 %v3729
    %3836 = vmatprep.subr.bf16.mxu0 %v3732
    %3837 = vmatpush1.bf16.msra.mxu0 %v3731
    %3838 = vmatprep.subr.bf16.mxu0 %v3734
    %3839 = vmatpush1.bf16.msra.mxu0 %v3733
    %3840 = vmatprep.subr.bf16.mxu0 %v3736
    %3841 = vmatpush1.bf16.msra.mxu0 %v3735
    %3842 = vmatprep.subr.bf16.mxu0 %v3738
    %3843 = vmatpush1.bf16.msra.mxu0 %v3737
    %3844 = vmatprep.subr.bf16.mxu0 0
    %3845 = vmatpush1.bf16.msra.mxu0 0
    %3846 = vmatprep.subr.bf16.mxu0 0
    %3847 = vmatpush1.bf16.msra.mxu0 0
    %3848 = vmatprep.subr.bf16.mxu0 0
    %3849 = vmatpush1.bf16.msra.mxu0 0
    %3850 = vmatprep.subr.bf16.mxu0 0
    %3851 = vmatpush1.bf16.msra.mxu0 0
    %3852 = vmatprep.subr.bf16.mxu0 0
    %3853 = vmatpush1.bf16.msra.mxu0 0
    %3854 = vmatprep.subr.bf16.mxu0 0
    %3855 = vmatpush1.bf16.msra.mxu0 0
    %3856 = vmatprep.subr.bf16.mxu0 0
    %3857 = vmatpush1.bf16.msra.mxu0 0
    %3858 = vmatprep.subr.bf16.mxu0 0
    %3859 = vmatpush1.bf16.msra.mxu0 0
    %3860 = vmatprep.mubr.bf16.mxu0 0
    %3861 = vmatmul.mubr.bf16.gmra.mrb[0].mxu0 %v3486
    %v3862 = vpop.f32.mrb[0].mxu0
    %v3863 = vadd.f32 %v3822, %v3862
    %v3864 = vpop.f32.mrb[0].mxu0
    %v3865 = vadd.f32 %v3824, %v3864
    %v3866 = vpop.f32.mrb[0].mxu0
    %v3867 = vpop.f32.mrb[0].mxu0
    %3868 = vdwg.mxu0
    %v3869 = vmax.f32 %v3863, %v3865
    %3870 = vmax.xlane.f32.xlu0 %v3869
    %v3871 = vpop.xlane.xlu0 %3870
    %v3872 = vsub.f32 %v3863, %v3871
    %v3873 = vsub.f32 %v3865, %v3871
    %v3874 = vmul.f32 %v3872, 1.442695
    %v3875 = vpow.pop %v3874
    %v3876 = vmul.f32 %v3873, 1.442695
    %v3877 = vpow.pop %v3876
    %v3878 = vadd.f32 %v3875, %v3877
    %3879 = vadd.xlane.f32.xlu0 %v3878
    %v3880 = vpop.xlane.xlu0 %3879
    %v3881 = vrcp.pop %v3880
    %v3882 = vmul.f32 %v3875, %v3881
    %v3883 = vmul.f32 %v3877, %v3881
    %3884 = vst [vmem:[#allocation13] sm:$0xff] %v3882
    %3885 = vst [vmem:[#allocation13 + $0x8] sm:$0xff] %v3883
    // Predicated region
    $region54: #{mlp_forward.1} parent=1 // pred_check
      _
    $region55: #{mlp_forward.1} parent=1 // pred_check_branch
      %3887 = sbr.rel (0) target = $region57
    $region56: #{mlp_forward.1} parent=1 // pred_region
      %s3889 = ssub.s32 256, 256
      %3890 = vsyncadd [#allocation4], %s3889
      %s3892 = sshll.u32 [#allocation13], 4
      %s3893 = int_to_ptr.vmem [resolvable:$true] %s3892
      %3895 = dma.vmem_to_hbm [thread:$0]  %s3893, 256, %s7, [#allocation4]
    $region57: #{mlp_forward.1} parent=1 // pred_fallthru
      _
    // Predicated region
    $region58: #{mlp_forward.1} parent=1 // pred_check
      _
    $region59: #{mlp_forward.1} parent=1 // pred_check_branch
      %3897 = sbr.rel (0) target = $region61
    $region60: #{mlp_forward.1} parent=1 // pred_region
      %3898 = dma.done [#allocation4], 256
    $region61: #{mlp_forward.1} parent=1 // pred_fallthru
      _
    %3899 = vsyncpa [#allocation3], 1
    %3900 = vsyncpa [#allocation6], 1
    %3901 = vsyncpa [#allocation9], 1
    %3902 = vsyncpa [#allocation12], 1
    %3903 = vsyncpa [#allocation4], 1

</llo_original>
